<compile_context>
chip_gen: v5e
topology: v5e:2x2
jax: 0.10.0
libtpu: 0.0.40
codegen_flags: <defaults>
</compile_context>

<pallas_src>
import functools

import jax
import jax.numpy as jnp
from jax.experimental import pallas as pl
from jax.experimental.pallas import tpu as pltpu

# ----------------------------- problem constants -----------------------------
T0 = 0.0
T1 = 1.0
BETA_MIN = 0.1
BETA_MAX = 50.0
N_STEPS = 100                        # register_buffer('steps', linspace(t0,t1,100))
DT_STEP = (T1 - T0) / (N_STEPS - 1)  # steps[1] - steps[0]

BATCH = 64
PARTITIONS = 4
C, Himg, Wimg = 4, 16, 16
D = C * Himg * Wimg                  # 1024
HIDDEN = 128
N = BATCH * PARTITIONS               # 256


def _round_up(x, m):
    return ((x + m - 1) // m) * m


def _device_kind():
    try:
        return jax.devices()[0].device_kind.lower()
    except Exception:
        return ""


# --------------------------------- kernel ------------------------------------
def sde_loss_kernel(x0_ref, eps_ref, coef_ref,
                    w1_ref, b1_ref, wt_ref, w2_ref, b2_ref,
                    loss_ref, *, xt_in_bf16):
    # Packed per-row coefficients, precomputed in the wrapper:
    #   [t, e=exp(-0.5*delta), sqrt(var), scale=sqrt(var)/clamp(var), var]
    c = coef_ref[...]                                   # (TN, 5) f32
    t = c[:, 0:1]
    e = c[:, 1:2]
    sqrt_var = c[:, 2:3]
    scale = c[:, 3:4]
    var = c[:, 4:5]

    # analytical_sample: x_t = x0*e + eps*sqrt(var)   (mean = x0*e)
    if xt_in_bf16:
        # v6e / v7x: bf16 VALU — fused bf16 FMA, no f32 (TN, D) temp / casts.
        x_t = (x0_ref[...] * e.astype(jnp.bfloat16)
               + eps_ref[...] * sqrt_var.astype(jnp.bfloat16))      # (TN, D) bf16
    else:
        # v5e (and older): no bf16 VALU — compute in f32, single cast into MXU.
        x_t = (x0_ref[...].astype(jnp.float32) * e
               + eps_ref[...].astype(jnp.float32) * sqrt_var
               ).astype(jnp.bfloat16)                               # (TN, D) bf16

    # denoiser (synthetic 2-layer time-conditioned MLP) -> fake_score.
    # bf16 MXU operands, f32 accumulation / activations.
    h = jnp.tanh(
        jnp.dot(x_t, w1_ref[...], preferred_element_type=jnp.float32)
        + t * wt_ref[...]                                           # time cond
        + b1_ref[...]
    )                                                               # (TN, H) f32
    fake_score = (
        jnp.dot(h.astype(jnp.bfloat16), w2_ref[...],
                preferred_element_type=jnp.float32)
        + b2_ref[...]
    )                                                               # (TN, D) f32

    # analytical_score: -(x_t - mean)/clamp(var) == -eps * sqrt(var)/clamp(var)
    diff = fake_score + eps_ref[...].astype(jnp.float32) * scale    # fake - true
    loss_ref[...] = var * jnp.sum(diff * diff, axis=1, keepdims=True)


# --------------------------------- wrapper ------------------------------------
def score_matching_loss(x0_flat, t, eps, steps, wvar, w1, b1, wt, w2, b2,
                        tile_n=None, xt_in_bf16=None):
    kind = _device_kind()
    is_v6 = ("v6" in kind) or ("trillium" in kind)
    is_v7 = ("v7" in kind) or ("7x" in kind)
    if tile_n is None:
        # v6e: one 256-row tile fills the MXU and removes a grid step.
        # v7x / v5e / unknown: 128-row tiles (core sharding / DMA overlap).
        tile_n = 256 if is_v6 else 128
    if xt_in_bf16 is None:
        xt_in_bf16 = is_v6 or is_v7          # bf16 VALU generations only

    n, d = x0_flat.shape
    hdim = w1.shape[1]

    # Streamed inputs live in HBM as bf16 (halves HBM traffic, native MXU in).
    x0_flat = x0_flat.astype(jnp.bfloat16)
    eps = eps.astype(jnp.bfloat16)
    t = t.astype(jnp.float32)

    # Pad rows so N is a multiple of the row tile (f32 sublane = 8 minimum).
    tile_n = max(8, min(tile_n, _round_up(n, 8)))
    n_pad = _round_up(n, tile_n)
    if n_pad != n:
        x0_flat = jnp.pad(x0_flat, ((0, n_pad - n), (0, 0)))
        eps = jnp.pad(eps, ((0, n_pad - n), (0, 0)))
        t = jnp.pad(t, ((0, n_pad - n), (0, 0)), constant_values=1.0)

    # ---- hoisted per-row scalar pipeline (fuses into surrounding XLA ops) ----
    # _indefinite_int(t) - _indefinite_int(t0); with t0 = 0 and steps[0] = 0
    # the strict '>' makes the t0 term identically zero, so it is dropped.
    beta_steps = BETA_MIN + steps * (BETA_MAX - BETA_MIN)            # (1, S)
    integ = beta_steps * wvar * jnp.float32(DT_STEP)                 # (1, S)
    ind = (t - steps > 0.0).astype(jnp.float32)                      # (n_pad, S)
    delta = jnp.sum(ind * integ, axis=1, keepdims=True)              # (n_pad, 1)
    e = jnp.exp(-0.5 * delta)                                        # mean coeff
    var = 1.0 - e * e                                                # == lambda_t
    sqrt_var = jnp.sqrt(var)
    scale = sqrt_var / jnp.maximum(var, 1e-5)
    coeffs = jnp.concatenate([t, e, sqrt_var, scale, var],
                             axis=1).astype(jnp.float32)             # (n_pad, 5)

    grid = (pl.cdiv(n_pad, tile_n),)
    row_spec = lambda shape: pl.BlockSpec(shape, lambda i: (i, 0))    # streamed
    const_spec = lambda shape: pl.BlockSpec(shape, lambda i: (0, 0))  # resident

    out = pl.pallas_call(
        functools.partial(sde_loss_kernel, xt_in_bf16=xt_in_bf16),
        out_shape=jax.ShapeDtypeStruct((n_pad, 1), jnp.float32),
        grid=grid,
        in_specs=[
            row_spec((tile_n, d)),                  # x0 (bf16, streamed)
            row_spec((tile_n, d)),                  # eps (bf16, streamed)
            row_spec((tile_n, coeffs.shape[1])),    # packed per-row coeffs
            const_spec((d, hdim)),                  # W1 (bf16, VMEM-resident)
            const_spec((1, hdim)),                  # b1
            const_spec((1, hdim)),                  # Wt (time conditioning)
            const_spec((hdim, d)),                  # W2 (bf16, VMEM-resident)
            const_spec((1, d)),                     # b2
        ],
        out_specs=row_spec((tile_n, 1)),
        compiler_params=pltpu.CompilerParams(
            dimension_semantics=("parallel",),      # shards row tiles on v7x
        ),
    )(x0_flat, eps, coeffs, w1, b1, wt, w2, b2)
    return out[:n, 0]


# ------------------------------ pure-JAX reference ----------------------------
def reference_loss(x0_bf, t, eps_bf, steps, wvar, w1_bf, b1, wt, w2_bf, b2):
    x0 = x0_bf.astype(jnp.float32)
    eps = eps_bf.astype(jnp.float32)
    steps1 = steps[0]
    wvar1 = wvar[0]
    beta_steps = BETA_MIN + steps1 * (BETA_MAX - BETA_MIN)
    integrand = beta_steps * wvar1

    def indef(tv):  # tv: (K,)
        ind = (tv[:, None] - steps1[None, :] > 0.0).astype(jnp.float32)
        return (ind * integrand[None, :]).sum(-1) * DT_STEP

    I_t = indef(t[:, 0])
    I_0 = indef(jnp.array([T0], jnp.float32))[0]
    delta = (I_t - I_0)[:, None]
    mean_coeff = jnp.exp(-0.5 * delta)
    var = 1.0 - jnp.exp(-delta)
    mean = x0 * mean_coeff
    x_t = mean + eps * jnp.sqrt(var)
    h = jnp.tanh(
        jnp.dot(x_t.astype(jnp.bfloat16), w1_bf,
                preferred_element_type=jnp.float32) + t * wt + b1)
    fake = jnp.dot(h.astype(jnp.bfloat16), w2_bf,
                   preferred_element_type=jnp.float32) + b2
    true = -(x_t - mean) / jnp.maximum(var, 1e-5)
    return var[:, 0] * jnp.sum((fake - true) ** 2, axis=1)


# ----------------------------------- main -------------------------------------
if __name__ == "__main__":
    key = jax.random.PRNGKey(0)
    kx, ku, keps, kw1, kwt, kw2 = jax.random.split(key, 6)

    # input image batch (NCHW), flattened to (B, D)
    x_t0 = jax.random.normal(kx, (BATCH, C, Himg, Wimg), dtype=jnp.float32)
    x0_flat = x_t0.reshape(BATCH, D)
    # x_t0.repeat_interleave(partitions, dim=0)
    x0_rep = jnp.repeat(x0_flat, PARTITIONS, axis=0)              # (N, D)

    # t sampling: u ~ U(0,1)*(t1-t0)/P, shifts = arange(P)*(t1-t0)/P + t0
    u = jax.random.uniform(ku, (BATCH, PARTITIONS), dtype=jnp.float32)
    u = u * ((T1 - T0) / PARTITIONS)
    shifts = (jnp.arange(PARTITIONS, dtype=jnp.float32)[None, :]
              * ((T1 - T0) / PARTITIONS) + T0)
    t = (u + shifts).reshape(-1, 1)                               # (N, 1)

    # gaussian noise used by analytical_sample (randn_like(mean))
    eps = jax.random.normal(keps, (N, D), dtype=jnp.float32)

    # steps buffer and synthetic white_noise_var (stack of var_sqrt^2, clamped)
    steps = jnp.linspace(T0, T1, N_STEPS, dtype=jnp.float32)[None, :]   # (1, S)
    wvar = jnp.clip(0.5 + 0.4 * jnp.sin(3.0 * steps), 1e-5, None)       # (1, S)
    # TODO(synk): the real white_noise module (inducing-point GP with Cholesky
    # precompute) has no clean Pallas equivalent; its per-step variance is
    # synthesized here.

    # deterministic synthetic denoiser parameters (2-layer MLP, tanh)
    w1 = jax.random.normal(kw1, (D, HIDDEN), dtype=jnp.float32) * (1.0 / jnp.sqrt(D))
    b1 = jnp.zeros((1, HIDDEN), dtype=jnp.float32)
    wt = jax.random.normal(kwt, (1, HIDDEN), dtype=jnp.float32)
    w2 = jax.random.normal(kw2, (HIDDEN, D), dtype=jnp.float32) * (1.0 / jnp.sqrt(HIDDEN))
    b2 = jnp.zeros((1, D), dtype=jnp.float32)

    # bf16 copies for the streamed inputs and MXU weights (epilogue stays f32)
    x0_bf = x0_rep.astype(jnp.bfloat16)
    eps_bf = eps.astype(jnp.bfloat16)
    w1_bf = w1.astype(jnp.bfloat16)
    w2_bf = w2.astype(jnp.bfloat16)

    # jit the wrapper so pad / casts / coefficient precompute fuse with the
    # pallas_call instead of dispatching as separate tiny XLA kernels.
    loss_fn = jax.jit(score_matching_loss,
                      static_argnames=("tile_n", "xt_in_bf16"))
    loss = loss_fn(x0_bf, t, eps_bf, steps, wvar, w1_bf, b1, wt, w2_bf, b2)
    loss = jax.block_until_ready(loss)

    ref = reference_loss(x0_bf, t, eps_bf, steps, wvar,
                         w1_bf, b1, wt, w2_bf, b2)
    ref = jax.block_until_ready(ref)

    assert loss.shape == (N,)
    # Tolerance allows for the bf16 fused-FMA x_t path (v6e/v7x) which rounds
    # intermediates to bf16 instead of casting a single f32 x_t; typical
    # deviation is ~0.1-0.3%.
    assert jnp.allclose(loss, ref, rtol=1e-2, atol=1e-2), (loss, ref)
    print("KERNEL_OK")
</pallas_src>

<mosaic_0001>
module attributes {stable_mosaic.version = 11 : i64} {
  func.func @sde_loss_kernel(%arg0: i32, %arg1: memref<128x1024xbf16, #tpu.memory_space<vmem>>, %arg2: memref<128x1024xbf16, #tpu.memory_space<vmem>>, %arg3: memref<128x5xf32, #tpu.memory_space<vmem>>, %arg4: memref<1024x128xbf16, #tpu.memory_space<vmem>>, %arg5: memref<1x128xf32, #tpu.memory_space<vmem>>, %arg6: memref<1x128xf32, #tpu.memory_space<vmem>>, %arg7: memref<128x1024xbf16, #tpu.memory_space<vmem>>, %arg8: memref<1x1024xf32, #tpu.memory_space<vmem>>, %arg9: memref<128x1xf32, #tpu.memory_space<vmem>>) attributes {dimension_semantics = [#tpu.dimension_semantics<parallel>], iteration_bounds = array<i64: 2>, scalar_prefetch = 0 : i64, scratch_operands = 0 : i64, tpu.core_type = #tpu.core_type<tc>, window_params = [{transform_indices = @transform_0, window_bounds = array<i64: 128, 1024>}, {transform_indices = @transform_1, window_bounds = array<i64: 128, 1024>}, {transform_indices = @transform_2, window_bounds = array<i64: 128, 5>}, {pipeline_mode = #tpu.pipeline_mode<synchronous>, transform_indices = @transform_3, window_bounds = array<i64: 1024, 128>}, {pipeline_mode = #tpu.pipeline_mode<synchronous>, transform_indices = @transform_4, window_bounds = array<i64: 1, 128>}, {pipeline_mode = #tpu.pipeline_mode<synchronous>, transform_indices = @transform_5, window_bounds = array<i64: 1, 128>}, {pipeline_mode = #tpu.pipeline_mode<synchronous>, transform_indices = @transform_6, window_bounds = array<i64: 128, 1024>}, {pipeline_mode = #tpu.pipeline_mode<synchronous>, transform_indices = @transform_7, window_bounds = array<i64: 1, 1024>}, {transform_indices = @transform_8, window_bounds = array<i64: 128, 1>}]} {
    %c0 = arith.constant 0 : index
    %c0_0 = arith.constant 0 : index
    %0 = vector.load %arg3[%c0, %c0_0] : memref<128x5xf32, #tpu.memory_space<vmem>>, vector<128x5xf32>
    %1 = vector.extract_strided_slice %0 {offsets = [0, 0], sizes = [128, 1], strides = [1, 1]} : vector<128x5xf32> to vector<128x1xf32>
    %2 = vector.extract_strided_slice %0 {offsets = [0, 1], sizes = [128, 1], strides = [1, 1]} : vector<128x5xf32> to vector<128x1xf32>
    %3 = vector.extract_strided_slice %0 {offsets = [0, 2], sizes = [128, 1], strides = [1, 1]} : vector<128x5xf32> to vector<128x1xf32>
    %4 = vector.extract_strided_slice %0 {offsets = [0, 3], sizes = [128, 1], strides = [1, 1]} : vector<128x5xf32> to vector<128x1xf32>
    %5 = vector.extract_strided_slice %0 {offsets = [0, 4], sizes = [128, 1], strides = [1, 1]} : vector<128x5xf32> to vector<128x1xf32>
    %c0_1 = arith.constant 0 : index
    %c0_2 = arith.constant 0 : index
    %6 = vector.load %arg1[%c0_1, %c0_2] : memref<128x1024xbf16, #tpu.memory_space<vmem>>, vector<128x1024xbf16>
    %7 = arith.extf %6 : vector<128x1024xbf16> to vector<128x1024xf32>
    %8 = vector.broadcast %2 : vector<128x1xf32> to vector<128x1024xf32>
    %9 = arith.mulf %7, %8 : vector<128x1024xf32>
    %c0_3 = arith.constant 0 : index
    %c0_4 = arith.constant 0 : index
    %10 = vector.load %arg2[%c0_3, %c0_4] : memref<128x1024xbf16, #tpu.memory_space<vmem>>, vector<128x1024xbf16>
    %11 = arith.extf %10 : vector<128x1024xbf16> to vector<128x1024xf32>
    %12 = vector.broadcast %3 : vector<128x1xf32> to vector<128x1024xf32>
    %13 = arith.mulf %11, %12 : vector<128x1024xf32>
    %14 = arith.addf %9, %13 : vector<128x1024xf32>
    %15 = arith.truncf %14 : vector<128x1024xf32> to vector<128x1024xbf16>
    %c0_5 = arith.constant 0 : index
    %c0_6 = arith.constant 0 : index
    %16 = vector.load %arg4[%c0_5, %c0_6] : memref<1024x128xbf16, #tpu.memory_space<vmem>>, vector<1024x128xbf16>
    %cst = arith.constant dense<0.000000e+00> : vector<128x128xf32>
    %17 = tpu.matmul %15, %16, %cst {dimension_numbers = #tpu.dot_dimension_numbers<[1], [0], [0], [1], [0, 0, 1, 1], [], []>} : vector<128x1024xbf16>, vector<1024x128xbf16>, vector<128x128xf32> -> vector<128x128xf32>
    %c0_7 = arith.constant 0 : index
    %c0_8 = arith.constant 0 : index
    %18 = vector.load %arg6[%c0_7, %c0_8] : memref<1x128xf32, #tpu.memory_space<vmem>>, vector<1x128xf32>
    %19 = vector.broadcast %1 : vector<128x1xf32> to vector<128x128xf32>
    %20 = vector.broadcast %18 : vector<1x128xf32> to vector<128x128xf32>
    %21 = arith.mulf %19, %20 : vector<128x128xf32>
    %22 = arith.addf %17, %21 : vector<128x128xf32>
    %c0_9 = arith.constant 0 : index
    %c0_10 = arith.constant 0 : index
    %23 = vector.load %arg5[%c0_9, %c0_10] : memref<1x128xf32, #tpu.memory_space<vmem>>, vector<1x128xf32>
    %24 = vector.broadcast %23 : vector<1x128xf32> to vector<128x128xf32>
    %25 = arith.addf %22, %24 : vector<128x128xf32>
    %26 = math.tanh %25 : vector<128x128xf32>
    %27 = arith.truncf %26 : vector<128x128xf32> to vector<128x128xbf16>
    %c0_11 = arith.constant 0 : index
    %c0_12 = arith.constant 0 : index
    %28 = vector.load %arg7[%c0_11, %c0_12] : memref<128x1024xbf16, #tpu.memory_space<vmem>>, vector<128x1024xbf16>
    %cst_13 = arith.constant dense<0.000000e+00> : vector<128x1024xf32>
    %29 = tpu.matmul %27, %28, %cst_13 {dimension_numbers = #tpu.dot_dimension_numbers<[1], [0], [0], [1], [0, 0, 1, 1], [], []>} : vector<128x128xbf16>, vector<128x1024xbf16>, vector<128x1024xf32> -> vector<128x1024xf32>
    %c0_14 = arith.constant 0 : index
    %c0_15 = arith.constant 0 : index
    %30 = vector.load %arg8[%c0_14, %c0_15] : memref<1x1024xf32, #tpu.memory_space<vmem>>, vector<1x1024xf32>
    %31 = vector.broadcast %30 : vector<1x1024xf32> to vector<128x1024xf32>
    %32 = arith.addf %29, %31 : vector<128x1024xf32>
    %c0_16 = arith.constant 0 : index
    %c0_17 = arith.constant 0 : index
    %33 = vector.load %arg2[%c0_16, %c0_17] : memref<128x1024xbf16, #tpu.memory_space<vmem>>, vector<128x1024xbf16>
    %34 = arith.extf %33 : vector<128x1024xbf16> to vector<128x1024xf32>
    %35 = vector.broadcast %4 : vector<128x1xf32> to vector<128x1024xf32>
    %36 = arith.mulf %34, %35 : vector<128x1024xf32>
    %37 = arith.addf %32, %36 : vector<128x1024xf32>
    %38 = arith.mulf %37, %37 : vector<128x1024xf32>
    %cst_18 = arith.constant dense<0.000000e+00> : vector<128xf32>
    %39 = vector.multi_reduction <add>, %38, %cst_18 [1] : vector<128x1024xf32> to vector<128xf32>
    %40 = vector.shape_cast %39 : vector<128xf32> to vector<128x1xf32>
    %41 = arith.mulf %5, %40 : vector<128x1xf32>
    %c0_19 = arith.constant 0 : index
    %c0_20 = arith.constant 0 : index
    %42 = vector.load %arg9[%c0_19, %c0_20] : memref<128x1xf32, #tpu.memory_space<vmem>>, vector<128x1xf32>
    tpu.vector_store %arg9[%c0_19, %c0_20], %41 {strides = array<i32>} : memref<128x1xf32, #tpu.memory_space<vmem>>, vector<128x1xf32>,
    return
  }
  func.func @transform_0(%arg0: i32) -> (i32, i32) {
    %c0_i32 = arith.constant 0 : i32
    %c0_i32_0 = arith.constant 0 : i32
    return %arg0, %c0_i32 : i32, i32
  }
  func.func @transform_1(%arg0: i32) -> (i32, i32) {
    %c0_i32 = arith.constant 0 : i32
    %c0_i32_0 = arith.constant 0 : i32
    return %arg0, %c0_i32 : i32, i32
  }
  func.func @transform_2(%arg0: i32) -> (i32, i32) {
    %c0_i32 = arith.constant 0 : i32
    %c0_i32_0 = arith.constant 0 : i32
    return %arg0, %c0_i32 : i32, i32
  }
  func.func @transform_3(%arg0: i32) -> (i32, i32) {
    %c0_i32 = arith.constant 0 : i32
    %c0_i32_0 = arith.constant 0 : i32
    %c0_i32_1 = arith.constant 0 : i32
    return %c0_i32, %c0_i32_0 : i32, i32
  }
  func.func @transform_4(%arg0: i32) -> (i32, i32) {
    %c0_i32 = arith.constant 0 : i32
    %c0_i32_0 = arith.constant 0 : i32
    %c0_i32_1 = arith.constant 0 : i32
    return %c0_i32, %c0_i32_0 : i32, i32
  }
  func.func @transform_5(%arg0: i32) -> (i32, i32) {
    %c0_i32 = arith.constant 0 : i32
    %c0_i32_0 = arith.constant 0 : i32
    %c0_i32_1 = arith.constant 0 : i32
    return %c0_i32, %c0_i32_0 : i32, i32
  }
  func.func @transform_6(%arg0: i32) -> (i32, i32) {
    %c0_i32 = arith.constant 0 : i32
    %c0_i32_0 = arith.constant 0 : i32
    %c0_i32_1 = arith.constant 0 : i32
    return %c0_i32, %c0_i32_0 : i32, i32
  }
  func.func @transform_7(%arg0: i32) -> (i32, i32) {
    %c0_i32 = arith.constant 0 : i32
    %c0_i32_0 = arith.constant 0 : i32
    %c0_i32_1 = arith.constant 0 : i32
    return %c0_i32, %c0_i32_0 : i32, i32
  }
  func.func @transform_8(%arg0: i32) -> (i32, i32) {
    %c0_i32 = arith.constant 0 : i32
    %c0_i32_0 = arith.constant 0 : i32
    return %arg0, %c0_i32 : i32, i32
  }
}

</mosaic_0001>

<llo_original>
// kernel: score_matching_loss.1
$region0: #{score_matching_loss.1}
  #allocation0 [shape = 'u32[]', space=smem, size = 0x4, offset = 0x4, fixed_abs, tag = 'smem constant byte address 0x4 - core index']
  #allocation1 [shape = 'u32[72,128]{1,0:T(1,128)}', space=vmem, size = 0x9000, scoped, tag = 'internal scratch']
  %s0 = inlined_call_operand.hbm [shape: bf16[256,1024], index: 0, kind: input, shape index: {}]
  %s1 = inlined_call_operand.hbm [shape: bf16[256,1024], index: 1, kind: input, shape index: {}]
  %s2 = inlined_call_operand.vmem [shape: f32[256,5], index: 2, kind: input, shape index: {}]
  %s3 = inlined_call_operand.hbm [shape: bf16[1024,128], index: 3, kind: input, shape index: {}]
  %s4 = inlined_call_operand.vmem [shape: f32[1,128], index: 4, kind: input, shape index: {}]
  %s5 = inlined_call_operand.vmem [shape: f32[1,128], index: 5, kind: input, shape index: {}]
  %s6 = inlined_call_operand.hbm [shape: bf16[128,1024], index: 6, kind: input, shape index: {}]
  %s7 = inlined_call_operand.vmem [shape: f32[1,1024], index: 7, kind: input, shape index: {}]
  %s8 = inlined_call_operand.vmem [shape: f32[256,1], index: 8, kind: output, shape index: {}]
  %s9 = sld [smem:[#allocation0]]
  $region81: #{score_matching_loss.1} parent=0
    _
  %s11 = ssub.s32 1, %s9
  %s12 = scalar_select 0, %s11, %s9
  $region1: #{score_matching_loss.1} parent=0
    #allocation2 [shape = 'u8[524288]{0}', space=vmem, size = 0x80000, scoped, tag = 'input window, operand 0']
    #allocation3 [shape = 's32[2]{0}', space=sflag, size = 0x8, scoped, tag = 'scoped memory for score_matching_loss.1']
    #allocation4 [shape = 'u8[524288]{0}', space=vmem, size = 0x80000, scoped, tag = 'input window, operand 1']
    #allocation5 [shape = 's32[2]{0}', space=sflag, size = 0x8, scoped, tag = 'scoped memory for score_matching_loss.1']
    #allocation6 [shape = 'u8[262144]{0}', space=vmem, size = 0x40000, scoped, tag = 'input window, operand 3, single buffered']
    #allocation7 [shape = 'u8[262144]{0}', space=vmem, size = 0x40000, scoped, tag = 'input window, operand 6, single buffered']
    #allocation8 [shape = 's32[1]{0}', space=sflag, size = 0x4, scoped, tag = 'scoped memory for score_matching_loss.1']
    %13 = vsyncpa [#allocation3], 0
    %s14 = scalar_lea.sflag [#allocation3], 1
    %15 = vsyncpa %s14, 0
    %16 = vsyncpa [#allocation5], 0
    %s17 = scalar_lea.sflag [#allocation5], 1
    %18 = vsyncpa %s17, 0
    %19 = vsyncpa [#allocation8], 0
    loop: start=0, step=1, limit=4
    $region2: #{score_matching_loss.1} parent=1 // loop_pre_header
      _
    $region3: #{score_matching_loss.1} parent=1 // loop_header
      %s21 = sphi 0, %s25
      %p22 = scmp.ge.s32.totalorder %s21, 4
      %s31 = sphi 0, %s33
      %s34 = sphi 0, %s31
      %s35 = sphi 0, %s34
      %s51 = sphi 0, %s35
      %s57 = sphi 0, %s59
      %s60 = sphi 0, %s57
      %s61 = sphi 0, %s60
      %s77 = sphi 0, %s61
      %s83 = sphi 0, %s85
      %s86 = sphi 0, %s83
      %s87 = sphi 0, %s86
      %s103 = sphi 0, %s87
      %s107 = sphi 0, %s107
      %s109 = sphi 0, %s107
      %s110 = sphi 0, %s109
      %s124 = sphi 0, %s110
      %s128 = sphi 0, %s128
      %s130 = sphi 0, %s128
      %s131 = sphi 0, %s130
      %s145 = sphi 0, %s131
      %s149 = sphi 0, %s149
      %s151 = sphi 0, %s149
      %s152 = sphi 0, %s151
      %s166 = sphi 0, %s152
      %s170 = sphi 0, %s170
      %s172 = sphi 0, %s170
      %s173 = sphi 0, %s172
      %s187 = sphi 0, %s173
      %s191 = sphi 0, %s191
      %s193 = sphi 0, %s191
      %s194 = sphi 0, %s193
      %s208 = sphi 0, %s194
      %s214 = sphi 0, %s216
      %s217 = sphi 0, %s214
      %s218 = sphi 0, %s217
      %s234 = sphi 0, %s218
    $region4: #{score_matching_loss.1} parent=1 // loop_header_branch
      %24 = sbr.rel (%p22) target = $region8
    $region5: #{score_matching_loss.1} parent=1 // loop_body
      %s26 = ssub.s32 %s21, 1
      %s27 = ssub.s32 %s21, 2
      %s28 = sadd.s32 %s21, 1
      %s29 = ssub.s32 %s21, %s28
      %p30 = scmp.eq.s32.totalorder %s29, 0
      %s32 = sadd.s32 %s31, 1
      %s33 = scalar_select %p30, %s31, %s32
      %p36 = pneg %p30
      %p37 = scmp.eq.s32.totalorder %s21, 1
      %p38 = por %p36, %p37
      %p39 = scmp.ne.s32.totalorder %s31, %s34
      %p40 = scmp.eq.s32.totalorder %s21, 0
      %p41 = por %p39, %p40
      %p42 = scmp.ne.s32.totalorder %s31, %s34
      %p43 = scmp.eq.s32.totalorder %s26, 1
      %p44 = por %p42, %p43
      %p45 = scmp.ne.s32.totalorder %s34, %s35
      %p46 = scmp.eq.s32.totalorder %s26, 0
      %p47 = por %p45, %p46
      %p48 = scmp.ne.s32.totalorder %s34, %s35
      %p49 = scmp.eq.s32.totalorder %s27, 1
      %p50 = por %p48, %p49
      %p52 = scmp.ne.s32.totalorder %s35, %s51
      %p53 = scmp.eq.s32.totalorder %s27, 0
      %p54 = por %p52, %p53
      %s55 = ssub.s32 %s21, %s28
      %p56 = scmp.eq.s32.totalorder %s55, 0
      %s58 = sadd.s32 %s57, 1
      %s59 = scalar_select %p56, %s57, %s58
      %p62 = pneg %p56
      %p63 = scmp.eq.s32.totalorder %s21, 1
      %p64 = por %p62, %p63
      %p65 = scmp.ne.s32.totalorder %s57, %s60
      %p66 = scmp.eq.s32.totalorder %s21, 0
      %p67 = por %p65, %p66
      %p68 = scmp.ne.s32.totalorder %s57, %s60
      %p69 = scmp.eq.s32.totalorder %s26, 1
      %p70 = por %p68, %p69
      %p71 = scmp.ne.s32.totalorder %s60, %s61
      %p72 = scmp.eq.s32.totalorder %s26, 0
      %p73 = por %p71, %p72
      %p74 = scmp.ne.s32.totalorder %s60, %s61
      %p75 = scmp.eq.s32.totalorder %s27, 1
      %p76 = por %p74, %p75
      %p78 = scmp.ne.s32.totalorder %s61, %s77
      %p79 = scmp.eq.s32.totalorder %s27, 0
      %p80 = por %p78, %p79
      %s81 = ssub.s32 %s21, %s28
      %p82 = scmp.eq.s32.totalorder %s81, 0
      %s84 = sadd.s32 %s83, 1
      %s85 = scalar_select %p82, %s83, %s84
      %p88 = pneg %p82
      %p89 = scmp.eq.s32.totalorder %s21, 1
      %p90 = por %p88, %p89
      %p91 = scmp.ne.s32.totalorder %s83, %s86
      %p92 = scmp.eq.s32.totalorder %s21, 0
      %p93 = por %p91, %p92
      %p94 = scmp.ne.s32.totalorder %s83, %s86
      %p95 = scmp.eq.s32.totalorder %s26, 1
      %p96 = por %p94, %p95
      %p97 = scmp.ne.s32.totalorder %s86, %s87
      %p98 = scmp.eq.s32.totalorder %s26, 0
      %p99 = por %p97, %p98
      %p100 = scmp.ne.s32.totalorder %s86, %s87
      %p101 = scmp.eq.s32.totalorder %s27, 1
      %p102 = por %p100, %p101
      %p104 = scmp.ne.s32.totalorder %s87, %s103
      %p105 = scmp.eq.s32.totalorder %s27, 0
      %p106 = por %p104, %p105
      %s108 = sadd.s32 %s107, 1
      %p111 = scmp.eq.s32.totalorder %s21, 1
      %p112 = scmp.ne.s32.totalorder %s107, %s109
      %p113 = scmp.eq.s32.totalorder %s21, 0
      %p114 = por %p112, %p113
      %p115 = scmp.ne.s32.totalorder %s107, %s109
      %p116 = scmp.eq.s32.totalorder %s26, 1
      %p117 = por %p115, %p116
      %p118 = scmp.ne.s32.totalorder %s109, %s110
      %p119 = scmp.eq.s32.totalorder %s26, 0
      %p120 = por %p118, %p119
      %p121 = scmp.ne.s32.totalorder %s109, %s110
      %p122 = scmp.eq.s32.totalorder %s27, 1
      %p123 = por %p121, %p122
      %p125 = scmp.ne.s32.totalorder %s110, %s124
      %p126 = scmp.eq.s32.totalorder %s27, 0
      %p127 = por %p125, %p126
      %s129 = sadd.s32 %s128, 1
      %p132 = scmp.eq.s32.totalorder %s21, 1
      %p133 = scmp.ne.s32.totalorder %s128, %s130
      %p134 = scmp.eq.s32.totalorder %s21, 0
      %p135 = por %p133, %p134
      %p136 = scmp.ne.s32.totalorder %s128, %s130
      %p137 = scmp.eq.s32.totalorder %s26, 1
      %p138 = por %p136, %p137
      %p139 = scmp.ne.s32.totalorder %s130, %s131
      %p140 = scmp.eq.s32.totalorder %s26, 0
      %p141 = por %p139, %p140
      %p142 = scmp.ne.s32.totalorder %s130, %s131
      %p143 = scmp.eq.s32.totalorder %s27, 1
      %p144 = por %p142, %p143
      %p146 = scmp.ne.s32.totalorder %s131, %s145
      %p147 = scmp.eq.s32.totalorder %s27, 0
      %p148 = por %p146, %p147
      %s150 = sadd.s32 %s149, 1
      %p153 = scmp.eq.s32.totalorder %s21, 1
      %p154 = scmp.ne.s32.totalorder %s149, %s151
      %p155 = scmp.eq.s32.totalorder %s21, 0
      %p156 = por %p154, %p155
      %p157 = scmp.ne.s32.totalorder %s149, %s151
      %p158 = scmp.eq.s32.totalorder %s26, 1
      %p159 = por %p157, %p158
      %p160 = scmp.ne.s32.totalorder %s151, %s152
      %p161 = scmp.eq.s32.totalorder %s26, 0
      %p162 = por %p160, %p161
      %p163 = scmp.ne.s32.totalorder %s151, %s152
      %p164 = scmp.eq.s32.totalorder %s27, 1
      %p165 = por %p163, %p164
      %p167 = scmp.ne.s32.totalorder %s152, %s166
      %p168 = scmp.eq.s32.totalorder %s27, 0
      %p169 = por %p167, %p168
      %s171 = sadd.s32 %s170, 1
      %p174 = scmp.eq.s32.totalorder %s21, 1
      %p175 = scmp.ne.s32.totalorder %s170, %s172
      %p176 = scmp.eq.s32.totalorder %s21, 0
      %p177 = por %p175, %p176
      %p178 = scmp.ne.s32.totalorder %s170, %s172
      %p179 = scmp.eq.s32.totalorder %s26, 1
      %p180 = por %p178, %p179
      %p181 = scmp.ne.s32.totalorder %s172, %s173
      %p182 = scmp.eq.s32.totalorder %s26, 0
      %p183 = por %p181, %p182
      %p184 = scmp.ne.s32.totalorder %s172, %s173
      %p185 = scmp.eq.s32.totalorder %s27, 1
      %p186 = por %p184, %p185
      %p188 = scmp.ne.s32.totalorder %s173, %s187
      %p189 = scmp.eq.s32.totalorder %s27, 0
      %p190 = por %p188, %p189
      %s192 = sadd.s32 %s191, 1
      %p195 = scmp.eq.s32.totalorder %s21, 1
      %p196 = scmp.ne.s32.totalorder %s191, %s193
      %p197 = scmp.eq.s32.totalorder %s21, 0
      %p198 = por %p196, %p197
      %p199 = scmp.ne.s32.totalorder %s191, %s193
      %p200 = scmp.eq.s32.totalorder %s26, 1
      %p201 = por %p199, %p200
      %p202 = scmp.ne.s32.totalorder %s193, %s194
      %p203 = scmp.eq.s32.totalorder %s26, 0
      %p204 = por %p202, %p203
      %p205 = scmp.ne.s32.totalorder %s193, %s194
      %p206 = scmp.eq.s32.totalorder %s27, 1
      %p207 = por %p205, %p206
      %p209 = scmp.ne.s32.totalorder %s194, %s208
      %p210 = scmp.eq.s32.totalorder %s27, 0
      %p211 = por %p209, %p210
      %s212 = ssub.s32 %s21, %s28
      %p213 = scmp.eq.s32.totalorder %s212, 0
      %s215 = sadd.s32 %s214, 1
      %s216 = scalar_select %p213, %s214, %s215
      %p219 = pneg %p213
      %p220 = scmp.eq.s32.totalorder %s21, 1
      %p221 = por %p219, %p220
      %p222 = scmp.ne.s32.totalorder %s214, %s217
      %p223 = scmp.eq.s32.totalorder %s21, 0
      %p224 = por %p222, %p223
      %p225 = scmp.ne.s32.totalorder %s214, %s217
      %p226 = scmp.eq.s32.totalorder %s26, 1
      %p227 = por %p225, %p226
      %p228 = scmp.ne.s32.totalorder %s217, %s218
      %p229 = scmp.eq.s32.totalorder %s26, 0
      %p230 = por %p228, %p229
      %p231 = scmp.ne.s32.totalorder %s217, %s218
      %p232 = scmp.eq.s32.totalorder %s27, 1
      %p233 = por %p231, %p232
      %p235 = scmp.ne.s32.totalorder %s218, %s234
      %p236 = scmp.eq.s32.totalorder %s27, 0
      %p237 = por %p235, %p236
      %p238 = scmp.le.s32.totalorder 1, %s21
      %p239 = scmp.lt.s32.totalorder %s21, 3
      %p240 = pnand %p238, %p239
      %p241 = pneg %p240
      // Predicated region
      $region9: #{score_matching_loss.1} parent=5 // pred_check
        _
      $region10: #{score_matching_loss.1} parent=5 // pred_check_branch
        %243 = sbr.rel (%p240) target = $region12
      $region11: #{score_matching_loss.1} parent=5 // pred_region
        %s244 = ssub.s32 %s21, 1
        // Predicated region
        $region13: #{score_matching_loss.1} parent=11 // pred_check
          %p245 = pneg %p120
        $region14: #{score_matching_loss.1} parent=11 // pred_check_branch
          %247 = sbr.rel (%p245) target = $region16
        $region15: #{score_matching_loss.1} parent=11 // pred_region
          %249 = vsyncadd [#allocation5], 0
          %s250 = sshll.u32 %s3, 4
          %s251 = int_to_ptr.hbm [resolvable:$true] %s250
          %s252 = sshll.u32 [#allocation6], 4
          %s253 = int_to_ptr.vmem [resolvable:$true] %s252
          %258 = dma.hbm_to_vmem [thread:$0]  %s251, 8192, %s253, [#allocation5], 64, 64, 4
        $region16: #{score_matching_loss.1} parent=11 // pred_fallthru
          _
        // Predicated region
        $region17: #{score_matching_loss.1} parent=11 // pred_check
          %p259 = pneg %p141
        $region18: #{score_matching_loss.1} parent=11 // pred_check_branch
          %261 = sbr.rel (%p259) target = $region20
        $region19: #{score_matching_loss.1} parent=11 // pred_region
          _
        $region20: #{score_matching_loss.1} parent=11 // pred_fallthru
          _
        // Predicated region
        $region21: #{score_matching_loss.1} parent=11 // pred_check
          %p262 = pneg %p162
        $region22: #{score_matching_loss.1} parent=11 // pred_check_branch
          %264 = sbr.rel (%p262) target = $region24
        $region23: #{score_matching_loss.1} parent=11 // pred_region
          _
        $region24: #{score_matching_loss.1} parent=11 // pred_fallthru
          _
        // Predicated region
        $region25: #{score_matching_loss.1} parent=11 // pred_check
          %p265 = pneg %p183
        $region26: #{score_matching_loss.1} parent=11 // pred_check_branch
          %267 = sbr.rel (%p265) target = $region28
        $region27: #{score_matching_loss.1} parent=11 // pred_region
          %269 = vsyncadd [#allocation8], 0
          %s270 = sshll.u32 %s6, 4
          %s271 = int_to_ptr.hbm [resolvable:$true] %s270
          %s272 = sshll.u32 [#allocation7], 4
          %s273 = int_to_ptr.vmem [resolvable:$true] %s272
          %278 = dma.hbm_to_vmem [thread:$0]  %s271, 8192, %s273, [#allocation8], 512, 512, 32
        $region28: #{score_matching_loss.1} parent=11 // pred_fallthru
          _
        // Predicated region
        $region29: #{score_matching_loss.1} parent=11 // pred_check
          %p279 = pneg %p204
        $region30: #{score_matching_loss.1} parent=11 // pred_check_branch
          %281 = sbr.rel (%p279) target = $region32
        $region31: #{score_matching_loss.1} parent=11 // pred_region
          _
        $region32: #{score_matching_loss.1} parent=11 // pred_fallthru
          _
      $region12: #{score_matching_loss.1} parent=5 // pred_fallthru
        _
      %p282 = scmp.lt.s32.totalorder %s21, 2
      // Predicated region
      $region33: #{score_matching_loss.1} parent=5 // pred_check
        %p283 = pneg %p282
      $region34: #{score_matching_loss.1} parent=5 // pred_check_branch
        %285 = sbr.rel (%p283) target = $region36
      $region35: #{score_matching_loss.1} parent=5 // pred_region
        // Predicated region
        $region37: #{score_matching_loss.1} parent=35 // pred_check
          %p286 = pneg %p41
        $region38: #{score_matching_loss.1} parent=35 // pred_check_branch
          %288 = sbr.rel (%p286) target = $region40
        $region39: #{score_matching_loss.1} parent=35 // pred_region
          %s289 = sand.u32 %s31, 1
          %s290 = scalar_lea.sflag [#allocation3], %s289
          %s291 = sand.u32 %s31, 1
          %s292 = smul.addr %s291, 512
          %s293 = scalar_lea.vmem [#allocation2], %s292
          %s294 = smul.u32 16, %s21
          %296 = vsyncadd %s290, 0
          %s297 = smul.addr %s294, 8
          %s298 = smul.addr %s297, 4
          %s299 = scalar_lea.hbm %s0, %s298
          %s300 = sshll.u32 %s299, 4
          %s301 = int_to_ptr.hbm [resolvable:$true] %s300
          %s302 = sshll.u32 %s293, 4
          %s303 = int_to_ptr.vmem [resolvable:$true] %s302
          %308 = dma.hbm_to_vmem [thread:$0]  %s301, 8192, %s303, %s290, 512, 512, 32
        $region40: #{score_matching_loss.1} parent=35 // pred_fallthru
          _
        // Predicated region
        $region41: #{score_matching_loss.1} parent=35 // pred_check
          %p309 = pneg %p67
        $region42: #{score_matching_loss.1} parent=35 // pred_check_branch
          %311 = sbr.rel (%p309) target = $region44
        $region43: #{score_matching_loss.1} parent=35 // pred_region
          %s312 = sand.u32 %s21, 1
          %s313 = scalar_lea.sflag [#allocation5], %s312
          %s314 = sand.u32 %s57, 1
          %s315 = smul.addr %s314, 512
          %s316 = scalar_lea.vmem [#allocation4], %s315
          %s317 = smul.u32 16, %s21
          %319 = vsyncadd %s313, 0
          %s320 = smul.addr %s317, 8
          %s321 = smul.addr %s320, 4
          %s322 = scalar_lea.hbm %s1, %s321
          %s323 = sshll.u32 %s322, 4
          %s324 = int_to_ptr.hbm [resolvable:$true] %s323
          %s325 = sshll.u32 %s316, 4
          %s326 = int_to_ptr.vmem [resolvable:$true] %s325
          %331 = dma.hbm_to_vmem [thread:$0]  %s324, 8192, %s326, %s313, 512, 512, 32
        $region44: #{score_matching_loss.1} parent=35 // pred_fallthru
          _
        // Predicated region
        $region45: #{score_matching_loss.1} parent=35 // pred_check
          %p332 = pneg %p93
        $region46: #{score_matching_loss.1} parent=35 // pred_check_branch
          %334 = sbr.rel (%p332) target = $region48
        $region47: #{score_matching_loss.1} parent=35 // pred_region
          %s335 = smul.u32 16, %s21
          %p336 = scmp.lt.s32.totalorder %s335, 31
          %s337 = scalar_select %p336, %s335, 31
          %s338 = smul.addr %s337, 8
          %s339 = scalar_lea.vmem %s2, %s338
          %s340 = smul.u32 16, %s21
        $region48: #{score_matching_loss.1} parent=35 // pred_fallthru
          _
      $region36: #{score_matching_loss.1} parent=5 // pred_fallthru
        _
      %p341 = scmp.le.s32.totalorder 1, %s21
      %p342 = scmp.lt.s32.totalorder %s21, 3
      %p343 = pnand %p341, %p342
      %p344 = pneg %p343
      // Predicated region
      $region49: #{score_matching_loss.1} parent=5 // pred_check
        _
      $region50: #{score_matching_loss.1} parent=5 // pred_check_branch
        %346 = sbr.rel (%p343) target = $region52
      $region51: #{score_matching_loss.1} parent=5 // pred_region
        %s347 = ssub.s32 %s21, 1
        %s348 = sand.u32 %s34, 1
        %s349 = scalar_lea.sflag [#allocation3], %s348
        %s350 = sand.u32 %s34, 1
        %s351 = smul.addr %s350, 512
        %s352 = scalar_lea.vmem [#allocation2], %s351
        // Predicated region
        $region53: #{score_matching_loss.1} parent=51 // pred_check
          %p353 = pneg %p47
        $region54: #{score_matching_loss.1} parent=51 // pred_check_branch
          %355 = sbr.rel (%p353) target = $region56
        $region55: #{score_matching_loss.1} parent=51 // pred_region
          %357 = dma.done %s349, 8192
        $region56: #{score_matching_loss.1} parent=51 // pred_fallthru
          _
        %s358 = sand.u32 %s26, 1
        %s359 = scalar_lea.sflag [#allocation5], %s358
        %s360 = sand.u32 %s60, 1
        %s361 = smul.addr %s360, 512
        %s362 = scalar_lea.vmem [#allocation4], %s361
        // Predicated region
        $region57: #{score_matching_loss.1} parent=51 // pred_check
          %p363 = pneg %p73
        $region58: #{score_matching_loss.1} parent=51 // pred_check_branch
          %365 = sbr.rel (%p363) target = $region60
        $region59: #{score_matching_loss.1} parent=51 // pred_region
          %367 = dma.done %s359, 8192
        $region60: #{score_matching_loss.1} parent=51 // pred_fallthru
          _
        // Predicated region
        $region61: #{score_matching_loss.1} parent=51 // pred_check
          %p368 = pneg %p120
        $region62: #{score_matching_loss.1} parent=51 // pred_check_branch
          %370 = sbr.rel (%p368) target = $region64
        $region63: #{score_matching_loss.1} parent=51 // pred_region
          %372 = dma.done [#allocation5], 8192
        $region64: #{score_matching_loss.1} parent=51 // pred_fallthru
          _
        // Predicated region
        $region65: #{score_matching_loss.1} parent=51 // pred_check
          %p373 = pneg %p183
        $region66: #{score_matching_loss.1} parent=51 // pred_check_branch
          %375 = sbr.rel (%p373) target = $region68
        $region67: #{score_matching_loss.1} parent=51 // pred_region
          %377 = dma.done [#allocation8], 8192
        $region68: #{score_matching_loss.1} parent=51 // pred_fallthru
          _
        %s378 = sand.u32 %s34, 1
        %s379 = scalar_lea.sflag [#allocation3], %s378
        %s380 = sand.u32 %s34, 1
        %s381 = smul.addr %s380, 512
        %s382 = scalar_lea.vmem [#allocation2], %s381
        %p383 = pneg %p47
        %p384 = pneg %p44
        %s385 = sand.u32 %s26, 1
        %s386 = scalar_lea.sflag [#allocation5], %s385
        %s387 = sand.u32 %s60, 1
        %s388 = smul.addr %s387, 512
        %s389 = scalar_lea.vmem [#allocation4], %s388
        %p390 = pneg %p73
        %p391 = pneg %p70
        %s392 = smul.u32 16, %s26
        %p393 = scmp.lt.s32.totalorder %s392, 31
        %s394 = scalar_select %p393, %s392, 31
        %s395 = smul.addr %s394, 8
        %s396 = scalar_lea.vmem %s2, %s395
        %p397 = pneg %p99
        %p398 = pneg %p96
        %p399 = pneg %p120
        %p400 = pneg %p117
        %p401 = pneg %p141
        %p402 = pneg %p138
        %p403 = pneg %p162
        %p404 = pneg %p159
        %p405 = pneg %p183
        %p406 = pneg %p180
        %p407 = pneg %p204
        %p408 = pneg %p201
        %p409 = pneg %p230
        %p410 = pneg %p227
        %s411 = smul.u32 16, %s26
        %p412 = scmp.lt.s32.totalorder %s411, 31
        %s413 = scalar_select %p412, %s411, 31
        %s414 = smul.addr %s413, 8
        %s415 = scalar_lea.vmem %s8, %s414
        %s416 = smul.u32 16, %s26
        %s417 = smul.u32 16, %s26
        %s418 = smul.u32 16, %s26
        %p419 = scmp.lt.s32.totalorder %s418, 31
        %s420 = scalar_select %p419, %s418, 31
        %s421 = smul.addr %s420, 8
        %s422 = scalar_lea.vmem %s2, %s421
        %s423 = smul.u32 16, %s26
        %s424 = smul.u32 16, %s26
        %p425 = scmp.lt.s32.totalorder %s424, 31
        %s426 = scalar_select %p425, %s424, 31
        %s427 = smul.addr %s426, 8
        %s428 = scalar_lea.vmem %s8, %s427
        %s429 = smul.u32 16, %s26
        %v430 = vld [vmem:[%s422] sm:$0xff]
        %v431 = vld [vmem:[%s422 + $0x8] sm:$0xff]
        %v432 = vld [vmem:[%s422 + $0x10] sm:$0xff]
        %v433 = vld [vmem:[%s422 + $0x18] sm:$0xff]
        %v434 = vld [vmem:[%s422 + $0x20] sm:$0xff]
        %v435 = vld [vmem:[%s422 + $0x28] sm:$0xff]
        %v436 = vld [vmem:[%s422 + $0x30] sm:$0xff]
        %v437 = vld [vmem:[%s422 + $0x38] sm:$0xff]
        %v438 = vld [vmem:[%s422 + $0x40] sm:$0xff]
        %v439 = vld [vmem:[%s422 + $0x48] sm:$0xff]
        %v440 = vld [vmem:[%s422 + $0x50] sm:$0xff]
        %v441 = vld [vmem:[%s422 + $0x58] sm:$0xff]
        %v442 = vld [vmem:[%s422 + $0x60] sm:$0xff]
        %v443 = vld [vmem:[%s422 + $0x68] sm:$0xff]
        %v444 = vld [vmem:[%s422 + $0x70] sm:$0xff]
        %v445 = vld [vmem:[%s422 + $0x78] sm:$0xff]
        %v446 = vld [vmem:[%s352] sm:$0xff]
        %v447 = vld [vmem:[%s352 + $0x8] sm:$0xff]
        %v448 = vld [vmem:[%s352 + $0x10] sm:$0xff]
        %v449 = vld [vmem:[%s352 + $0x18] sm:$0xff]
        %v450 = vld [vmem:[%s352 + $0x20] sm:$0xff]
        %v451 = vld [vmem:[%s352 + $0x28] sm:$0xff]
        %v452 = vld [vmem:[%s352 + $0x30] sm:$0xff]
        %v453 = vld [vmem:[%s352 + $0x38] sm:$0xff]
        %v454 = vld [vmem:[%s352 + $0x40] sm:$0xff]
        %v455 = vld [vmem:[%s352 + $0x48] sm:$0xff]
        %v456 = vld [vmem:[%s352 + $0x50] sm:$0xff]
        %v457 = vld [vmem:[%s352 + $0x58] sm:$0xff]
        %v458 = vld [vmem:[%s352 + $0x60] sm:$0xff]
        %v459 = vld [vmem:[%s352 + $0x68] sm:$0xff]
        %v460 = vld [vmem:[%s352 + $0x70] sm:$0xff]
        %v461 = vld [vmem:[%s352 + $0x78] sm:$0xff]
        %v462 = vld [vmem:[%s352 + $0x80] sm:$0xff]
        %v463 = vld [vmem:[%s352 + $0x88] sm:$0xff]
        %v464 = vld [vmem:[%s352 + $0x90] sm:$0xff]
        %v465 = vld [vmem:[%s352 + $0x98] sm:$0xff]
        %v466 = vld [vmem:[%s352 + $0xa0] sm:$0xff]
        %v467 = vld [vmem:[%s352 + $0xa8] sm:$0xff]
        %v468 = vld [vmem:[%s352 + $0xb0] sm:$0xff]
        %v469 = vld [vmem:[%s352 + $0xb8] sm:$0xff]
        %v470 = vld [vmem:[%s352 + $0xc0] sm:$0xff]
        %v471 = vld [vmem:[%s352 + $0xc8] sm:$0xff]
        %v472 = vld [vmem:[%s352 + $0xd0] sm:$0xff]
        %v473 = vld [vmem:[%s352 + $0xd8] sm:$0xff]
        %v474 = vld [vmem:[%s352 + $0xe0] sm:$0xff]
        %v475 = vld [vmem:[%s352 + $0xe8] sm:$0xff]
        %v476 = vld [vmem:[%s352 + $0xf0] sm:$0xff]
        %v477 = vld [vmem:[%s352 + $0xf8] sm:$0xff]
        %v478 = vld [vmem:[%s352 + $0x100] sm:$0xff]
        %v479 = vld [vmem:[%s352 + $0x108] sm:$0xff]
        %v480 = vld [vmem:[%s352 + $0x110] sm:$0xff]
        %v481 = vld [vmem:[%s352 + $0x118] sm:$0xff]
        %v482 = vld [vmem:[%s352 + $0x120] sm:$0xff]
        %v483 = vld [vmem:[%s352 + $0x128] sm:$0xff]
        %v484 = vld [vmem:[%s352 + $0x130] sm:$0xff]
        %v485 = vld [vmem:[%s352 + $0x138] sm:$0xff]
        %v486 = vld [vmem:[%s352 + $0x140] sm:$0xff]
        %v487 = vld [vmem:[%s352 + $0x148] sm:$0xff]
        %v488 = vld [vmem:[%s352 + $0x150] sm:$0xff]
        %v489 = vld [vmem:[%s352 + $0x158] sm:$0xff]
        %v490 = vld [vmem:[%s352 + $0x160] sm:$0xff]
        %v491 = vld [vmem:[%s352 + $0x168] sm:$0xff]
        %v492 = vld [vmem:[%s352 + $0x170] sm:$0xff]
        %v493 = vld [vmem:[%s352 + $0x178] sm:$0xff]
        %v494 = vld [vmem:[%s352 + $0x180] sm:$0xff]
        %v495 = vld [vmem:[%s352 + $0x188] sm:$0xff]
        %v496 = vld [vmem:[%s352 + $0x190] sm:$0xff]
        %v497 = vld [vmem:[%s352 + $0x198] sm:$0xff]
        %v498 = vld [vmem:[%s352 + $0x1a0] sm:$0xff]
        %v499 = vld [vmem:[%s352 + $0x1a8] sm:$0xff]
        %v500 = vld [vmem:[%s352 + $0x1b0] sm:$0xff]
        %v501 = vld [vmem:[%s352 + $0x1b8] sm:$0xff]
        %v502 = vld [vmem:[%s352 + $0x1c0] sm:$0xff]
        %v503 = vld [vmem:[%s352 + $0x1c8] sm:$0xff]
        %v504 = vld [vmem:[%s352 + $0x1d0] sm:$0xff]
        %v505 = vld [vmem:[%s352 + $0x1d8] sm:$0xff]
        %v506 = vld [vmem:[%s352 + $0x1e0] sm:$0xff]
        %v507 = vld [vmem:[%s352 + $0x1e8] sm:$0xff]
        %v508 = vld [vmem:[%s352 + $0x1f0] sm:$0xff]
        %v509 = vld [vmem:[%s352 + $0x1f8] sm:$0xff]
        %v510 = vunpack.c.l.bf16 %v446
        %v511 = vunpack.c.h.bf16 %v446
        %v512 = vunpack.c.l.bf16 %v447
        %v513 = vunpack.c.h.bf16 %v447
        %v514 = vunpack.c.l.bf16 %v448
        %v515 = vunpack.c.h.bf16 %v448
        %v516 = vunpack.c.l.bf16 %v449
        %v517 = vunpack.c.h.bf16 %v449
        %v518 = vunpack.c.l.bf16 %v450
        %v519 = vunpack.c.h.bf16 %v450
        %v520 = vunpack.c.l.bf16 %v451
        %v521 = vunpack.c.h.bf16 %v451
        %v522 = vunpack.c.l.bf16 %v452
        %v523 = vunpack.c.h.bf16 %v452
        %v524 = vunpack.c.l.bf16 %v453
        %v525 = vunpack.c.h.bf16 %v453
        %v526 = vunpack.c.l.bf16 %v454
        %v527 = vunpack.c.h.bf16 %v454
        %v528 = vunpack.c.l.bf16 %v455
        %v529 = vunpack.c.h.bf16 %v455
        %v530 = vunpack.c.l.bf16 %v456
        %v531 = vunpack.c.h.bf16 %v456
        %v532 = vunpack.c.l.bf16 %v457
        %v533 = vunpack.c.h.bf16 %v457
        %v534 = vunpack.c.l.bf16 %v458
        %v535 = vunpack.c.h.bf16 %v458
        %v536 = vunpack.c.l.bf16 %v459
        %v537 = vunpack.c.h.bf16 %v459
        %v538 = vunpack.c.l.bf16 %v460
        %v539 = vunpack.c.h.bf16 %v460
        %v540 = vunpack.c.l.bf16 %v461
        %v541 = vunpack.c.h.bf16 %v461
        %v542 = vunpack.c.l.bf16 %v462
        %v543 = vunpack.c.h.bf16 %v462
        %v544 = vunpack.c.l.bf16 %v463
        %v545 = vunpack.c.h.bf16 %v463
        %v546 = vunpack.c.l.bf16 %v464
        %v547 = vunpack.c.h.bf16 %v464
        %v548 = vunpack.c.l.bf16 %v465
        %v549 = vunpack.c.h.bf16 %v465
        %v550 = vunpack.c.l.bf16 %v466
        %v551 = vunpack.c.h.bf16 %v466
        %v552 = vunpack.c.l.bf16 %v467
        %v553 = vunpack.c.h.bf16 %v467
        %v554 = vunpack.c.l.bf16 %v468
        %v555 = vunpack.c.h.bf16 %v468
        %v556 = vunpack.c.l.bf16 %v469
        %v557 = vunpack.c.h.bf16 %v469
        %v558 = vunpack.c.l.bf16 %v470
        %v559 = vunpack.c.h.bf16 %v470
        %v560 = vunpack.c.l.bf16 %v471
        %v561 = vunpack.c.h.bf16 %v471
        %v562 = vunpack.c.l.bf16 %v472
        %v563 = vunpack.c.h.bf16 %v472
        %v564 = vunpack.c.l.bf16 %v473
        %v565 = vunpack.c.h.bf16 %v473
        %v566 = vunpack.c.l.bf16 %v474
        %v567 = vunpack.c.h.bf16 %v474
        %v568 = vunpack.c.l.bf16 %v475
        %v569 = vunpack.c.h.bf16 %v475
        %v570 = vunpack.c.l.bf16 %v476
        %v571 = vunpack.c.h.bf16 %v476
        %v572 = vunpack.c.l.bf16 %v477
        %v573 = vunpack.c.h.bf16 %v477
        %v574 = vunpack.c.l.bf16 %v478
        %v575 = vunpack.c.h.bf16 %v478
        %v576 = vunpack.c.l.bf16 %v479
        %v577 = vunpack.c.h.bf16 %v479
        %v578 = vunpack.c.l.bf16 %v480
        %v579 = vunpack.c.h.bf16 %v480
        %v580 = vunpack.c.l.bf16 %v481
        %v581 = vunpack.c.h.bf16 %v481
        %v582 = vunpack.c.l.bf16 %v482
        %v583 = vunpack.c.h.bf16 %v482
        %v584 = vunpack.c.l.bf16 %v483
        %v585 = vunpack.c.h.bf16 %v483
        %v586 = vunpack.c.l.bf16 %v484
        %v587 = vunpack.c.h.bf16 %v484
        %v588 = vunpack.c.l.bf16 %v485
        %v589 = vunpack.c.h.bf16 %v485
        %v590 = vunpack.c.l.bf16 %v486
        %v591 = vunpack.c.h.bf16 %v486
        %v592 = vunpack.c.l.bf16 %v487
        %v593 = vunpack.c.h.bf16 %v487
        %v594 = vunpack.c.l.bf16 %v488
        %v595 = vunpack.c.h.bf16 %v488
        %v596 = vunpack.c.l.bf16 %v489
        %v597 = vunpack.c.h.bf16 %v489
        %v598 = vunpack.c.l.bf16 %v490
        %v599 = vunpack.c.h.bf16 %v490
        %v600 = vunpack.c.l.bf16 %v491
        %v601 = vunpack.c.h.bf16 %v491
        %v602 = vunpack.c.l.bf16 %v492
        %v603 = vunpack.c.h.bf16 %v492
        %v604 = vunpack.c.l.bf16 %v493
        %v605 = vunpack.c.h.bf16 %v493
        %v606 = vunpack.c.l.bf16 %v494
        %v607 = vunpack.c.h.bf16 %v494
        %v608 = vunpack.c.l.bf16 %v495
        %v609 = vunpack.c.h.bf16 %v495
        %v610 = vunpack.c.l.bf16 %v496
        %v611 = vunpack.c.h.bf16 %v496
        %v612 = vunpack.c.l.bf16 %v497
        %v613 = vunpack.c.h.bf16 %v497
        %v614 = vunpack.c.l.bf16 %v498
        %v615 = vunpack.c.h.bf16 %v498
        %v616 = vunpack.c.l.bf16 %v499
        %v617 = vunpack.c.h.bf16 %v499
        %v618 = vunpack.c.l.bf16 %v500
        %v619 = vunpack.c.h.bf16 %v500
        %v620 = vunpack.c.l.bf16 %v501
        %v621 = vunpack.c.h.bf16 %v501
        %v622 = vunpack.c.l.bf16 %v502
        %v623 = vunpack.c.h.bf16 %v502
        %v624 = vunpack.c.l.bf16 %v503
        %v625 = vunpack.c.h.bf16 %v503
        %v626 = vunpack.c.l.bf16 %v504
        %v627 = vunpack.c.h.bf16 %v504
        %v628 = vunpack.c.l.bf16 %v505
        %v629 = vunpack.c.h.bf16 %v505
        %v630 = vunpack.c.l.bf16 %v506
        %v631 = vunpack.c.h.bf16 %v506
        %v632 = vunpack.c.l.bf16 %v507
        %v633 = vunpack.c.h.bf16 %v507
        %v634 = vunpack.c.l.bf16 %v508
        %v635 = vunpack.c.h.bf16 %v508
        %v636 = vunpack.c.l.bf16 %v509
        %v637 = vunpack.c.h.bf16 %v509
        %639 = vset.pattern.permute.xlu0 1
        %640 = vperm.xlu0 %639, %v430
        %v641 = vpop.permute.xlu0 %640
        %644 = vset.pattern.permute.xlu0 1
        %645 = vperm.xlu0 %644, %v431
        %v646 = vpop.permute.xlu0 %645
        %649 = vset.pattern.permute.xlu0 1
        %650 = vperm.xlu0 %649, %v432
        %v651 = vpop.permute.xlu0 %650
        %654 = vset.pattern.permute.xlu0 1
        %655 = vperm.xlu0 %654, %v433
        %v656 = vpop.permute.xlu0 %655
        %659 = vset.pattern.permute.xlu0 1
        %660 = vperm.xlu0 %659, %v434
        %v661 = vpop.permute.xlu0 %660
        %664 = vset.pattern.permute.xlu0 1
        %665 = vperm.xlu0 %664, %v435
        %v666 = vpop.permute.xlu0 %665
        %669 = vset.pattern.permute.xlu0 1
        %670 = vperm.xlu0 %669, %v436
        %v671 = vpop.permute.xlu0 %670
        %674 = vset.pattern.permute.xlu0 1
        %675 = vperm.xlu0 %674, %v437
        %v676 = vpop.permute.xlu0 %675
        %679 = vset.pattern.permute.xlu0 1
        %680 = vperm.xlu0 %679, %v438
        %v681 = vpop.permute.xlu0 %680
        %684 = vset.pattern.permute.xlu0 1
        %685 = vperm.xlu0 %684, %v439
        %v686 = vpop.permute.xlu0 %685
        %689 = vset.pattern.permute.xlu0 1
        %690 = vperm.xlu0 %689, %v440
        %v691 = vpop.permute.xlu0 %690
        %694 = vset.pattern.permute.xlu0 1
        %695 = vperm.xlu0 %694, %v441
        %v696 = vpop.permute.xlu0 %695
        %699 = vset.pattern.permute.xlu0 1
        %700 = vperm.xlu0 %699, %v442
        %v701 = vpop.permute.xlu0 %700
        %704 = vset.pattern.permute.xlu0 1
        %705 = vperm.xlu0 %704, %v443
        %v706 = vpop.permute.xlu0 %705
        %709 = vset.pattern.permute.xlu0 1
        %710 = vperm.xlu0 %709, %v444
        %v711 = vpop.permute.xlu0 %710
        %714 = vset.pattern.permute.xlu0 1
        %715 = vperm.xlu0 %714, %v445
        %v716 = vpop.permute.xlu0 %715
        %v718 = vmul.f32 %v510, %v641
        %v719 = vmul.f32 %v511, %v641
        %v720 = vmul.f32 %v512, %v641
        %v721 = vmul.f32 %v513, %v641
        %v722 = vmul.f32 %v514, %v641
        %v723 = vmul.f32 %v515, %v641
        %v724 = vmul.f32 %v516, %v641
        %v725 = vmul.f32 %v517, %v641
        %v726 = vmul.f32 %v518, %v646
        %v727 = vmul.f32 %v519, %v646
        %v728 = vmul.f32 %v520, %v646
        %v729 = vmul.f32 %v521, %v646
        %v730 = vmul.f32 %v522, %v646
        %v731 = vmul.f32 %v523, %v646
        %v732 = vmul.f32 %v524, %v646
        %v733 = vmul.f32 %v525, %v646
        %v734 = vmul.f32 %v526, %v651
        %v735 = vmul.f32 %v527, %v651
        %v736 = vmul.f32 %v528, %v651
        %v737 = vmul.f32 %v529, %v651
        %v738 = vmul.f32 %v530, %v651
        %v739 = vmul.f32 %v531, %v651
        %v740 = vmul.f32 %v532, %v651
        %v741 = vmul.f32 %v533, %v651
        %v742 = vmul.f32 %v534, %v656
        %v743 = vmul.f32 %v535, %v656
        %v744 = vmul.f32 %v536, %v656
        %v745 = vmul.f32 %v537, %v656
        %v746 = vmul.f32 %v538, %v656
        %v747 = vmul.f32 %v539, %v656
        %v748 = vmul.f32 %v540, %v656
        %v749 = vmul.f32 %v541, %v656
        %v750 = vmul.f32 %v542, %v661
        %v751 = vmul.f32 %v543, %v661
        %v752 = vmul.f32 %v544, %v661
        %v753 = vmul.f32 %v545, %v661
        %v754 = vmul.f32 %v546, %v661
        %v755 = vmul.f32 %v547, %v661
        %v756 = vmul.f32 %v548, %v661
        %v757 = vmul.f32 %v549, %v661
        %v758 = vmul.f32 %v550, %v666
        %v759 = vmul.f32 %v551, %v666
        %v760 = vmul.f32 %v552, %v666
        %v761 = vmul.f32 %v553, %v666
        %v762 = vmul.f32 %v554, %v666
        %v763 = vmul.f32 %v555, %v666
        %v764 = vmul.f32 %v556, %v666
        %v765 = vmul.f32 %v557, %v666
        %v766 = vmul.f32 %v558, %v671
        %v767 = vmul.f32 %v559, %v671
        %v768 = vmul.f32 %v560, %v671
        %v769 = vmul.f32 %v561, %v671
        %v770 = vmul.f32 %v562, %v671
        %v771 = vmul.f32 %v563, %v671
        %v772 = vmul.f32 %v564, %v671
        %v773 = vmul.f32 %v565, %v671
        %v774 = vmul.f32 %v566, %v676
        %v775 = vmul.f32 %v567, %v676
        %v776 = vmul.f32 %v568, %v676
        %v777 = vmul.f32 %v569, %v676
        %v778 = vmul.f32 %v570, %v676
        %v779 = vmul.f32 %v571, %v676
        %v780 = vmul.f32 %v572, %v676
        %v781 = vmul.f32 %v573, %v676
        %v782 = vmul.f32 %v574, %v681
        %v783 = vmul.f32 %v575, %v681
        %v784 = vmul.f32 %v576, %v681
        %v785 = vmul.f32 %v577, %v681
        %v786 = vmul.f32 %v578, %v681
        %v787 = vmul.f32 %v579, %v681
        %v788 = vmul.f32 %v580, %v681
        %v789 = vmul.f32 %v581, %v681
        %v790 = vmul.f32 %v582, %v686
        %v791 = vmul.f32 %v583, %v686
        %v792 = vmul.f32 %v584, %v686
        %v793 = vmul.f32 %v585, %v686
        %v794 = vmul.f32 %v586, %v686
        %v795 = vmul.f32 %v587, %v686
        %v796 = vmul.f32 %v588, %v686
        %v797 = vmul.f32 %v589, %v686
        %v798 = vmul.f32 %v590, %v691
        %v799 = vmul.f32 %v591, %v691
        %v800 = vmul.f32 %v592, %v691
        %v801 = vmul.f32 %v593, %v691
        %v802 = vmul.f32 %v594, %v691
        %v803 = vmul.f32 %v595, %v691
        %v804 = vmul.f32 %v596, %v691
        %v805 = vmul.f32 %v597, %v691
        %v806 = vmul.f32 %v598, %v696
        %v807 = vmul.f32 %v599, %v696
        %v808 = vmul.f32 %v600, %v696
        %v809 = vmul.f32 %v601, %v696
        %v810 = vmul.f32 %v602, %v696
        %v811 = vmul.f32 %v603, %v696
        %v812 = vmul.f32 %v604, %v696
        %v813 = vmul.f32 %v605, %v696
        %v814 = vmul.f32 %v606, %v701
        %v815 = vmul.f32 %v607, %v701
        %v816 = vmul.f32 %v608, %v701
        %v817 = vmul.f32 %v609, %v701
        %v818 = vmul.f32 %v610, %v701
        %v819 = vmul.f32 %v611, %v701
        %v820 = vmul.f32 %v612, %v701
        %v821 = vmul.f32 %v613, %v701
        %v822 = vmul.f32 %v614, %v706
        %v823 = vmul.f32 %v615, %v706
        %v824 = vmul.f32 %v616, %v706
        %v825 = vmul.f32 %v617, %v706
        %v826 = vmul.f32 %v618, %v706
        %v827 = vmul.f32 %v619, %v706
        %v828 = vmul.f32 %v620, %v706
        %v829 = vmul.f32 %v621, %v706
        %v830 = vmul.f32 %v622, %v711
        %v831 = vmul.f32 %v623, %v711
        %v832 = vmul.f32 %v624, %v711
        %v833 = vmul.f32 %v625, %v711
        %v834 = vmul.f32 %v626, %v711
        %v835 = vmul.f32 %v627, %v711
        %v836 = vmul.f32 %v628, %v711
        %v837 = vmul.f32 %v629, %v711
        %v838 = vmul.f32 %v630, %v716
        %v839 = vmul.f32 %v631, %v716
        %v840 = vmul.f32 %v632, %v716
        %v841 = vmul.f32 %v633, %v716
        %v842 = vmul.f32 %v634, %v716
        %v843 = vmul.f32 %v635, %v716
        %v844 = vmul.f32 %v636, %v716
        %v845 = vmul.f32 %v637, %v716
        %v846 = vld [vmem:[%s362] sm:$0xff]
        %v847 = vld [vmem:[%s362 + $0x8] sm:$0xff]
        %v848 = vld [vmem:[%s362 + $0x10] sm:$0xff]
        %v849 = vld [vmem:[%s362 + $0x18] sm:$0xff]
        %v850 = vld [vmem:[%s362 + $0x20] sm:$0xff]
        %v851 = vld [vmem:[%s362 + $0x28] sm:$0xff]
        %v852 = vld [vmem:[%s362 + $0x30] sm:$0xff]
        %v853 = vld [vmem:[%s362 + $0x38] sm:$0xff]
        %v854 = vld [vmem:[%s362 + $0x40] sm:$0xff]
        %v855 = vld [vmem:[%s362 + $0x48] sm:$0xff]
        %v856 = vld [vmem:[%s362 + $0x50] sm:$0xff]
        %v857 = vld [vmem:[%s362 + $0x58] sm:$0xff]
        %v858 = vld [vmem:[%s362 + $0x60] sm:$0xff]
        %v859 = vld [vmem:[%s362 + $0x68] sm:$0xff]
        %v860 = vld [vmem:[%s362 + $0x70] sm:$0xff]
        %v861 = vld [vmem:[%s362 + $0x78] sm:$0xff]
        %v862 = vld [vmem:[%s362 + $0x80] sm:$0xff]
        %v863 = vld [vmem:[%s362 + $0x88] sm:$0xff]
        %v864 = vld [vmem:[%s362 + $0x90] sm:$0xff]
        %v865 = vld [vmem:[%s362 + $0x98] sm:$0xff]
        %v866 = vld [vmem:[%s362 + $0xa0] sm:$0xff]
        %v867 = vld [vmem:[%s362 + $0xa8] sm:$0xff]
        %v868 = vld [vmem:[%s362 + $0xb0] sm:$0xff]
        %v869 = vld [vmem:[%s362 + $0xb8] sm:$0xff]
        %v870 = vld [vmem:[%s362 + $0xc0] sm:$0xff]
        %v871 = vld [vmem:[%s362 + $0xc8] sm:$0xff]
        %v872 = vld [vmem:[%s362 + $0xd0] sm:$0xff]
        %v873 = vld [vmem:[%s362 + $0xd8] sm:$0xff]
        %v874 = vld [vmem:[%s362 + $0xe0] sm:$0xff]
        %v875 = vld [vmem:[%s362 + $0xe8] sm:$0xff]
        %v876 = vld [vmem:[%s362 + $0xf0] sm:$0xff]
        %v877 = vld [vmem:[%s362 + $0xf8] sm:$0xff]
        %v878 = vld [vmem:[%s362 + $0x100] sm:$0xff]
        %v879 = vld [vmem:[%s362 + $0x108] sm:$0xff]
        %v880 = vld [vmem:[%s362 + $0x110] sm:$0xff]
        %v881 = vld [vmem:[%s362 + $0x118] sm:$0xff]
        %v882 = vld [vmem:[%s362 + $0x120] sm:$0xff]
        %v883 = vld [vmem:[%s362 + $0x128] sm:$0xff]
        %v884 = vld [vmem:[%s362 + $0x130] sm:$0xff]
        %v885 = vld [vmem:[%s362 + $0x138] sm:$0xff]
        %v886 = vld [vmem:[%s362 + $0x140] sm:$0xff]
        %v887 = vld [vmem:[%s362 + $0x148] sm:$0xff]
        %v888 = vld [vmem:[%s362 + $0x150] sm:$0xff]
        %v889 = vld [vmem:[%s362 + $0x158] sm:$0xff]
        %v890 = vld [vmem:[%s362 + $0x160] sm:$0xff]
        %v891 = vld [vmem:[%s362 + $0x168] sm:$0xff]
        %v892 = vld [vmem:[%s362 + $0x170] sm:$0xff]
        %v893 = vld [vmem:[%s362 + $0x178] sm:$0xff]
        %v894 = vld [vmem:[%s362 + $0x180] sm:$0xff]
        %v895 = vld [vmem:[%s362 + $0x188] sm:$0xff]
        %v896 = vld [vmem:[%s362 + $0x190] sm:$0xff]
        %v897 = vld [vmem:[%s362 + $0x198] sm:$0xff]
        %v898 = vld [vmem:[%s362 + $0x1a0] sm:$0xff]
        %v899 = vld [vmem:[%s362 + $0x1a8] sm:$0xff]
        %v900 = vld [vmem:[%s362 + $0x1b0] sm:$0xff]
        %v901 = vld [vmem:[%s362 + $0x1b8] sm:$0xff]
        %v902 = vld [vmem:[%s362 + $0x1c0] sm:$0xff]
        %v903 = vld [vmem:[%s362 + $0x1c8] sm:$0xff]
        %v904 = vld [vmem:[%s362 + $0x1d0] sm:$0xff]
        %v905 = vld [vmem:[%s362 + $0x1d8] sm:$0xff]
        %v906 = vld [vmem:[%s362 + $0x1e0] sm:$0xff]
        %v907 = vld [vmem:[%s362 + $0x1e8] sm:$0xff]
        %v908 = vld [vmem:[%s362 + $0x1f0] sm:$0xff]
        %v909 = vld [vmem:[%s362 + $0x1f8] sm:$0xff]
        %v910 = vunpack.c.l.bf16 %v846
        %v911 = vunpack.c.h.bf16 %v846
        %v912 = vunpack.c.l.bf16 %v847
        %v913 = vunpack.c.h.bf16 %v847
        %v914 = vunpack.c.l.bf16 %v848
        %v915 = vunpack.c.h.bf16 %v848
        %v916 = vunpack.c.l.bf16 %v849
        %v917 = vunpack.c.h.bf16 %v849
        %v918 = vunpack.c.l.bf16 %v850
        %v919 = vunpack.c.h.bf16 %v850
        %v920 = vunpack.c.l.bf16 %v851
        %v921 = vunpack.c.h.bf16 %v851
        %v922 = vunpack.c.l.bf16 %v852
        %v923 = vunpack.c.h.bf16 %v852
        %v924 = vunpack.c.l.bf16 %v853
        %v925 = vunpack.c.h.bf16 %v853
        %v926 = vunpack.c.l.bf16 %v854
        %v927 = vunpack.c.h.bf16 %v854
        %v928 = vunpack.c.l.bf16 %v855
        %v929 = vunpack.c.h.bf16 %v855
        %v930 = vunpack.c.l.bf16 %v856
        %v931 = vunpack.c.h.bf16 %v856
        %v932 = vunpack.c.l.bf16 %v857
        %v933 = vunpack.c.h.bf16 %v857
        %v934 = vunpack.c.l.bf16 %v858
        %v935 = vunpack.c.h.bf16 %v858
        %v936 = vunpack.c.l.bf16 %v859
        %v937 = vunpack.c.h.bf16 %v859
        %v938 = vunpack.c.l.bf16 %v860
        %v939 = vunpack.c.h.bf16 %v860
        %v940 = vunpack.c.l.bf16 %v861
        %v941 = vunpack.c.h.bf16 %v861
        %v942 = vunpack.c.l.bf16 %v862
        %v943 = vunpack.c.h.bf16 %v862
        %v944 = vunpack.c.l.bf16 %v863
        %v945 = vunpack.c.h.bf16 %v863
        %v946 = vunpack.c.l.bf16 %v864
        %v947 = vunpack.c.h.bf16 %v864
        %v948 = vunpack.c.l.bf16 %v865
        %v949 = vunpack.c.h.bf16 %v865
        %v950 = vunpack.c.l.bf16 %v866
        %v951 = vunpack.c.h.bf16 %v866
        %v952 = vunpack.c.l.bf16 %v867
        %v953 = vunpack.c.h.bf16 %v867
        %v954 = vunpack.c.l.bf16 %v868
        %v955 = vunpack.c.h.bf16 %v868
        %v956 = vunpack.c.l.bf16 %v869
        %v957 = vunpack.c.h.bf16 %v869
        %v958 = vunpack.c.l.bf16 %v870
        %v959 = vunpack.c.h.bf16 %v870
        %v960 = vunpack.c.l.bf16 %v871
        %v961 = vunpack.c.h.bf16 %v871
        %v962 = vunpack.c.l.bf16 %v872
        %v963 = vunpack.c.h.bf16 %v872
        %v964 = vunpack.c.l.bf16 %v873
        %v965 = vunpack.c.h.bf16 %v873
        %v966 = vunpack.c.l.bf16 %v874
        %v967 = vunpack.c.h.bf16 %v874
        %v968 = vunpack.c.l.bf16 %v875
        %v969 = vunpack.c.h.bf16 %v875
        %v970 = vunpack.c.l.bf16 %v876
        %v971 = vunpack.c.h.bf16 %v876
        %v972 = vunpack.c.l.bf16 %v877
        %v973 = vunpack.c.h.bf16 %v877
        %v974 = vunpack.c.l.bf16 %v878
        %v975 = vunpack.c.h.bf16 %v878
        %v976 = vunpack.c.l.bf16 %v879
        %v977 = vunpack.c.h.bf16 %v879
        %v978 = vunpack.c.l.bf16 %v880
        %v979 = vunpack.c.h.bf16 %v880
        %v980 = vunpack.c.l.bf16 %v881
        %v981 = vunpack.c.h.bf16 %v881
        %v982 = vunpack.c.l.bf16 %v882
        %v983 = vunpack.c.h.bf16 %v882
        %v984 = vunpack.c.l.bf16 %v883
        %v985 = vunpack.c.h.bf16 %v883
        %v986 = vunpack.c.l.bf16 %v884
        %v987 = vunpack.c.h.bf16 %v884
        %v988 = vunpack.c.l.bf16 %v885
        %v989 = vunpack.c.h.bf16 %v885
        %v990 = vunpack.c.l.bf16 %v886
        %v991 = vunpack.c.h.bf16 %v886
        %v992 = vunpack.c.l.bf16 %v887
        %v993 = vunpack.c.h.bf16 %v887
        %v994 = vunpack.c.l.bf16 %v888
        %v995 = vunpack.c.h.bf16 %v888
        %v996 = vunpack.c.l.bf16 %v889
        %v997 = vunpack.c.h.bf16 %v889
        %v998 = vunpack.c.l.bf16 %v890
        %v999 = vunpack.c.h.bf16 %v890
        %v1000 = vunpack.c.l.bf16 %v891
        %v1001 = vunpack.c.h.bf16 %v891
        %v1002 = vunpack.c.l.bf16 %v892
        %v1003 = vunpack.c.h.bf16 %v892
        %v1004 = vunpack.c.l.bf16 %v893
        %v1005 = vunpack.c.h.bf16 %v893
        %v1006 = vunpack.c.l.bf16 %v894
        %v1007 = vunpack.c.h.bf16 %v894
        %v1008 = vunpack.c.l.bf16 %v895
        %v1009 = vunpack.c.h.bf16 %v895
        %v1010 = vunpack.c.l.bf16 %v896
        %v1011 = vunpack.c.h.bf16 %v896
        %v1012 = vunpack.c.l.bf16 %v897
        %v1013 = vunpack.c.h.bf16 %v897
        %v1014 = vunpack.c.l.bf16 %v898
        %v1015 = vunpack.c.h.bf16 %v898
        %v1016 = vunpack.c.l.bf16 %v899
        %v1017 = vunpack.c.h.bf16 %v899
        %v1018 = vunpack.c.l.bf16 %v900
        %v1019 = vunpack.c.h.bf16 %v900
        %v1020 = vunpack.c.l.bf16 %v901
        %v1021 = vunpack.c.h.bf16 %v901
        %v1022 = vunpack.c.l.bf16 %v902
        %v1023 = vunpack.c.h.bf16 %v902
        %v1024 = vunpack.c.l.bf16 %v903
        %v1025 = vunpack.c.h.bf16 %v903
        %v1026 = vunpack.c.l.bf16 %v904
        %v1027 = vunpack.c.h.bf16 %v904
        %v1028 = vunpack.c.l.bf16 %v905
        %v1029 = vunpack.c.h.bf16 %v905
        %v1030 = vunpack.c.l.bf16 %v906
        %v1031 = vunpack.c.h.bf16 %v906
        %v1032 = vunpack.c.l.bf16 %v907
        %v1033 = vunpack.c.h.bf16 %v907
        %v1034 = vunpack.c.l.bf16 %v908
        %v1035 = vunpack.c.h.bf16 %v908
        %v1036 = vunpack.c.l.bf16 %v909
        %v1037 = vunpack.c.h.bf16 %v909
        %1038 = vset.pattern.permute.xlu0 2
        %1039 = vperm.xlu0 %1038, %v430
        %v1040 = vpop.permute.xlu0 %1039
        %1042 = vset.pattern.permute.xlu0 2
        %1043 = vperm.xlu0 %1042, %v431
        %v1044 = vpop.permute.xlu0 %1043
        %1046 = vset.pattern.permute.xlu0 2
        %1047 = vperm.xlu0 %1046, %v432
        %v1048 = vpop.permute.xlu0 %1047
        %1050 = vset.pattern.permute.xlu0 2
        %1051 = vperm.xlu0 %1050, %v433
        %v1052 = vpop.permute.xlu0 %1051
        %1054 = vset.pattern.permute.xlu0 2
        %1055 = vperm.xlu0 %1054, %v434
        %v1056 = vpop.permute.xlu0 %1055
        %1058 = vset.pattern.permute.xlu0 2
        %1059 = vperm.xlu0 %1058, %v435
        %v1060 = vpop.permute.xlu0 %1059
        %1062 = vset.pattern.permute.xlu0 2
        %1063 = vperm.xlu0 %1062, %v436
        %v1064 = vpop.permute.xlu0 %1063
        %1066 = vset.pattern.permute.xlu0 2
        %1067 = vperm.xlu0 %1066, %v437
        %v1068 = vpop.permute.xlu0 %1067
        %1070 = vset.pattern.permute.xlu0 2
        %1071 = vperm.xlu0 %1070, %v438
        %v1072 = vpop.permute.xlu0 %1071
        %1074 = vset.pattern.permute.xlu0 2
        %1075 = vperm.xlu0 %1074, %v439
        %v1076 = vpop.permute.xlu0 %1075
        %1078 = vset.pattern.permute.xlu0 2
        %1079 = vperm.xlu0 %1078, %v440
        %v1080 = vpop.permute.xlu0 %1079
        %1082 = vset.pattern.permute.xlu0 2
        %1083 = vperm.xlu0 %1082, %v441
        %v1084 = vpop.permute.xlu0 %1083
        %1086 = vset.pattern.permute.xlu0 2
        %1087 = vperm.xlu0 %1086, %v442
        %v1088 = vpop.permute.xlu0 %1087
        %1090 = vset.pattern.permute.xlu0 2
        %1091 = vperm.xlu0 %1090, %v443
        %v1092 = vpop.permute.xlu0 %1091
        %1094 = vset.pattern.permute.xlu0 2
        %1095 = vperm.xlu0 %1094, %v444
        %v1096 = vpop.permute.xlu0 %1095
        %1098 = vset.pattern.permute.xlu0 2
        %1099 = vperm.xlu0 %1098, %v445
        %v1100 = vpop.permute.xlu0 %1099
        %v1102 = vmul.f32 %v910, %v1040
        %v1103 = vmul.f32 %v911, %v1040
        %v1104 = vmul.f32 %v912, %v1040
        %v1105 = vmul.f32 %v913, %v1040
        %v1106 = vmul.f32 %v914, %v1040
        %v1107 = vmul.f32 %v915, %v1040
        %v1108 = vmul.f32 %v916, %v1040
        %v1109 = vmul.f32 %v917, %v1040
        %v1110 = vmul.f32 %v918, %v1044
        %v1111 = vmul.f32 %v919, %v1044
        %v1112 = vmul.f32 %v920, %v1044
        %v1113 = vmul.f32 %v921, %v1044
        %v1114 = vmul.f32 %v922, %v1044
        %v1115 = vmul.f32 %v923, %v1044
        %v1116 = vmul.f32 %v924, %v1044
        %v1117 = vmul.f32 %v925, %v1044
        %v1118 = vmul.f32 %v926, %v1048
        %v1119 = vmul.f32 %v927, %v1048
        %v1120 = vmul.f32 %v928, %v1048
        %v1121 = vmul.f32 %v929, %v1048
        %v1122 = vmul.f32 %v930, %v1048
        %v1123 = vmul.f32 %v931, %v1048
        %v1124 = vmul.f32 %v932, %v1048
        %v1125 = vmul.f32 %v933, %v1048
        %v1126 = vmul.f32 %v934, %v1052
        %v1127 = vmul.f32 %v935, %v1052
        %v1128 = vmul.f32 %v936, %v1052
        %v1129 = vmul.f32 %v937, %v1052
        %v1130 = vmul.f32 %v938, %v1052
        %v1131 = vmul.f32 %v939, %v1052
        %v1132 = vmul.f32 %v940, %v1052
        %v1133 = vmul.f32 %v941, %v1052
        %v1134 = vmul.f32 %v942, %v1056
        %v1135 = vmul.f32 %v943, %v1056
        %v1136 = vmul.f32 %v944, %v1056
        %v1137 = vmul.f32 %v945, %v1056
        %v1138 = vmul.f32 %v946, %v1056
        %v1139 = vmul.f32 %v947, %v1056
        %v1140 = vmul.f32 %v948, %v1056
        %v1141 = vmul.f32 %v949, %v1056
        %v1142 = vmul.f32 %v950, %v1060
        %v1143 = vmul.f32 %v951, %v1060
        %v1144 = vmul.f32 %v952, %v1060
        %v1145 = vmul.f32 %v953, %v1060
        %v1146 = vmul.f32 %v954, %v1060
        %v1147 = vmul.f32 %v955, %v1060
        %v1148 = vmul.f32 %v956, %v1060
        %v1149 = vmul.f32 %v957, %v1060
        %v1150 = vmul.f32 %v958, %v1064
        %v1151 = vmul.f32 %v959, %v1064
        %v1152 = vmul.f32 %v960, %v1064
        %v1153 = vmul.f32 %v961, %v1064
        %v1154 = vmul.f32 %v962, %v1064
        %v1155 = vmul.f32 %v963, %v1064
        %v1156 = vmul.f32 %v964, %v1064
        %v1157 = vmul.f32 %v965, %v1064
        %v1158 = vmul.f32 %v966, %v1068
        %v1159 = vmul.f32 %v967, %v1068
        %v1160 = vmul.f32 %v968, %v1068
        %v1161 = vmul.f32 %v969, %v1068
        %v1162 = vmul.f32 %v970, %v1068
        %v1163 = vmul.f32 %v971, %v1068
        %v1164 = vmul.f32 %v972, %v1068
        %v1165 = vmul.f32 %v973, %v1068
        %v1166 = vmul.f32 %v974, %v1072
        %v1167 = vmul.f32 %v975, %v1072
        %v1168 = vmul.f32 %v976, %v1072
        %v1169 = vmul.f32 %v977, %v1072
        %v1170 = vmul.f32 %v978, %v1072
        %v1171 = vmul.f32 %v979, %v1072
        %v1172 = vmul.f32 %v980, %v1072
        %v1173 = vmul.f32 %v981, %v1072
        %v1174 = vmul.f32 %v982, %v1076
        %v1175 = vmul.f32 %v983, %v1076
        %v1176 = vmul.f32 %v984, %v1076
        %v1177 = vmul.f32 %v985, %v1076
        %v1178 = vmul.f32 %v986, %v1076
        %v1179 = vmul.f32 %v987, %v1076
        %v1180 = vmul.f32 %v988, %v1076
        %v1181 = vmul.f32 %v989, %v1076
        %v1182 = vmul.f32 %v990, %v1080
        %v1183 = vmul.f32 %v991, %v1080
        %v1184 = vmul.f32 %v992, %v1080
        %v1185 = vmul.f32 %v993, %v1080
        %v1186 = vmul.f32 %v994, %v1080
        %v1187 = vmul.f32 %v995, %v1080
        %v1188 = vmul.f32 %v996, %v1080
        %v1189 = vmul.f32 %v997, %v1080
        %v1190 = vmul.f32 %v998, %v1084
        %v1191 = vmul.f32 %v999, %v1084
        %v1192 = vmul.f32 %v1000, %v1084
        %v1193 = vmul.f32 %v1001, %v1084
        %v1194 = vmul.f32 %v1002, %v1084
        %v1195 = vmul.f32 %v1003, %v1084
        %v1196 = vmul.f32 %v1004, %v1084
        %v1197 = vmul.f32 %v1005, %v1084
        %v1198 = vmul.f32 %v1006, %v1088
        %v1199 = vmul.f32 %v1007, %v1088
        %v1200 = vmul.f32 %v1008, %v1088
        %v1201 = vmul.f32 %v1009, %v1088
        %v1202 = vmul.f32 %v1010, %v1088
        %v1203 = vmul.f32 %v1011, %v1088
        %v1204 = vmul.f32 %v1012, %v1088
        %v1205 = vmul.f32 %v1013, %v1088
        %v1206 = vmul.f32 %v1014, %v1092
        %v1207 = vmul.f32 %v1015, %v1092
        %v1208 = vmul.f32 %v1016, %v1092
        %v1209 = vmul.f32 %v1017, %v1092
        %v1210 = vmul.f32 %v1018, %v1092
        %v1211 = vmul.f32 %v1019, %v1092
        %v1212 = vmul.f32 %v1020, %v1092
        %v1213 = vmul.f32 %v1021, %v1092
        %v1214 = vmul.f32 %v1022, %v1096
        %v1215 = vmul.f32 %v1023, %v1096
        %v1216 = vmul.f32 %v1024, %v1096
        %v1217 = vmul.f32 %v1025, %v1096
        %v1218 = vmul.f32 %v1026, %v1096
        %v1219 = vmul.f32 %v1027, %v1096
        %v1220 = vmul.f32 %v1028, %v1096
        %v1221 = vmul.f32 %v1029, %v1096
        %v1222 = vmul.f32 %v1030, %v1100
        %v1223 = vmul.f32 %v1031, %v1100
        %v1224 = vmul.f32 %v1032, %v1100
        %v1225 = vmul.f32 %v1033, %v1100
        %v1226 = vmul.f32 %v1034, %v1100
        %v1227 = vmul.f32 %v1035, %v1100
        %v1228 = vmul.f32 %v1036, %v1100
        %v1229 = vmul.f32 %v1037, %v1100
        %v1230 = vadd.f32 %v718, %v1102
        %v1231 = vadd.f32 %v719, %v1103
        %v1232 = vadd.f32 %v720, %v1104
        %v1233 = vadd.f32 %v721, %v1105
        %v1234 = vadd.f32 %v722, %v1106
        %v1235 = vadd.f32 %v723, %v1107
        %v1236 = vadd.f32 %v724, %v1108
        %v1237 = vadd.f32 %v725, %v1109
        %v1238 = vadd.f32 %v726, %v1110
        %v1239 = vadd.f32 %v727, %v1111
        %v1240 = vadd.f32 %v728, %v1112
        %v1241 = vadd.f32 %v729, %v1113
        %v1242 = vadd.f32 %v730, %v1114
        %v1243 = vadd.f32 %v731, %v1115
        %v1244 = vadd.f32 %v732, %v1116
        %v1245 = vadd.f32 %v733, %v1117
        %v1246 = vadd.f32 %v734, %v1118
        %v1247 = vadd.f32 %v735, %v1119
        %v1248 = vadd.f32 %v736, %v1120
        %v1249 = vadd.f32 %v737, %v1121
        %v1250 = vadd.f32 %v738, %v1122
        %v1251 = vadd.f32 %v739, %v1123
        %v1252 = vadd.f32 %v740, %v1124
        %v1253 = vadd.f32 %v741, %v1125
        %v1254 = vadd.f32 %v742, %v1126
        %v1255 = vadd.f32 %v743, %v1127
        %v1256 = vadd.f32 %v744, %v1128
        %v1257 = vadd.f32 %v745, %v1129
        %v1258 = vadd.f32 %v746, %v1130
        %v1259 = vadd.f32 %v747, %v1131
        %v1260 = vadd.f32 %v748, %v1132
        %v1261 = vadd.f32 %v749, %v1133
        %v1262 = vadd.f32 %v750, %v1134
        %v1263 = vadd.f32 %v751, %v1135
        %v1264 = vadd.f32 %v752, %v1136
        %v1265 = vadd.f32 %v753, %v1137
        %v1266 = vadd.f32 %v754, %v1138
        %v1267 = vadd.f32 %v755, %v1139
        %v1268 = vadd.f32 %v756, %v1140
        %v1269 = vadd.f32 %v757, %v1141
        %v1270 = vadd.f32 %v758, %v1142
        %v1271 = vadd.f32 %v759, %v1143
        %v1272 = vadd.f32 %v760, %v1144
        %v1273 = vadd.f32 %v761, %v1145
        %v1274 = vadd.f32 %v762, %v1146
        %v1275 = vadd.f32 %v763, %v1147
        %v1276 = vadd.f32 %v764, %v1148
        %v1277 = vadd.f32 %v765, %v1149
        %v1278 = vadd.f32 %v766, %v1150
        %v1279 = vadd.f32 %v767, %v1151
        %v1280 = vadd.f32 %v768, %v1152
        %v1281 = vadd.f32 %v769, %v1153
        %v1282 = vadd.f32 %v770, %v1154
        %v1283 = vadd.f32 %v771, %v1155
        %v1284 = vadd.f32 %v772, %v1156
        %v1285 = vadd.f32 %v773, %v1157
        %v1286 = vadd.f32 %v774, %v1158
        %v1287 = vadd.f32 %v775, %v1159
        %v1288 = vadd.f32 %v776, %v1160
        %v1289 = vadd.f32 %v777, %v1161
        %v1290 = vadd.f32 %v778, %v1162
        %v1291 = vadd.f32 %v779, %v1163
        %v1292 = vadd.f32 %v780, %v1164
        %v1293 = vadd.f32 %v781, %v1165
        %v1294 = vadd.f32 %v782, %v1166
        %v1295 = vadd.f32 %v783, %v1167
        %v1296 = vadd.f32 %v784, %v1168
        %v1297 = vadd.f32 %v785, %v1169
        %v1298 = vadd.f32 %v786, %v1170
        %v1299 = vadd.f32 %v787, %v1171
        %v1300 = vadd.f32 %v788, %v1172
        %v1301 = vadd.f32 %v789, %v1173
        %v1302 = vadd.f32 %v790, %v1174
        %v1303 = vadd.f32 %v791, %v1175
        %v1304 = vadd.f32 %v792, %v1176
        %v1305 = vadd.f32 %v793, %v1177
        %v1306 = vadd.f32 %v794, %v1178
        %v1307 = vadd.f32 %v795, %v1179
        %v1308 = vadd.f32 %v796, %v1180
        %v1309 = vadd.f32 %v797, %v1181
        %v1310 = vadd.f32 %v798, %v1182
        %v1311 = vadd.f32 %v799, %v1183
        %v1312 = vadd.f32 %v800, %v1184
        %v1313 = vadd.f32 %v801, %v1185
        %v1314 = vadd.f32 %v802, %v1186
        %v1315 = vadd.f32 %v803, %v1187
        %v1316 = vadd.f32 %v804, %v1188
        %v1317 = vadd.f32 %v805, %v1189
        %v1318 = vadd.f32 %v806, %v1190
        %v1319 = vadd.f32 %v807, %v1191
        %v1320 = vadd.f32 %v808, %v1192
        %v1321 = vadd.f32 %v809, %v1193
        %v1322 = vadd.f32 %v810, %v1194
        %v1323 = vadd.f32 %v811, %v1195
        %v1324 = vadd.f32 %v812, %v1196
        %v1325 = vadd.f32 %v813, %v1197
        %v1326 = vadd.f32 %v814, %v1198
        %v1327 = vadd.f32 %v815, %v1199
        %v1328 = vadd.f32 %v816, %v1200
        %v1329 = vadd.f32 %v817, %v1201
        %v1330 = vadd.f32 %v818, %v1202
        %v1331 = vadd.f32 %v819, %v1203
        %v1332 = vadd.f32 %v820, %v1204
        %v1333 = vadd.f32 %v821, %v1205
        %v1334 = vadd.f32 %v822, %v1206
        %v1335 = vadd.f32 %v823, %v1207
        %v1336 = vadd.f32 %v824, %v1208
        %v1337 = vadd.f32 %v825, %v1209
        %v1338 = vadd.f32 %v826, %v1210
        %v1339 = vadd.f32 %v827, %v1211
        %v1340 = vadd.f32 %v828, %v1212
        %v1341 = vadd.f32 %v829, %v1213
        %v1342 = vadd.f32 %v830, %v1214
        %v1343 = vadd.f32 %v831, %v1215
        %v1344 = vadd.f32 %v832, %v1216
        %v1345 = vadd.f32 %v833, %v1217
        %v1346 = vadd.f32 %v834, %v1218
        %v1347 = vadd.f32 %v835, %v1219
        %v1348 = vadd.f32 %v836, %v1220
        %v1349 = vadd.f32 %v837, %v1221
        %v1350 = vadd.f32 %v838, %v1222
        %v1351 = vadd.f32 %v839, %v1223
        %v1352 = vadd.f32 %v840, %v1224
        %v1353 = vadd.f32 %v841, %v1225
        %v1354 = vadd.f32 %v842, %v1226
        %v1355 = vadd.f32 %v843, %v1227
        %v1356 = vadd.f32 %v844, %v1228
        %v1357 = vadd.f32 %v845, %v1229
        %v1358 = vpack.c.bf16 %v1238, %v1230
        %v1359 = vpack.c.bf16 %v1239, %v1231
        %v1360 = vpack.c.bf16 %v1240, %v1232
        %v1361 = vpack.c.bf16 %v1241, %v1233
        %v1362 = vpack.c.bf16 %v1242, %v1234
        %v1363 = vpack.c.bf16 %v1243, %v1235
        %v1364 = vpack.c.bf16 %v1244, %v1236
        %v1365 = vpack.c.bf16 %v1245, %v1237
        %v1366 = vpack.c.bf16 %v1254, %v1246
        %v1367 = vpack.c.bf16 %v1255, %v1247
        %v1368 = vpack.c.bf16 %v1256, %v1248
        %v1369 = vpack.c.bf16 %v1257, %v1249
        %v1370 = vpack.c.bf16 %v1258, %v1250
        %v1371 = vpack.c.bf16 %v1259, %v1251
        %v1372 = vpack.c.bf16 %v1260, %v1252
        %v1373 = vpack.c.bf16 %v1261, %v1253
        %v1374 = vpack.c.bf16 %v1270, %v1262
        %v1375 = vpack.c.bf16 %v1271, %v1263
        %v1376 = vpack.c.bf16 %v1272, %v1264
        %v1377 = vpack.c.bf16 %v1273, %v1265
        %v1378 = vpack.c.bf16 %v1274, %v1266
        %v1379 = vpack.c.bf16 %v1275, %v1267
        %v1380 = vpack.c.bf16 %v1276, %v1268
        %v1381 = vpack.c.bf16 %v1277, %v1269
        %v1382 = vpack.c.bf16 %v1286, %v1278
        %v1383 = vpack.c.bf16 %v1287, %v1279
        %v1384 = vpack.c.bf16 %v1288, %v1280
        %v1385 = vpack.c.bf16 %v1289, %v1281
        %v1386 = vpack.c.bf16 %v1290, %v1282
        %v1387 = vpack.c.bf16 %v1291, %v1283
        %v1388 = vpack.c.bf16 %v1292, %v1284
        %v1389 = vpack.c.bf16 %v1293, %v1285
        %v1390 = vpack.c.bf16 %v1302, %v1294
        %v1391 = vpack.c.bf16 %v1303, %v1295
        %v1392 = vpack.c.bf16 %v1304, %v1296
        %v1393 = vpack.c.bf16 %v1305, %v1297
        %v1394 = vpack.c.bf16 %v1306, %v1298
        %v1395 = vpack.c.bf16 %v1307, %v1299
        %v1396 = vpack.c.bf16 %v1308, %v1300
        %v1397 = vpack.c.bf16 %v1309, %v1301
        %v1398 = vpack.c.bf16 %v1318, %v1310
        %v1399 = vpack.c.bf16 %v1319, %v1311
        %v1400 = vpack.c.bf16 %v1320, %v1312
        %v1401 = vpack.c.bf16 %v1321, %v1313
        %v1402 = vpack.c.bf16 %v1322, %v1314
        %v1403 = vpack.c.bf16 %v1323, %v1315
        %v1404 = vpack.c.bf16 %v1324, %v1316
        %v1405 = vpack.c.bf16 %v1325, %v1317
        %v1406 = vpack.c.bf16 %v1334, %v1326
        %v1407 = vpack.c.bf16 %v1335, %v1327
        %v1408 = vpack.c.bf16 %v1336, %v1328
        %v1409 = vpack.c.bf16 %v1337, %v1329
        %v1410 = vpack.c.bf16 %v1338, %v1330
        %v1411 = vpack.c.bf16 %v1339, %v1331
        %v1412 = vpack.c.bf16 %v1340, %v1332
        %v1413 = vpack.c.bf16 %v1341, %v1333
        %v1414 = vpack.c.bf16 %v1350, %v1342
        %v1415 = vpack.c.bf16 %v1351, %v1343
        %v1416 = vpack.c.bf16 %v1352, %v1344
        %v1417 = vpack.c.bf16 %v1353, %v1345
        %v1418 = vpack.c.bf16 %v1354, %v1346
        %v1419 = vpack.c.bf16 %v1355, %v1347
        %v1420 = vpack.c.bf16 %v1356, %v1348
        %v1421 = vpack.c.bf16 %v1357, %v1349
        %v1422 = vld [vmem:[#allocation6] sm:$0xf]
        %v1423 = vld [vmem:[#allocation6 + $0x4] sm:$0xf]
        %v1424 = vld [vmem:[#allocation6 + $0x8] sm:$0xf]
        %v1425 = vld [vmem:[#allocation6 + $0xc] sm:$0xf]
        %v1426 = vld [vmem:[#allocation6 + $0x10] sm:$0xf]
        %v1427 = vld [vmem:[#allocation6 + $0x14] sm:$0xf]
        %v1428 = vld [vmem:[#allocation6 + $0x18] sm:$0xf]
        %v1429 = vld [vmem:[#allocation6 + $0x1c] sm:$0xf]
        %v1430 = vld [vmem:[#allocation6 + $0x20] sm:$0xf]
        %v1431 = vld [vmem:[#allocation6 + $0x24] sm:$0xf]
        %v1432 = vld [vmem:[#allocation6 + $0x28] sm:$0xf]
        %v1433 = vld [vmem:[#allocation6 + $0x2c] sm:$0xf]
        %v1434 = vld [vmem:[#allocation6 + $0x30] sm:$0xf]
        %v1435 = vld [vmem:[#allocation6 + $0x34] sm:$0xf]
        %v1436 = vld [vmem:[#allocation6 + $0x38] sm:$0xf]
        %v1437 = vld [vmem:[#allocation6 + $0x3c] sm:$0xf]
        %v1438 = vld [vmem:[#allocation6 + $0x40] sm:$0xf]
        %v1439 = vld [vmem:[#allocation6 + $0x44] sm:$0xf]
        %v1440 = vld [vmem:[#allocation6 + $0x48] sm:$0xf]
        %v1441 = vld [vmem:[#allocation6 + $0x4c] sm:$0xf]
        %v1442 = vld [vmem:[#allocation6 + $0x50] sm:$0xf]
        %v1443 = vld [vmem:[#allocation6 + $0x54] sm:$0xf]
        %v1444 = vld [vmem:[#allocation6 + $0x58] sm:$0xf]
        %v1445 = vld [vmem:[#allocation6 + $0x5c] sm:$0xf]
        %v1446 = vld [vmem:[#allocation6 + $0x60] sm:$0xf]
        %v1447 = vld [vmem:[#allocation6 + $0x64] sm:$0xf]
        %v1448 = vld [vmem:[#allocation6 + $0x68] sm:$0xf]
        %v1449 = vld [vmem:[#allocation6 + $0x6c] sm:$0xf]
        %v1450 = vld [vmem:[#allocation6 + $0x70] sm:$0xf]
        %v1451 = vld [vmem:[#allocation6 + $0x74] sm:$0xf]
        %v1452 = vld [vmem:[#allocation6 + $0x78] sm:$0xf]
        %v1453 = vld [vmem:[#allocation6 + $0x7c] sm:$0xf]
        %v1454 = vld [vmem:[#allocation6 + $0x80] sm:$0xf]
        %v1455 = vld [vmem:[#allocation6 + $0x84] sm:$0xf]
        %v1456 = vld [vmem:[#allocation6 + $0x88] sm:$0xf]
        %v1457 = vld [vmem:[#allocation6 + $0x8c] sm:$0xf]
        %v1458 = vld [vmem:[#allocation6 + $0x90] sm:$0xf]
        %v1459 = vld [vmem:[#allocation6 + $0x94] sm:$0xf]
        %v1460 = vld [vmem:[#allocation6 + $0x98] sm:$0xf]
        %v1461 = vld [vmem:[#allocation6 + $0x9c] sm:$0xf]
        %v1462 = vld [vmem:[#allocation6 + $0xa0] sm:$0xf]
        %v1463 = vld [vmem:[#allocation6 + $0xa4] sm:$0xf]
        %v1464 = vld [vmem:[#allocation6 + $0xa8] sm:$0xf]
        %v1465 = vld [vmem:[#allocation6 + $0xac] sm:$0xf]
        %v1466 = vld [vmem:[#allocation6 + $0xb0] sm:$0xf]
        %v1467 = vld [vmem:[#allocation6 + $0xb4] sm:$0xf]
        %v1468 = vld [vmem:[#allocation6 + $0xb8] sm:$0xf]
        %v1469 = vld [vmem:[#allocation6 + $0xbc] sm:$0xf]
        %v1470 = vld [vmem:[#allocation6 + $0xc0] sm:$0xf]
        %v1471 = vld [vmem:[#allocation6 + $0xc4] sm:$0xf]
        %v1472 = vld [vmem:[#allocation6 + $0xc8] sm:$0xf]
        %v1473 = vld [vmem:[#allocation6 + $0xcc] sm:$0xf]
        %v1474 = vld [vmem:[#allocation6 + $0xd0] sm:$0xf]
        %v1475 = vld [vmem:[#allocation6 + $0xd4] sm:$0xf]
        %v1476 = vld [vmem:[#allocation6 + $0xd8] sm:$0xf]
        %v1477 = vld [vmem:[#allocation6 + $0xdc] sm:$0xf]
        %v1478 = vld [vmem:[#allocation6 + $0xe0] sm:$0xf]
        %v1479 = vld [vmem:[#allocation6 + $0xe4] sm:$0xf]
        %v1480 = vld [vmem:[#allocation6 + $0xe8] sm:$0xf]
        %v1481 = vld [vmem:[#allocation6 + $0xec] sm:$0xf]
        %v1482 = vld [vmem:[#allocation6 + $0xf0] sm:$0xf]
        %v1483 = vld [vmem:[#allocation6 + $0xf4] sm:$0xf]
        %v1484 = vld [vmem:[#allocation6 + $0xf8] sm:$0xf]
        %v1485 = vld [vmem:[#allocation6 + $0xfc] sm:$0xf]
        %v1486 = vld [vmem:[#allocation6 + $0x100] sm:$0xf]
        %v1487 = vld [vmem:[#allocation6 + $0x104] sm:$0xf]
        %v1488 = vld [vmem:[#allocation6 + $0x108] sm:$0xf]
        %v1489 = vld [vmem:[#allocation6 + $0x10c] sm:$0xf]
        %v1490 = vld [vmem:[#allocation6 + $0x110] sm:$0xf]
        %v1491 = vld [vmem:[#allocation6 + $0x114] sm:$0xf]
        %v1492 = vld [vmem:[#allocation6 + $0x118] sm:$0xf]
        %v1493 = vld [vmem:[#allocation6 + $0x11c] sm:$0xf]
        %v1494 = vld [vmem:[#allocation6 + $0x120] sm:$0xf]
        %v1495 = vld [vmem:[#allocation6 + $0x124] sm:$0xf]
        %v1496 = vld [vmem:[#allocation6 + $0x128] sm:$0xf]
        %v1497 = vld [vmem:[#allocation6 + $0x12c] sm:$0xf]
        %v1498 = vld [vmem:[#allocation6 + $0x130] sm:$0xf]
        %v1499 = vld [vmem:[#allocation6 + $0x134] sm:$0xf]
        %v1500 = vld [vmem:[#allocation6 + $0x138] sm:$0xf]
        %v1501 = vld [vmem:[#allocation6 + $0x13c] sm:$0xf]
        %v1502 = vld [vmem:[#allocation6 + $0x140] sm:$0xf]
        %v1503 = vld [vmem:[#allocation6 + $0x144] sm:$0xf]
        %v1504 = vld [vmem:[#allocation6 + $0x148] sm:$0xf]
        %v1505 = vld [vmem:[#allocation6 + $0x14c] sm:$0xf]
        %v1506 = vld [vmem:[#allocation6 + $0x150] sm:$0xf]
        %v1507 = vld [vmem:[#allocation6 + $0x154] sm:$0xf]
        %v1508 = vld [vmem:[#allocation6 + $0x158] sm:$0xf]
        %v1509 = vld [vmem:[#allocation6 + $0x15c] sm:$0xf]
        %v1510 = vld [vmem:[#allocation6 + $0x160] sm:$0xf]
        %v1511 = vld [vmem:[#allocation6 + $0x164] sm:$0xf]
        %v1512 = vld [vmem:[#allocation6 + $0x168] sm:$0xf]
        %v1513 = vld [vmem:[#allocation6 + $0x16c] sm:$0xf]
        %v1514 = vld [vmem:[#allocation6 + $0x170] sm:$0xf]
        %v1515 = vld [vmem:[#allocation6 + $0x174] sm:$0xf]
        %v1516 = vld [vmem:[#allocation6 + $0x178] sm:$0xf]
        %v1517 = vld [vmem:[#allocation6 + $0x17c] sm:$0xf]
        %v1518 = vld [vmem:[#allocation6 + $0x180] sm:$0xf]
        %v1519 = vld [vmem:[#allocation6 + $0x184] sm:$0xf]
        %v1520 = vld [vmem:[#allocation6 + $0x188] sm:$0xf]
        %v1521 = vld [vmem:[#allocation6 + $0x18c] sm:$0xf]
        %v1522 = vld [vmem:[#allocation6 + $0x190] sm:$0xf]
        %v1523 = vld [vmem:[#allocation6 + $0x194] sm:$0xf]
        %v1524 = vld [vmem:[#allocation6 + $0x198] sm:$0xf]
        %v1525 = vld [vmem:[#allocation6 + $0x19c] sm:$0xf]
        %v1526 = vld [vmem:[#allocation6 + $0x1a0] sm:$0xf]
        %v1527 = vld [vmem:[#allocation6 + $0x1a4] sm:$0xf]
        %v1528 = vld [vmem:[#allocation6 + $0x1a8] sm:$0xf]
        %v1529 = vld [vmem:[#allocation6 + $0x1ac] sm:$0xf]
        %v1530 = vld [vmem:[#allocation6 + $0x1b0] sm:$0xf]
        %v1531 = vld [vmem:[#allocation6 + $0x1b4] sm:$0xf]
        %v1532 = vld [vmem:[#allocation6 + $0x1b8] sm:$0xf]
        %v1533 = vld [vmem:[#allocation6 + $0x1bc] sm:$0xf]
        %v1534 = vld [vmem:[#allocation6 + $0x1c0] sm:$0xf]
        %v1535 = vld [vmem:[#allocation6 + $0x1c4] sm:$0xf]
        %v1536 = vld [vmem:[#allocation6 + $0x1c8] sm:$0xf]
        %v1537 = vld [vmem:[#allocation6 + $0x1cc] sm:$0xf]
        %v1538 = vld [vmem:[#allocation6 + $0x1d0] sm:$0xf]
        %v1539 = vld [vmem:[#allocation6 + $0x1d4] sm:$0xf]
        %v1540 = vld [vmem:[#allocation6 + $0x1d8] sm:$0xf]
        %v1541 = vld [vmem:[#allocation6 + $0x1dc] sm:$0xf]
        %v1542 = vld [vmem:[#allocation6 + $0x1e0] sm:$0xf]
        %v1543 = vld [vmem:[#allocation6 + $0x1e4] sm:$0xf]
        %v1544 = vld [vmem:[#allocation6 + $0x1e8] sm:$0xf]
        %v1545 = vld [vmem:[#allocation6 + $0x1ec] sm:$0xf]
        %v1546 = vld [vmem:[#allocation6 + $0x1f0] sm:$0xf]
        %v1547 = vld [vmem:[#allocation6 + $0x1f4] sm:$0xf]
        %v1548 = vld [vmem:[#allocation6 + $0x1f8] sm:$0xf]
        %v1549 = vld [vmem:[#allocation6 + $0x1fc] sm:$0xf]
        %v1550 = vld [vmem:[%s5] sm:$0x1]
        %1551 = vset.pattern.permute.xlu0 0
        %1552 = vperm.xlu0 %1551, %v430
        %v1553 = vpop.permute.xlu0 %1552
        %1555 = vset.pattern.permute.xlu0 0
        %1556 = vperm.xlu0 %1555, %v431
        %v1557 = vpop.permute.xlu0 %1556
        %1559 = vset.pattern.permute.xlu0 0
        %1560 = vperm.xlu0 %1559, %v432
        %v1561 = vpop.permute.xlu0 %1560
        %1563 = vset.pattern.permute.xlu0 0
        %1564 = vperm.xlu0 %1563, %v433
        %v1565 = vpop.permute.xlu0 %1564
        %1567 = vset.pattern.permute.xlu0 0
        %1568 = vperm.xlu0 %1567, %v434
        %v1569 = vpop.permute.xlu0 %1568
        %1571 = vset.pattern.permute.xlu0 0
        %1572 = vperm.xlu0 %1571, %v435
        %v1573 = vpop.permute.xlu0 %1572
        %1575 = vset.pattern.permute.xlu0 0
        %1576 = vperm.xlu0 %1575, %v436
        %v1577 = vpop.permute.xlu0 %1576
        %1579 = vset.pattern.permute.xlu0 0
        %1580 = vperm.xlu0 %1579, %v437
        %v1581 = vpop.permute.xlu0 %1580
        %1583 = vset.pattern.permute.xlu0 0
        %1584 = vperm.xlu0 %1583, %v438
        %v1585 = vpop.permute.xlu0 %1584
        %1587 = vset.pattern.permute.xlu0 0
        %1588 = vperm.xlu0 %1587, %v439
        %v1589 = vpop.permute.xlu0 %1588
        %1591 = vset.pattern.permute.xlu0 0
        %1592 = vperm.xlu0 %1591, %v440
        %v1593 = vpop.permute.xlu0 %1592
        %1595 = vset.pattern.permute.xlu0 0
        %1596 = vperm.xlu0 %1595, %v441
        %v1597 = vpop.permute.xlu0 %1596
        %1599 = vset.pattern.permute.xlu0 0
        %1600 = vperm.xlu0 %1599, %v442
        %v1601 = vpop.permute.xlu0 %1600
        %1603 = vset.pattern.permute.xlu0 0
        %1604 = vperm.xlu0 %1603, %v443
        %v1605 = vpop.permute.xlu0 %1604
        %1607 = vset.pattern.permute.xlu0 0
        %1608 = vperm.xlu0 %1607, %v444
        %v1609 = vpop.permute.xlu0 %1608
        %1611 = vset.pattern.permute.xlu0 0
        %1612 = vperm.xlu0 %1611, %v445
        %v1613 = vpop.permute.xlu0 %1612
        %v1616 = vperm.slane %v1550, 0
        %v1618 = vmul.f32 %v1553, %v1616
        %v1619 = vmul.f32 %v1557, %v1616
        %v1620 = vmul.f32 %v1561, %v1616
        %v1621 = vmul.f32 %v1565, %v1616
        %v1622 = vmul.f32 %v1569, %v1616
        %v1623 = vmul.f32 %v1573, %v1616
        %v1624 = vmul.f32 %v1577, %v1616
        %v1625 = vmul.f32 %v1581, %v1616
        %v1626 = vmul.f32 %v1585, %v1616
        %v1627 = vmul.f32 %v1589, %v1616
        %v1628 = vmul.f32 %v1593, %v1616
        %v1629 = vmul.f32 %v1597, %v1616
        %v1630 = vmul.f32 %v1601, %v1616
        %v1631 = vmul.f32 %v1605, %v1616
        %v1632 = vmul.f32 %v1609, %v1616
        %v1633 = vmul.f32 %v1613, %v1616
        %v1762 = vunpack.c.l.b16 %v1422
        %v1763 = vunpack.c.l.b16 %v1423
        %v1764 = vunpack.c.l.b16 %v1424
        %v1765 = vunpack.c.l.b16 %v1425
        %v1766 = vunpack.c.l.b16 %v1426
        %v1767 = vunpack.c.l.b16 %v1427
        %v1768 = vunpack.c.l.b16 %v1428
        %v1769 = vunpack.c.l.b16 %v1429
        %v1770 = vunpack.c.l.b16 %v1430
        %v1771 = vunpack.c.l.b16 %v1431
        %v1772 = vunpack.c.l.b16 %v1432
        %v1773 = vunpack.c.l.b16 %v1433
        %v1774 = vunpack.c.l.b16 %v1434
        %v1775 = vunpack.c.l.b16 %v1435
        %v1776 = vunpack.c.l.b16 %v1436
        %v1777 = vunpack.c.l.b16 %v1437
        %v1778 = vunpack.c.l.b16 %v1438
        %v1779 = vunpack.c.l.b16 %v1439
        %v1780 = vunpack.c.l.b16 %v1440
        %v1781 = vunpack.c.l.b16 %v1441
        %v1782 = vunpack.c.l.b16 %v1442
        %v1783 = vunpack.c.l.b16 %v1443
        %v1784 = vunpack.c.l.b16 %v1444
        %v1785 = vunpack.c.l.b16 %v1445
        %v1786 = vunpack.c.l.b16 %v1446
        %v1787 = vunpack.c.l.b16 %v1447
        %v1788 = vunpack.c.l.b16 %v1448
        %v1789 = vunpack.c.l.b16 %v1449
        %v1790 = vunpack.c.l.b16 %v1450
        %v1791 = vunpack.c.l.b16 %v1451
        %v1792 = vunpack.c.l.b16 %v1452
        %v1793 = vunpack.c.l.b16 %v1453
        %v1794 = vunpack.c.l.b16 %v1454
        %v1795 = vunpack.c.l.b16 %v1455
        %v1796 = vunpack.c.l.b16 %v1456
        %v1797 = vunpack.c.l.b16 %v1457
        %v1798 = vunpack.c.l.b16 %v1458
        %v1799 = vunpack.c.l.b16 %v1459
        %v1800 = vunpack.c.l.b16 %v1460
        %v1801 = vunpack.c.l.b16 %v1461
        %v1802 = vunpack.c.l.b16 %v1462
        %v1803 = vunpack.c.l.b16 %v1463
        %v1804 = vunpack.c.l.b16 %v1464
        %v1805 = vunpack.c.l.b16 %v1465
        %v1806 = vunpack.c.l.b16 %v1466
        %v1807 = vunpack.c.l.b16 %v1467
        %v1808 = vunpack.c.l.b16 %v1468
        %v1809 = vunpack.c.l.b16 %v1469
        %v1810 = vunpack.c.l.b16 %v1470
        %v1811 = vunpack.c.l.b16 %v1471
        %v1812 = vunpack.c.l.b16 %v1472
        %v1813 = vunpack.c.l.b16 %v1473
        %v1814 = vunpack.c.l.b16 %v1474
        %v1815 = vunpack.c.l.b16 %v1475
        %v1816 = vunpack.c.l.b16 %v1476
        %v1817 = vunpack.c.l.b16 %v1477
        %v1818 = vunpack.c.l.b16 %v1478
        %v1819 = vunpack.c.l.b16 %v1479
        %v1820 = vunpack.c.l.b16 %v1480
        %v1821 = vunpack.c.l.b16 %v1481
        %v1822 = vunpack.c.l.b16 %v1482
        %v1823 = vunpack.c.l.b16 %v1483
        %v1824 = vunpack.c.l.b16 %v1484
        %v1825 = vunpack.c.l.b16 %v1485
        %v1826 = vunpack.c.l.b16 %v1486
        %v1827 = vunpack.c.l.b16 %v1487
        %v1828 = vunpack.c.l.b16 %v1488
        %v1829 = vunpack.c.l.b16 %v1489
        %v1830 = vunpack.c.l.b16 %v1490
        %v1831 = vunpack.c.l.b16 %v1491
        %v1832 = vunpack.c.l.b16 %v1492
        %v1833 = vunpack.c.l.b16 %v1493
        %v1834 = vunpack.c.l.b16 %v1494
        %v1835 = vunpack.c.l.b16 %v1495
        %v1836 = vunpack.c.l.b16 %v1496
        %v1837 = vunpack.c.l.b16 %v1497
        %v1838 = vunpack.c.l.b16 %v1498
        %v1839 = vunpack.c.l.b16 %v1499
        %v1840 = vunpack.c.l.b16 %v1500
        %v1841 = vunpack.c.l.b16 %v1501
        %v1842 = vunpack.c.l.b16 %v1502
        %v1843 = vunpack.c.l.b16 %v1503
        %v1844 = vunpack.c.l.b16 %v1504
        %v1845 = vunpack.c.l.b16 %v1505
        %v1846 = vunpack.c.l.b16 %v1506
        %v1847 = vunpack.c.l.b16 %v1507
        %v1848 = vunpack.c.l.b16 %v1508
        %v1849 = vunpack.c.l.b16 %v1509
        %v1850 = vunpack.c.l.b16 %v1510
        %v1851 = vunpack.c.l.b16 %v1511
        %v1852 = vunpack.c.l.b16 %v1512
        %v1853 = vunpack.c.l.b16 %v1513
        %v1854 = vunpack.c.l.b16 %v1514
        %v1855 = vunpack.c.l.b16 %v1515
        %v1856 = vunpack.c.l.b16 %v1516
        %v1857 = vunpack.c.l.b16 %v1517
        %v1858 = vunpack.c.l.b16 %v1518
        %v1859 = vunpack.c.l.b16 %v1519
        %v1860 = vunpack.c.l.b16 %v1520
        %v1861 = vunpack.c.l.b16 %v1521
        %v1862 = vunpack.c.l.b16 %v1522
        %v1863 = vunpack.c.l.b16 %v1523
        %v1864 = vunpack.c.l.b16 %v1524
        %v1865 = vunpack.c.l.b16 %v1525
        %v1866 = vunpack.c.l.b16 %v1526
        %v1867 = vunpack.c.l.b16 %v1527
        %v1868 = vunpack.c.l.b16 %v1528
        %v1869 = vunpack.c.l.b16 %v1529
        %v1870 = vunpack.c.l.b16 %v1530
        %v1871 = vunpack.c.l.b16 %v1531
        %v1872 = vunpack.c.l.b16 %v1532
        %v1873 = vunpack.c.l.b16 %v1533
        %v1874 = vunpack.c.l.b16 %v1534
        %v1875 = vunpack.c.l.b16 %v1535
        %v1876 = vunpack.c.l.b16 %v1536
        %v1877 = vunpack.c.l.b16 %v1537
        %v1878 = vunpack.c.l.b16 %v1538
        %v1879 = vunpack.c.l.b16 %v1539
        %v1880 = vunpack.c.l.b16 %v1540
        %v1881 = vunpack.c.l.b16 %v1541
        %v1882 = vunpack.c.l.b16 %v1542
        %v1883 = vunpack.c.l.b16 %v1543
        %v1884 = vunpack.c.l.b16 %v1544
        %v1885 = vunpack.c.l.b16 %v1545
        %v1886 = vunpack.c.l.b16 %v1546
        %v1887 = vunpack.c.l.b16 %v1547
        %v1888 = vunpack.c.l.b16 %v1548
        %v1889 = vunpack.c.l.b16 %v1549
        %v1890 = vpack.c.b16 %v1763, %v1762
        %v1891 = vpack.c.b16 %v1765, %v1764
        %v1892 = vpack.c.b16 %v1767, %v1766
        %v1893 = vpack.c.b16 %v1769, %v1768
        %v1894 = vpack.c.b16 %v1771, %v1770
        %v1895 = vpack.c.b16 %v1773, %v1772
        %v1896 = vpack.c.b16 %v1775, %v1774
        %v1897 = vpack.c.b16 %v1777, %v1776
        %v1898 = vpack.c.b16 %v1779, %v1778
        %v1899 = vpack.c.b16 %v1781, %v1780
        %v1900 = vpack.c.b16 %v1783, %v1782
        %v1901 = vpack.c.b16 %v1785, %v1784
        %v1902 = vpack.c.b16 %v1787, %v1786
        %v1903 = vpack.c.b16 %v1789, %v1788
        %v1904 = vpack.c.b16 %v1791, %v1790
        %v1905 = vpack.c.b16 %v1793, %v1792
        %v1906 = vpack.c.b16 %v1795, %v1794
        %v1907 = vpack.c.b16 %v1797, %v1796
        %v1908 = vpack.c.b16 %v1799, %v1798
        %v1909 = vpack.c.b16 %v1801, %v1800
        %v1910 = vpack.c.b16 %v1803, %v1802
        %v1911 = vpack.c.b16 %v1805, %v1804
        %v1912 = vpack.c.b16 %v1807, %v1806
        %v1913 = vpack.c.b16 %v1809, %v1808
        %v1914 = vpack.c.b16 %v1811, %v1810
        %v1915 = vpack.c.b16 %v1813, %v1812
        %v1916 = vpack.c.b16 %v1815, %v1814
        %v1917 = vpack.c.b16 %v1817, %v1816
        %v1918 = vpack.c.b16 %v1819, %v1818
        %v1919 = vpack.c.b16 %v1821, %v1820
        %v1920 = vpack.c.b16 %v1823, %v1822
        %v1921 = vpack.c.b16 %v1825, %v1824
        %v1922 = vpack.c.b16 %v1827, %v1826
        %v1923 = vpack.c.b16 %v1829, %v1828
        %v1924 = vpack.c.b16 %v1831, %v1830
        %v1925 = vpack.c.b16 %v1833, %v1832
        %v1926 = vpack.c.b16 %v1835, %v1834
        %v1927 = vpack.c.b16 %v1837, %v1836
        %v1928 = vpack.c.b16 %v1839, %v1838
        %v1929 = vpack.c.b16 %v1841, %v1840
        %v1930 = vpack.c.b16 %v1843, %v1842
        %v1931 = vpack.c.b16 %v1845, %v1844
        %v1932 = vpack.c.b16 %v1847, %v1846
        %v1933 = vpack.c.b16 %v1849, %v1848
        %v1934 = vpack.c.b16 %v1851, %v1850
        %v1935 = vpack.c.b16 %v1853, %v1852
        %v1936 = vpack.c.b16 %v1855, %v1854
        %v1937 = vpack.c.b16 %v1857, %v1856
        %v1938 = vpack.c.b16 %v1859, %v1858
        %v1939 = vpack.c.b16 %v1861, %v1860
        %v1940 = vpack.c.b16 %v1863, %v1862
        %v1941 = vpack.c.b16 %v1865, %v1864
        %v1942 = vpack.c.b16 %v1867, %v1866
        %v1943 = vpack.c.b16 %v1869, %v1868
        %v1944 = vpack.c.b16 %v1871, %v1870
        %v1945 = vpack.c.b16 %v1873, %v1872
        %v1946 = vpack.c.b16 %v1875, %v1874
        %v1947 = vpack.c.b16 %v1877, %v1876
        %v1948 = vpack.c.b16 %v1879, %v1878
        %v1949 = vpack.c.b16 %v1881, %v1880
        %v1950 = vpack.c.b16 %v1883, %v1882
        %v1951 = vpack.c.b16 %v1885, %v1884
        %v1952 = vpack.c.b16 %v1887, %v1886
        %v1953 = vpack.c.b16 %v1889, %v1888
        %2018 = vmatpush.bf16.msra.mxu0 %v1897
        %2019 = vmatpush.bf16.msra.mxu0 %v1896
        %2020 = vmatpush.bf16.msra.mxu0 %v1895
        %2021 = vmatpush.bf16.msra.mxu0 %v1894
        %2022 = vmatpush.bf16.msra.mxu0 %v1893
        %2023 = vmatpush.bf16.msra.mxu0 %v1892
        %2024 = vmatpush.bf16.msra.mxu0 %v1891
        %2025 = vmatpush.bf16.msra.mxu0 %v1890
        %2026 = vmatmul.bf16.gmra.mxu0 %v1358
        %v2027 = vpop.f32.mrf.mxu0
        %v2028 = vadd.f32 %v1618, %v2027
        %v2029 = vpop.f32.mrf.mxu0
        %v2030 = vadd.f32 %v1619, %v2029
        %2031 = vmatmul.bf16.gmra.mxu0 %v1366
        %v2032 = vpop.f32.mrf.mxu0
        %v2033 = vadd.f32 %v1620, %v2032
        %v2034 = vpop.f32.mrf.mxu0
        %v2035 = vadd.f32 %v1621, %v2034
        %2036 = vmatmul.bf16.gmra.mxu0 %v1374
        %v2037 = vpop.f32.mrf.mxu0
        %v2038 = vadd.f32 %v1622, %v2037
        %v2039 = vpop.f32.mrf.mxu0
        %v2040 = vadd.f32 %v1623, %v2039
        %2041 = vmatmul.bf16.gmra.mxu0 %v1382
        %v2042 = vpop.f32.mrf.mxu0
        %v2043 = vadd.f32 %v1624, %v2042
        %v2044 = vpop.f32.mrf.mxu0
        %v2045 = vadd.f32 %v1625, %v2044
        %2046 = vmatmul.bf16.gmra.mxu0 %v1390
        %v2047 = vpop.f32.mrf.mxu0
        %v2048 = vadd.f32 %v1626, %v2047
        %v2049 = vpop.f32.mrf.mxu0
        %v2050 = vadd.f32 %v1627, %v2049
        %2051 = vmatmul.bf16.gmra.mxu0 %v1398
        %v2052 = vpop.f32.mrf.mxu0
        %v2053 = vadd.f32 %v1628, %v2052
        %v2054 = vpop.f32.mrf.mxu0
        %v2055 = vadd.f32 %v1629, %v2054
        %2056 = vmatmul.bf16.gmra.mxu0 %v1406
        %v2057 = vpop.f32.mrf.mxu0
        %v2058 = vadd.f32 %v1630, %v2057
        %v2059 = vpop.f32.mrf.mxu0
        %v2060 = vadd.f32 %v1631, %v2059
        %2061 = vmatmul.bf16.gmra.mxu0 %v1414
        %v2062 = vpop.f32.mrf.mxu0
        %v2063 = vadd.f32 %v1632, %v2062
        %v2064 = vpop.f32.mrf.mxu0
        %v2065 = vadd.f32 %v1633, %v2064
        %2066 = vdwg.mxu0
        %2067 = vmatpush.bf16.msra.mxu0 %v1905
        %2068 = vmatpush.bf16.msra.mxu0 %v1904
        %2069 = vmatpush.bf16.msra.mxu0 %v1903
        %2070 = vmatpush.bf16.msra.mxu0 %v1902
        %2071 = vmatpush.bf16.msra.mxu0 %v1901
        %2072 = vmatpush.bf16.msra.mxu0 %v1900
        %2073 = vmatpush.bf16.msra.mxu0 %v1899
        %2074 = vmatpush.bf16.msra.mxu0 %v1898
        %2075 = vmatmul.bf16.gmra.mxu0 %v1359
        %v2076 = vpop.f32.mrf.mxu0
        %v2077 = vadd.f32 %v2028, %v2076
        %v2078 = vpop.f32.mrf.mxu0
        %v2079 = vadd.f32 %v2030, %v2078
        %2080 = vmatmul.bf16.gmra.mxu0 %v1367
        %v2081 = vpop.f32.mrf.mxu0
        %v2082 = vadd.f32 %v2033, %v2081
        %v2083 = vpop.f32.mrf.mxu0
        %v2084 = vadd.f32 %v2035, %v2083
        %2085 = vmatmul.bf16.gmra.mxu0 %v1375
        %v2086 = vpop.f32.mrf.mxu0
        %v2087 = vadd.f32 %v2038, %v2086
        %v2088 = vpop.f32.mrf.mxu0
        %v2089 = vadd.f32 %v2040, %v2088
        %2090 = vmatmul.bf16.gmra.mxu0 %v1383
        %v2091 = vpop.f32.mrf.mxu0
        %v2092 = vadd.f32 %v2043, %v2091
        %v2093 = vpop.f32.mrf.mxu0
        %v2094 = vadd.f32 %v2045, %v2093
        %2095 = vmatmul.bf16.gmra.mxu0 %v1391
        %v2096 = vpop.f32.mrf.mxu0
        %v2097 = vadd.f32 %v2048, %v2096
        %v2098 = vpop.f32.mrf.mxu0
        %v2099 = vadd.f32 %v2050, %v2098
        %2100 = vmatmul.bf16.gmra.mxu0 %v1399
        %v2101 = vpop.f32.mrf.mxu0
        %v2102 = vadd.f32 %v2053, %v2101
        %v2103 = vpop.f32.mrf.mxu0
        %v2104 = vadd.f32 %v2055, %v2103
        %2105 = vmatmul.bf16.gmra.mxu0 %v1407
        %v2106 = vpop.f32.mrf.mxu0
        %v2107 = vadd.f32 %v2058, %v2106
        %v2108 = vpop.f32.mrf.mxu0
        %v2109 = vadd.f32 %v2060, %v2108
        %2110 = vmatmul.bf16.gmra.mxu0 %v1415
        %v2111 = vpop.f32.mrf.mxu0
        %v2112 = vadd.f32 %v2063, %v2111
        %v2113 = vpop.f32.mrf.mxu0
        %v2114 = vadd.f32 %v2065, %v2113
        %2115 = vdwg.mxu0
        %2116 = vmatpush.bf16.msra.mxu0 %v1913
        %2117 = vmatpush.bf16.msra.mxu0 %v1912
        %2118 = vmatpush.bf16.msra.mxu0 %v1911
        %2119 = vmatpush.bf16.msra.mxu0 %v1910
        %2120 = vmatpush.bf16.msra.mxu0 %v1909
        %2121 = vmatpush.bf16.msra.mxu0 %v1908
        %2122 = vmatpush.bf16.msra.mxu0 %v1907
        %2123 = vmatpush.bf16.msra.mxu0 %v1906
        %2124 = vmatmul.bf16.gmra.mxu0 %v1360
        %v2125 = vpop.f32.mrf.mxu0
        %v2126 = vadd.f32 %v2077, %v2125
        %v2127 = vpop.f32.mrf.mxu0
        %v2128 = vadd.f32 %v2079, %v2127
        %2129 = vmatmul.bf16.gmra.mxu0 %v1368
        %v2130 = vpop.f32.mrf.mxu0
        %v2131 = vadd.f32 %v2082, %v2130
        %v2132 = vpop.f32.mrf.mxu0
        %v2133 = vadd.f32 %v2084, %v2132
        %2134 = vmatmul.bf16.gmra.mxu0 %v1376
        %v2135 = vpop.f32.mrf.mxu0
        %v2136 = vadd.f32 %v2087, %v2135
        %v2137 = vpop.f32.mrf.mxu0
        %v2138 = vadd.f32 %v2089, %v2137
        %2139 = vmatmul.bf16.gmra.mxu0 %v1384
        %v2140 = vpop.f32.mrf.mxu0
        %v2141 = vadd.f32 %v2092, %v2140
        %v2142 = vpop.f32.mrf.mxu0
        %v2143 = vadd.f32 %v2094, %v2142
        %2144 = vmatmul.bf16.gmra.mxu0 %v1392
        %v2145 = vpop.f32.mrf.mxu0
        %v2146 = vadd.f32 %v2097, %v2145
        %v2147 = vpop.f32.mrf.mxu0
        %v2148 = vadd.f32 %v2099, %v2147
        %2149 = vmatmul.bf16.gmra.mxu0 %v1400
        %v2150 = vpop.f32.mrf.mxu0
        %v2151 = vadd.f32 %v2102, %v2150
        %v2152 = vpop.f32.mrf.mxu0
        %v2153 = vadd.f32 %v2104, %v2152
        %2154 = vmatmul.bf16.gmra.mxu0 %v1408
        %v2155 = vpop.f32.mrf.mxu0
        %v2156 = vadd.f32 %v2107, %v2155
        %v2157 = vpop.f32.mrf.mxu0
        %v2158 = vadd.f32 %v2109, %v2157
        %2159 = vmatmul.bf16.gmra.mxu0 %v1416
        %v2160 = vpop.f32.mrf.mxu0
        %v2161 = vadd.f32 %v2112, %v2160
        %v2162 = vpop.f32.mrf.mxu0
        %v2163 = vadd.f32 %v2114, %v2162
        %2164 = vdwg.mxu0
        %2165 = vmatpush.bf16.msra.mxu0 %v1921
        %2166 = vmatpush.bf16.msra.mxu0 %v1920
        %2167 = vmatpush.bf16.msra.mxu0 %v1919
        %2168 = vmatpush.bf16.msra.mxu0 %v1918
        %2169 = vmatpush.bf16.msra.mxu0 %v1917
        %2170 = vmatpush.bf16.msra.mxu0 %v1916
        %2171 = vmatpush.bf16.msra.mxu0 %v1915
        %2172 = vmatpush.bf16.msra.mxu0 %v1914
        %2173 = vmatmul.bf16.gmra.mxu0 %v1361
        %v2174 = vpop.f32.mrf.mxu0
        %v2175 = vadd.f32 %v2126, %v2174
        %v2176 = vpop.f32.mrf.mxu0
        %v2177 = vadd.f32 %v2128, %v2176
        %2178 = vmatmul.bf16.gmra.mxu0 %v1369
        %v2179 = vpop.f32.mrf.mxu0
        %v2180 = vadd.f32 %v2131, %v2179
        %v2181 = vpop.f32.mrf.mxu0
        %v2182 = vadd.f32 %v2133, %v2181
        %2183 = vmatmul.bf16.gmra.mxu0 %v1377
        %v2184 = vpop.f32.mrf.mxu0
        %v2185 = vadd.f32 %v2136, %v2184
        %v2186 = vpop.f32.mrf.mxu0
        %v2187 = vadd.f32 %v2138, %v2186
        %2188 = vmatmul.bf16.gmra.mxu0 %v1385
        %v2189 = vpop.f32.mrf.mxu0
        %v2190 = vadd.f32 %v2141, %v2189
        %v2191 = vpop.f32.mrf.mxu0
        %v2192 = vadd.f32 %v2143, %v2191
        %2193 = vmatmul.bf16.gmra.mxu0 %v1393
        %v2194 = vpop.f32.mrf.mxu0
        %v2195 = vadd.f32 %v2146, %v2194
        %v2196 = vpop.f32.mrf.mxu0
        %v2197 = vadd.f32 %v2148, %v2196
        %2198 = vmatmul.bf16.gmra.mxu0 %v1401
        %v2199 = vpop.f32.mrf.mxu0
        %v2200 = vadd.f32 %v2151, %v2199
        %v2201 = vpop.f32.mrf.mxu0
        %v2202 = vadd.f32 %v2153, %v2201
        %2203 = vmatmul.bf16.gmra.mxu0 %v1409
        %v2204 = vpop.f32.mrf.mxu0
        %v2205 = vadd.f32 %v2156, %v2204
        %v2206 = vpop.f32.mrf.mxu0
        %v2207 = vadd.f32 %v2158, %v2206
        %2208 = vmatmul.bf16.gmra.mxu0 %v1417
        %v2209 = vpop.f32.mrf.mxu0
        %v2210 = vadd.f32 %v2161, %v2209
        %v2211 = vpop.f32.mrf.mxu0
        %v2212 = vadd.f32 %v2163, %v2211
        %2213 = vdwg.mxu0
        %2214 = vmatpush.bf16.msra.mxu0 %v1929
        %2215 = vmatpush.bf16.msra.mxu0 %v1928
        %2216 = vmatpush.bf16.msra.mxu0 %v1927
        %2217 = vmatpush.bf16.msra.mxu0 %v1926
        %2218 = vmatpush.bf16.msra.mxu0 %v1925
        %2219 = vmatpush.bf16.msra.mxu0 %v1924
        %2220 = vmatpush.bf16.msra.mxu0 %v1923
        %2221 = vmatpush.bf16.msra.mxu0 %v1922
        %2222 = vmatmul.bf16.gmra.mxu0 %v1362
        %v2223 = vpop.f32.mrf.mxu0
        %v2224 = vadd.f32 %v2175, %v2223
        %v2225 = vpop.f32.mrf.mxu0
        %v2226 = vadd.f32 %v2177, %v2225
        %2227 = vmatmul.bf16.gmra.mxu0 %v1370
        %v2228 = vpop.f32.mrf.mxu0
        %v2229 = vadd.f32 %v2180, %v2228
        %v2230 = vpop.f32.mrf.mxu0
        %v2231 = vadd.f32 %v2182, %v2230
        %2232 = vmatmul.bf16.gmra.mxu0 %v1378
        %v2233 = vpop.f32.mrf.mxu0
        %v2234 = vadd.f32 %v2185, %v2233
        %v2235 = vpop.f32.mrf.mxu0
        %v2236 = vadd.f32 %v2187, %v2235
        %2237 = vmatmul.bf16.gmra.mxu0 %v1386
        %v2238 = vpop.f32.mrf.mxu0
        %v2239 = vadd.f32 %v2190, %v2238
        %v2240 = vpop.f32.mrf.mxu0
        %v2241 = vadd.f32 %v2192, %v2240
        %2242 = vmatmul.bf16.gmra.mxu0 %v1394
        %v2243 = vpop.f32.mrf.mxu0
        %v2244 = vadd.f32 %v2195, %v2243
        %v2245 = vpop.f32.mrf.mxu0
        %v2246 = vadd.f32 %v2197, %v2245
        %2247 = vmatmul.bf16.gmra.mxu0 %v1402
        %v2248 = vpop.f32.mrf.mxu0
        %v2249 = vadd.f32 %v2200, %v2248
        %v2250 = vpop.f32.mrf.mxu0
        %v2251 = vadd.f32 %v2202, %v2250
        %2252 = vmatmul.bf16.gmra.mxu0 %v1410
        %v2253 = vpop.f32.mrf.mxu0
        %v2254 = vadd.f32 %v2205, %v2253
        %v2255 = vpop.f32.mrf.mxu0
        %v2256 = vadd.f32 %v2207, %v2255
        %2257 = vmatmul.bf16.gmra.mxu0 %v1418
        %v2258 = vpop.f32.mrf.mxu0
        %v2259 = vadd.f32 %v2210, %v2258
        %v2260 = vpop.f32.mrf.mxu0
        %v2261 = vadd.f32 %v2212, %v2260
        %2262 = vdwg.mxu0
        %2263 = vmatpush.bf16.msra.mxu0 %v1937
        %2264 = vmatpush.bf16.msra.mxu0 %v1936
        %2265 = vmatpush.bf16.msra.mxu0 %v1935
        %2266 = vmatpush.bf16.msra.mxu0 %v1934
        %2267 = vmatpush.bf16.msra.mxu0 %v1933
        %2268 = vmatpush.bf16.msra.mxu0 %v1932
        %2269 = vmatpush.bf16.msra.mxu0 %v1931
        %2270 = vmatpush.bf16.msra.mxu0 %v1930
        %2271 = vmatmul.bf16.gmra.mxu0 %v1363
        %v2272 = vpop.f32.mrf.mxu0
        %v2273 = vadd.f32 %v2224, %v2272
        %v2274 = vpop.f32.mrf.mxu0
        %v2275 = vadd.f32 %v2226, %v2274
        %2276 = vmatmul.bf16.gmra.mxu0 %v1371
        %v2277 = vpop.f32.mrf.mxu0
        %v2278 = vadd.f32 %v2229, %v2277
        %v2279 = vpop.f32.mrf.mxu0
        %v2280 = vadd.f32 %v2231, %v2279
        %2281 = vmatmul.bf16.gmra.mxu0 %v1379
        %v2282 = vpop.f32.mrf.mxu0
        %v2283 = vadd.f32 %v2234, %v2282
        %v2284 = vpop.f32.mrf.mxu0
        %v2285 = vadd.f32 %v2236, %v2284
        %2286 = vmatmul.bf16.gmra.mxu0 %v1387
        %v2287 = vpop.f32.mrf.mxu0
        %v2288 = vadd.f32 %v2239, %v2287
        %v2289 = vpop.f32.mrf.mxu0
        %v2290 = vadd.f32 %v2241, %v2289
        %2291 = vmatmul.bf16.gmra.mxu0 %v1395
        %v2292 = vpop.f32.mrf.mxu0
        %v2293 = vadd.f32 %v2244, %v2292
        %v2294 = vpop.f32.mrf.mxu0
        %v2295 = vadd.f32 %v2246, %v2294
        %2296 = vmatmul.bf16.gmra.mxu0 %v1403
        %v2297 = vpop.f32.mrf.mxu0
        %v2298 = vadd.f32 %v2249, %v2297
        %v2299 = vpop.f32.mrf.mxu0
        %v2300 = vadd.f32 %v2251, %v2299
        %2301 = vmatmul.bf16.gmra.mxu0 %v1411
        %v2302 = vpop.f32.mrf.mxu0
        %v2303 = vadd.f32 %v2254, %v2302
        %v2304 = vpop.f32.mrf.mxu0
        %v2305 = vadd.f32 %v2256, %v2304
        %2306 = vmatmul.bf16.gmra.mxu0 %v1419
        %v2307 = vpop.f32.mrf.mxu0
        %v2308 = vadd.f32 %v2259, %v2307
        %v2309 = vpop.f32.mrf.mxu0
        %v2310 = vadd.f32 %v2261, %v2309
        %2311 = vdwg.mxu0
        %2312 = vmatpush.bf16.msra.mxu0 %v1945
        %2313 = vmatpush.bf16.msra.mxu0 %v1944
        %2314 = vmatpush.bf16.msra.mxu0 %v1943
        %2315 = vmatpush.bf16.msra.mxu0 %v1942
        %2316 = vmatpush.bf16.msra.mxu0 %v1941
        %2317 = vmatpush.bf16.msra.mxu0 %v1940
        %2318 = vmatpush.bf16.msra.mxu0 %v1939
        %2319 = vmatpush.bf16.msra.mxu0 %v1938
        %2320 = vmatmul.bf16.gmra.mxu0 %v1364
        %v2321 = vpop.f32.mrf.mxu0
        %v2322 = vadd.f32 %v2273, %v2321
        %v2323 = vpop.f32.mrf.mxu0
        %v2324 = vadd.f32 %v2275, %v2323
        %2325 = vmatmul.bf16.gmra.mxu0 %v1372
        %v2326 = vpop.f32.mrf.mxu0
        %v2327 = vadd.f32 %v2278, %v2326
        %v2328 = vpop.f32.mrf.mxu0
        %v2329 = vadd.f32 %v2280, %v2328
        %2330 = vmatmul.bf16.gmra.mxu0 %v1380
        %v2331 = vpop.f32.mrf.mxu0
        %v2332 = vadd.f32 %v2283, %v2331
        %v2333 = vpop.f32.mrf.mxu0
        %v2334 = vadd.f32 %v2285, %v2333
        %2335 = vmatmul.bf16.gmra.mxu0 %v1388
        %v2336 = vpop.f32.mrf.mxu0
        %v2337 = vadd.f32 %v2288, %v2336
        %v2338 = vpop.f32.mrf.mxu0
        %v2339 = vadd.f32 %v2290, %v2338
        %2340 = vmatmul.bf16.gmra.mxu0 %v1396
        %v2341 = vpop.f32.mrf.mxu0
        %v2342 = vadd.f32 %v2293, %v2341
        %v2343 = vpop.f32.mrf.mxu0
        %v2344 = vadd.f32 %v2295, %v2343
        %2345 = vmatmul.bf16.gmra.mxu0 %v1404
        %v2346 = vpop.f32.mrf.mxu0
        %v2347 = vadd.f32 %v2298, %v2346
        %v2348 = vpop.f32.mrf.mxu0
        %v2349 = vadd.f32 %v2300, %v2348
        %2350 = vmatmul.bf16.gmra.mxu0 %v1412
        %v2351 = vpop.f32.mrf.mxu0
        %v2352 = vadd.f32 %v2303, %v2351
        %v2353 = vpop.f32.mrf.mxu0
        %v2354 = vadd.f32 %v2305, %v2353
        %2355 = vmatmul.bf16.gmra.mxu0 %v1420
        %v2356 = vpop.f32.mrf.mxu0
        %v2357 = vadd.f32 %v2308, %v2356
        %v2358 = vpop.f32.mrf.mxu0
        %v2359 = vadd.f32 %v2310, %v2358
        %2360 = vdwg.mxu0
        %2361 = vmatpush.bf16.msra.mxu0 %v1953
        %2362 = vmatpush.bf16.msra.mxu0 %v1952
        %2363 = vmatpush.bf16.msra.mxu0 %v1951
        %2364 = vmatpush.bf16.msra.mxu0 %v1950
        %2365 = vmatpush.bf16.msra.mxu0 %v1949
        %2366 = vmatpush.bf16.msra.mxu0 %v1948
        %2367 = vmatpush.bf16.msra.mxu0 %v1947
        %2368 = vmatpush.bf16.msra.mxu0 %v1946
        %2369 = vmatmul.bf16.gmra.mxu0 %v1365
        %v2370 = vpop.f32.mrf.mxu0
        %v2371 = vadd.f32 %v2322, %v2370
        %v2372 = vpop.f32.mrf.mxu0
        %v2373 = vadd.f32 %v2324, %v2372
        %2374 = vmatmul.bf16.gmra.mxu0 %v1373
        %v2375 = vpop.f32.mrf.mxu0
        %v2376 = vadd.f32 %v2327, %v2375
        %v2377 = vpop.f32.mrf.mxu0
        %v2378 = vadd.f32 %v2329, %v2377
        %2379 = vmatmul.bf16.gmra.mxu0 %v1381
        %v2380 = vpop.f32.mrf.mxu0
        %v2381 = vadd.f32 %v2332, %v2380
        %v2382 = vpop.f32.mrf.mxu0
        %v2383 = vadd.f32 %v2334, %v2382
        %2384 = vmatmul.bf16.gmra.mxu0 %v1389
        %v2385 = vpop.f32.mrf.mxu0
        %v2386 = vadd.f32 %v2337, %v2385
        %v2387 = vpop.f32.mrf.mxu0
        %v2388 = vadd.f32 %v2339, %v2387
        %2389 = vmatmul.bf16.gmra.mxu0 %v1397
        %v2390 = vpop.f32.mrf.mxu0
        %v2391 = vadd.f32 %v2342, %v2390
        %v2392 = vpop.f32.mrf.mxu0
        %v2393 = vadd.f32 %v2344, %v2392
        %2394 = vmatmul.bf16.gmra.mxu0 %v1405
        %v2395 = vpop.f32.mrf.mxu0
        %v2396 = vadd.f32 %v2347, %v2395
        %v2397 = vpop.f32.mrf.mxu0
        %v2398 = vadd.f32 %v2349, %v2397
        %2399 = vmatmul.bf16.gmra.mxu0 %v1413
        %v2400 = vpop.f32.mrf.mxu0
        %v2401 = vadd.f32 %v2352, %v2400
        %v2402 = vpop.f32.mrf.mxu0
        %v2403 = vadd.f32 %v2354, %v2402
        %2404 = vmatmul.bf16.gmra.mxu0 %v1421
        %v2405 = vpop.f32.mrf.mxu0
        %v2406 = vadd.f32 %v2357, %v2405
        %v2407 = vpop.f32.mrf.mxu0
        %v2408 = vadd.f32 %v2359, %v2407
        %2409 = vdwg.mxu0
        %v2410 = vld [vmem:[%s4] sm:$0x1]
        %v2412 = vperm.slane %v2410, 0
        %v2414 = vadd.f32 %v2371, %v2412
        %v2415 = vadd.f32 %v2373, %v2412
        %v2416 = vadd.f32 %v2376, %v2412
        %v2417 = vadd.f32 %v2378, %v2412
        %v2418 = vadd.f32 %v2381, %v2412
        %v2419 = vadd.f32 %v2383, %v2412
        %v2420 = vadd.f32 %v2386, %v2412
        %v2421 = vadd.f32 %v2388, %v2412
        %v2422 = vadd.f32 %v2391, %v2412
        %v2423 = vadd.f32 %v2393, %v2412
        %v2424 = vadd.f32 %v2396, %v2412
        %v2425 = vadd.f32 %v2398, %v2412
        %v2426 = vadd.f32 %v2401, %v2412
        %v2427 = vadd.f32 %v2403, %v2412
        %v2428 = vadd.f32 %v2406, %v2412
        %v2429 = vadd.f32 %v2408, %v2412
        %v2430 = vtanh.pop %v2414
        %v2431 = vtanh.pop %v2415
        %v2432 = vtanh.pop %v2416
        %v2433 = vtanh.pop %v2417
        %v2434 = vtanh.pop %v2418
        %v2435 = vtanh.pop %v2419
        %v2436 = vtanh.pop %v2420
        %v2437 = vtanh.pop %v2421
        %v2438 = vtanh.pop %v2422
        %v2439 = vtanh.pop %v2423
        %v2440 = vtanh.pop %v2424
        %v2441 = vtanh.pop %v2425
        %v2442 = vtanh.pop %v2426
        %v2443 = vtanh.pop %v2427
        %v2444 = vtanh.pop %v2428
        %v2445 = vtanh.pop %v2429
        %v2446 = vpack.c.bf16 %v2431, %v2430
        %v2447 = vpack.c.bf16 %v2433, %v2432
        %v2448 = vpack.c.bf16 %v2435, %v2434
        %v2449 = vpack.c.bf16 %v2437, %v2436
        %v2450 = vpack.c.bf16 %v2439, %v2438
        %v2451 = vpack.c.bf16 %v2441, %v2440
        %v2452 = vpack.c.bf16 %v2443, %v2442
        %v2453 = vpack.c.bf16 %v2445, %v2444
        %v2454 = vld [vmem:[#allocation7] sm:$0xff]
        %v2455 = vld [vmem:[#allocation7 + $0x8] sm:$0xff]
        %v2456 = vld [vmem:[#allocation7 + $0x10] sm:$0xff]
        %v2457 = vld [vmem:[#allocation7 + $0x18] sm:$0xff]
        %v2458 = vld [vmem:[#allocation7 + $0x20] sm:$0xff]
        %v2459 = vld [vmem:[#allocation7 + $0x28] sm:$0xff]
        %v2460 = vld [vmem:[#allocation7 + $0x30] sm:$0xff]
        %v2461 = vld [vmem:[#allocation7 + $0x38] sm:$0xff]
        %v2462 = vld [vmem:[#allocation7 + $0x40] sm:$0xff]
        %v2463 = vld [vmem:[#allocation7 + $0x48] sm:$0xff]
        %v2464 = vld [vmem:[#allocation7 + $0x50] sm:$0xff]
        %v2465 = vld [vmem:[#allocation7 + $0x58] sm:$0xff]
        %v2466 = vld [vmem:[#allocation7 + $0x60] sm:$0xff]
        %v2467 = vld [vmem:[#allocation7 + $0x68] sm:$0xff]
        %v2468 = vld [vmem:[#allocation7 + $0x70] sm:$0xff]
        %v2469 = vld [vmem:[#allocation7 + $0x78] sm:$0xff]
        %v2470 = vld [vmem:[#allocation7 + $0x80] sm:$0xff]
        %v2471 = vld [vmem:[#allocation7 + $0x88] sm:$0xff]
        %v2472 = vld [vmem:[#allocation7 + $0x90] sm:$0xff]
        %v2473 = vld [vmem:[#allocation7 + $0x98] sm:$0xff]
        %v2474 = vld [vmem:[#allocation7 + $0xa0] sm:$0xff]
        %v2475 = vld [vmem:[#allocation7 + $0xa8] sm:$0xff]
        %v2476 = vld [vmem:[#allocation7 + $0xb0] sm:$0xff]
        %v2477 = vld [vmem:[#allocation7 + $0xb8] sm:$0xff]
        %v2478 = vld [vmem:[#allocation7 + $0xc0] sm:$0xff]
        %v2479 = vld [vmem:[#allocation7 + $0xc8] sm:$0xff]
        %v2480 = vld [vmem:[#allocation7 + $0xd0] sm:$0xff]
        %v2481 = vld [vmem:[#allocation7 + $0xd8] sm:$0xff]
        %v2482 = vld [vmem:[#allocation7 + $0xe0] sm:$0xff]
        %v2483 = vld [vmem:[#allocation7 + $0xe8] sm:$0xff]
        %v2484 = vld [vmem:[#allocation7 + $0xf0] sm:$0xff]
        %v2485 = vld [vmem:[#allocation7 + $0xf8] sm:$0xff]
        %v2486 = vld [vmem:[#allocation7 + $0x100] sm:$0xff]
        %v2487 = vld [vmem:[#allocation7 + $0x108] sm:$0xff]
        %v2488 = vld [vmem:[#allocation7 + $0x110] sm:$0xff]
        %v2489 = vld [vmem:[#allocation7 + $0x118] sm:$0xff]
        %v2490 = vld [vmem:[#allocation7 + $0x120] sm:$0xff]
        %v2491 = vld [vmem:[#allocation7 + $0x128] sm:$0xff]
        %v2492 = vld [vmem:[#allocation7 + $0x130] sm:$0xff]
        %v2493 = vld [vmem:[#allocation7 + $0x138] sm:$0xff]
        %v2494 = vld [vmem:[#allocation7 + $0x140] sm:$0xff]
        %v2495 = vld [vmem:[#allocation7 + $0x148] sm:$0xff]
        %v2496 = vld [vmem:[#allocation7 + $0x150] sm:$0xff]
        %v2497 = vld [vmem:[#allocation7 + $0x158] sm:$0xff]
        %v2498 = vld [vmem:[#allocation7 + $0x160] sm:$0xff]
        %v2499 = vld [vmem:[#allocation7 + $0x168] sm:$0xff]
        %v2500 = vld [vmem:[#allocation7 + $0x170] sm:$0xff]
        %v2501 = vld [vmem:[#allocation7 + $0x178] sm:$0xff]
        %v2502 = vld [vmem:[#allocation7 + $0x180] sm:$0xff]
        %v2503 = vld [vmem:[#allocation7 + $0x188] sm:$0xff]
        %v2504 = vld [vmem:[#allocation7 + $0x190] sm:$0xff]
        %v2505 = vld [vmem:[#allocation7 + $0x198] sm:$0xff]
        %v2506 = vld [vmem:[#allocation7 + $0x1a0] sm:$0xff]
        %v2507 = vld [vmem:[#allocation7 + $0x1a8] sm:$0xff]
        %v2508 = vld [vmem:[#allocation7 + $0x1b0] sm:$0xff]
        %v2509 = vld [vmem:[#allocation7 + $0x1b8] sm:$0xff]
        %v2510 = vld [vmem:[#allocation7 + $0x1c0] sm:$0xff]
        %v2511 = vld [vmem:[#allocation7 + $0x1c8] sm:$0xff]
        %v2512 = vld [vmem:[#allocation7 + $0x1d0] sm:$0xff]
        %v2513 = vld [vmem:[#allocation7 + $0x1d8] sm:$0xff]
        %v2514 = vld [vmem:[#allocation7 + $0x1e0] sm:$0xff]
        %v2515 = vld [vmem:[#allocation7 + $0x1e8] sm:$0xff]
        %v2516 = vld [vmem:[#allocation7 + $0x1f0] sm:$0xff]
        %v2517 = vld [vmem:[#allocation7 + $0x1f8] sm:$0xff]
        %v2518 = vld [vmem:[%s7] sm:$0xff]
        %v2520 = vperm.slane %v2518, 0
        %v2521 = vperm.slane %v2518, 1
        %v2522 = vperm.slane %v2518, 2
        %v2523 = vperm.slane %v2518, 3
        %v2524 = vperm.slane %v2518, 4
        %v2525 = vperm.slane %v2518, 5
        %v2526 = vperm.slane %v2518, 6
        %v2527 = vperm.slane %v2518, 7
        %v2600 = vunpack.c.l.b16 %v2454
        %v2601 = vunpack.c.h.b16 %v2454
        %v2602 = vunpack.c.l.b16 %v2455
        %v2603 = vunpack.c.h.b16 %v2455
        %v2604 = vunpack.c.l.b16 %v2456
        %v2605 = vunpack.c.h.b16 %v2456
        %v2606 = vunpack.c.l.b16 %v2457
        %v2607 = vunpack.c.h.b16 %v2457
        %v2608 = vunpack.c.l.b16 %v2458
        %v2609 = vunpack.c.h.b16 %v2458
        %v2610 = vunpack.c.l.b16 %v2459
        %v2611 = vunpack.c.h.b16 %v2459
        %v2612 = vunpack.c.l.b16 %v2460
        %v2613 = vunpack.c.h.b16 %v2460
        %v2614 = vunpack.c.l.b16 %v2461
        %v2615 = vunpack.c.h.b16 %v2461
        %v2616 = vunpack.c.l.b16 %v2462
        %v2617 = vunpack.c.h.b16 %v2462
        %v2618 = vunpack.c.l.b16 %v2463
        %v2619 = vunpack.c.h.b16 %v2463
        %v2620 = vunpack.c.l.b16 %v2464
        %v2621 = vunpack.c.h.b16 %v2464
        %v2622 = vunpack.c.l.b16 %v2465
        %v2623 = vunpack.c.h.b16 %v2465
        %v2624 = vunpack.c.l.b16 %v2466
        %v2625 = vunpack.c.h.b16 %v2466
        %v2626 = vunpack.c.l.b16 %v2467
        %v2627 = vunpack.c.h.b16 %v2467
        %v2628 = vunpack.c.l.b16 %v2468
        %v2629 = vunpack.c.h.b16 %v2468
        %v2630 = vunpack.c.l.b16 %v2469
        %v2631 = vunpack.c.h.b16 %v2469
        %v2632 = vunpack.c.l.b16 %v2470
        %v2633 = vunpack.c.h.b16 %v2470
        %v2634 = vunpack.c.l.b16 %v2471
        %v2635 = vunpack.c.h.b16 %v2471
        %v2636 = vunpack.c.l.b16 %v2472
        %v2637 = vunpack.c.h.b16 %v2472
        %v2638 = vunpack.c.l.b16 %v2473
        %v2639 = vunpack.c.h.b16 %v2473
        %v2640 = vunpack.c.l.b16 %v2474
        %v2641 = vunpack.c.h.b16 %v2474
        %v2642 = vunpack.c.l.b16 %v2475
        %v2643 = vunpack.c.h.b16 %v2475
        %v2644 = vunpack.c.l.b16 %v2476
        %v2645 = vunpack.c.h.b16 %v2476
        %v2646 = vunpack.c.l.b16 %v2477
        %v2647 = vunpack.c.h.b16 %v2477
        %v2648 = vunpack.c.l.b16 %v2478
        %v2649 = vunpack.c.h.b16 %v2478
        %v2650 = vunpack.c.l.b16 %v2479
        %v2651 = vunpack.c.h.b16 %v2479
        %v2652 = vunpack.c.l.b16 %v2480
        %v2653 = vunpack.c.h.b16 %v2480
        %v2654 = vunpack.c.l.b16 %v2481
        %v2655 = vunpack.c.h.b16 %v2481
        %v2656 = vunpack.c.l.b16 %v2482
        %v2657 = vunpack.c.h.b16 %v2482
        %v2658 = vunpack.c.l.b16 %v2483
        %v2659 = vunpack.c.h.b16 %v2483
        %v2660 = vunpack.c.l.b16 %v2484
        %v2661 = vunpack.c.h.b16 %v2484
        %v2662 = vunpack.c.l.b16 %v2485
        %v2663 = vunpack.c.h.b16 %v2485
        %v2664 = vunpack.c.l.b16 %v2486
        %v2665 = vunpack.c.h.b16 %v2486
        %v2666 = vunpack.c.l.b16 %v2487
        %v2667 = vunpack.c.h.b16 %v2487
        %v2668 = vunpack.c.l.b16 %v2488
        %v2669 = vunpack.c.h.b16 %v2488
        %v2670 = vunpack.c.l.b16 %v2489
        %v2671 = vunpack.c.h.b16 %v2489
        %v2672 = vunpack.c.l.b16 %v2490
        %v2673 = vunpack.c.h.b16 %v2490
        %v2674 = vunpack.c.l.b16 %v2491
        %v2675 = vunpack.c.h.b16 %v2491
        %v2676 = vunpack.c.l.b16 %v2492
        %v2677 = vunpack.c.h.b16 %v2492
        %v2678 = vunpack.c.l.b16 %v2493
        %v2679 = vunpack.c.h.b16 %v2493
        %v2680 = vunpack.c.l.b16 %v2494
        %v2681 = vunpack.c.h.b16 %v2494
        %v2682 = vunpack.c.l.b16 %v2495
        %v2683 = vunpack.c.h.b16 %v2495
        %v2684 = vunpack.c.l.b16 %v2496
        %v2685 = vunpack.c.h.b16 %v2496
        %v2686 = vunpack.c.l.b16 %v2497
        %v2687 = vunpack.c.h.b16 %v2497
        %v2688 = vunpack.c.l.b16 %v2498
        %v2689 = vunpack.c.h.b16 %v2498
        %v2690 = vunpack.c.l.b16 %v2499
        %v2691 = vunpack.c.h.b16 %v2499
        %v2692 = vunpack.c.l.b16 %v2500
        %v2693 = vunpack.c.h.b16 %v2500
        %v2694 = vunpack.c.l.b16 %v2501
        %v2695 = vunpack.c.h.b16 %v2501
        %v2696 = vunpack.c.l.b16 %v2502
        %v2697 = vunpack.c.h.b16 %v2502
        %v2698 = vunpack.c.l.b16 %v2503
        %v2699 = vunpack.c.h.b16 %v2503
        %v2700 = vunpack.c.l.b16 %v2504
        %v2701 = vunpack.c.h.b16 %v2504
        %v2702 = vunpack.c.l.b16 %v2505
        %v2703 = vunpack.c.h.b16 %v2505
        %v2704 = vunpack.c.l.b16 %v2506
        %v2705 = vunpack.c.h.b16 %v2506
        %v2706 = vunpack.c.l.b16 %v2507
        %v2707 = vunpack.c.h.b16 %v2507
        %v2708 = vunpack.c.l.b16 %v2508
        %v2709 = vunpack.c.h.b16 %v2508
        %v2710 = vunpack.c.l.b16 %v2509
        %v2711 = vunpack.c.h.b16 %v2509
        %v2712 = vunpack.c.l.b16 %v2510
        %v2713 = vunpack.c.h.b16 %v2510
        %v2714 = vunpack.c.l.b16 %v2511
        %v2715 = vunpack.c.h.b16 %v2511
        %v2716 = vunpack.c.l.b16 %v2512
        %v2717 = vunpack.c.h.b16 %v2512
        %v2718 = vunpack.c.l.b16 %v2513
        %v2719 = vunpack.c.h.b16 %v2513
        %v2720 = vunpack.c.l.b16 %v2514
        %v2721 = vunpack.c.h.b16 %v2514
        %v2722 = vunpack.c.l.b16 %v2515
        %v2723 = vunpack.c.h.b16 %v2515
        %v2724 = vunpack.c.l.b16 %v2516
        %v2725 = vunpack.c.h.b16 %v2516
        %v2726 = vunpack.c.l.b16 %v2517
        %v2727 = vunpack.c.h.b16 %v2517
        %v2728 = vpack.c.b16 %v2608, %v2600
        %v2729 = vpack.c.b16 %v2609, %v2601
        %v2730 = vpack.c.b16 %v2610, %v2602
        %v2731 = vpack.c.b16 %v2611, %v2603
        %v2732 = vpack.c.b16 %v2612, %v2604
        %v2733 = vpack.c.b16 %v2613, %v2605
        %v2734 = vpack.c.b16 %v2614, %v2606
        %v2735 = vpack.c.b16 %v2615, %v2607
        %v2736 = vpack.c.b16 %v2624, %v2616
        %v2737 = vpack.c.b16 %v2625, %v2617
        %v2738 = vpack.c.b16 %v2626, %v2618
        %v2739 = vpack.c.b16 %v2627, %v2619
        %v2740 = vpack.c.b16 %v2628, %v2620
        %v2741 = vpack.c.b16 %v2629, %v2621
        %v2742 = vpack.c.b16 %v2630, %v2622
        %v2743 = vpack.c.b16 %v2631, %v2623
        %v2744 = vpack.c.b16 %v2640, %v2632
        %v2745 = vpack.c.b16 %v2641, %v2633
        %v2746 = vpack.c.b16 %v2642, %v2634
        %v2747 = vpack.c.b16 %v2643, %v2635
        %v2748 = vpack.c.b16 %v2644, %v2636
        %v2749 = vpack.c.b16 %v2645, %v2637
        %v2750 = vpack.c.b16 %v2646, %v2638
        %v2751 = vpack.c.b16 %v2647, %v2639
        %v2752 = vpack.c.b16 %v2656, %v2648
        %v2753 = vpack.c.b16 %v2657, %v2649
        %v2754 = vpack.c.b16 %v2658, %v2650
        %v2755 = vpack.c.b16 %v2659, %v2651
        %v2756 = vpack.c.b16 %v2660, %v2652
        %v2757 = vpack.c.b16 %v2661, %v2653
        %v2758 = vpack.c.b16 %v2662, %v2654
        %v2759 = vpack.c.b16 %v2663, %v2655
        %v2760 = vpack.c.b16 %v2672, %v2664
        %v2761 = vpack.c.b16 %v2673, %v2665
        %v2762 = vpack.c.b16 %v2674, %v2666
        %v2763 = vpack.c.b16 %v2675, %v2667
        %v2764 = vpack.c.b16 %v2676, %v2668
        %v2765 = vpack.c.b16 %v2677, %v2669
        %v2766 = vpack.c.b16 %v2678, %v2670
        %v2767 = vpack.c.b16 %v2679, %v2671
        %v2768 = vpack.c.b16 %v2688, %v2680
        %v2769 = vpack.c.b16 %v2689, %v2681
        %v2770 = vpack.c.b16 %v2690, %v2682
        %v2771 = vpack.c.b16 %v2691, %v2683
        %v2772 = vpack.c.b16 %v2692, %v2684
        %v2773 = vpack.c.b16 %v2693, %v2685
        %v2774 = vpack.c.b16 %v2694, %v2686
        %v2775 = vpack.c.b16 %v2695, %v2687
        %v2776 = vpack.c.b16 %v2704, %v2696
        %v2777 = vpack.c.b16 %v2705, %v2697
        %v2778 = vpack.c.b16 %v2706, %v2698
        %v2779 = vpack.c.b16 %v2707, %v2699
        %v2780 = vpack.c.b16 %v2708, %v2700
        %v2781 = vpack.c.b16 %v2709, %v2701
        %v2782 = vpack.c.b16 %v2710, %v2702
        %v2783 = vpack.c.b16 %v2711, %v2703
        %v2784 = vpack.c.b16 %v2720, %v2712
        %v2785 = vpack.c.b16 %v2721, %v2713
        %v2786 = vpack.c.b16 %v2722, %v2714
        %v2787 = vpack.c.b16 %v2723, %v2715
        %v2788 = vpack.c.b16 %v2724, %v2716
        %v2789 = vpack.c.b16 %v2725, %v2717
        %v2790 = vpack.c.b16 %v2726, %v2718
        %v2791 = vpack.c.b16 %v2727, %v2719
        %2856 = vmatpush.bf16.msra.mxu0 %v2784
        %2857 = vmatpush.bf16.msra.mxu0 %v2776
        %2858 = vmatpush.bf16.msra.mxu0 %v2768
        %2859 = vmatpush.bf16.msra.mxu0 %v2760
        %2860 = vmatpush.bf16.msra.mxu0 %v2752
        %2861 = vmatpush.bf16.msra.mxu0 %v2744
        %2862 = vmatpush.bf16.msra.mxu0 %v2736
        %2863 = vmatpush.bf16.msra.mxu0 %v2728
        %2864 = vmatmul.bf16.gmra.mxu0 %v2446
        %v2865 = vpop.f32.mrf.mxu0
        %v2866 = vadd.f32 %v2520, %v2865
        %v2867 = vpop.f32.mrf.mxu0
        %v2868 = vadd.f32 %v2520, %v2867
        %2869 = vmatmul.bf16.gmra.mxu0 %v2447
        %v2870 = vpop.f32.mrf.mxu0
        %v2871 = vadd.f32 %v2520, %v2870
        %v2872 = vpop.f32.mrf.mxu0
        %v2873 = vadd.f32 %v2520, %v2872
        %2874 = vmatmul.bf16.gmra.mxu0 %v2448
        %v2875 = vpop.f32.mrf.mxu0
        %v2876 = vadd.f32 %v2520, %v2875
        %v2877 = vpop.f32.mrf.mxu0
        %v2878 = vadd.f32 %v2520, %v2877
        %2879 = vmatmul.bf16.gmra.mxu0 %v2449
        %v2880 = vpop.f32.mrf.mxu0
        %v2881 = vadd.f32 %v2520, %v2880
        %v2882 = vpop.f32.mrf.mxu0
        %v2883 = vadd.f32 %v2520, %v2882
        %2884 = vmatmul.bf16.gmra.mxu0 %v2450
        %v2885 = vpop.f32.mrf.mxu0
        %v2886 = vadd.f32 %v2520, %v2885
        %v2887 = vpop.f32.mrf.mxu0
        %v2888 = vadd.f32 %v2520, %v2887
        %2889 = vmatmul.bf16.gmra.mxu0 %v2451
        %v2890 = vpop.f32.mrf.mxu0
        %v2891 = vadd.f32 %v2520, %v2890
        %v2892 = vpop.f32.mrf.mxu0
        %v2893 = vadd.f32 %v2520, %v2892
        %2894 = vmatmul.bf16.gmra.mxu0 %v2452
        %v2895 = vpop.f32.mrf.mxu0
        %v2896 = vadd.f32 %v2520, %v2895
        %v2897 = vpop.f32.mrf.mxu0
        %v2898 = vadd.f32 %v2520, %v2897
        %2899 = vmatmul.bf16.gmra.mxu0 %v2453
        %v2900 = vpop.f32.mrf.mxu0
        %v2901 = vadd.f32 %v2520, %v2900
        %v2902 = vpop.f32.mrf.mxu0
        %v2903 = vadd.f32 %v2520, %v2902
        %2904 = vdwg.mxu0
        %2905 = vmatpush.bf16.msra.mxu0 %v2785
        %2906 = vmatpush.bf16.msra.mxu0 %v2777
        %2907 = vmatpush.bf16.msra.mxu0 %v2769
        %2908 = vmatpush.bf16.msra.mxu0 %v2761
        %2909 = vmatpush.bf16.msra.mxu0 %v2753
        %2910 = vmatpush.bf16.msra.mxu0 %v2745
        %2911 = vmatpush.bf16.msra.mxu0 %v2737
        %2912 = vmatpush.bf16.msra.mxu0 %v2729
        %2913 = vmatmul.bf16.gmra.mxu0 %v2446
        %v2914 = vpop.f32.mrf.mxu0
        %v2915 = vadd.f32 %v2521, %v2914
        %v2916 = vpop.f32.mrf.mxu0
        %v2917 = vadd.f32 %v2521, %v2916
        %2918 = vmatmul.bf16.gmra.mxu0 %v2447
        %v2919 = vpop.f32.mrf.mxu0
        %v2920 = vadd.f32 %v2521, %v2919
        %v2921 = vpop.f32.mrf.mxu0
        %v2922 = vadd.f32 %v2521, %v2921
        %2923 = vmatmul.bf16.gmra.mxu0 %v2448
        %v2924 = vpop.f32.mrf.mxu0
        %v2925 = vadd.f32 %v2521, %v2924
        %v2926 = vpop.f32.mrf.mxu0
        %v2927 = vadd.f32 %v2521, %v2926
        %2928 = vmatmul.bf16.gmra.mxu0 %v2449
        %v2929 = vpop.f32.mrf.mxu0
        %v2930 = vadd.f32 %v2521, %v2929
        %v2931 = vpop.f32.mrf.mxu0
        %v2932 = vadd.f32 %v2521, %v2931
        %2933 = vmatmul.bf16.gmra.mxu0 %v2450
        %v2934 = vpop.f32.mrf.mxu0
        %v2935 = vadd.f32 %v2521, %v2934
        %v2936 = vpop.f32.mrf.mxu0
        %v2937 = vadd.f32 %v2521, %v2936
        %2938 = vmatmul.bf16.gmra.mxu0 %v2451
        %v2939 = vpop.f32.mrf.mxu0
        %v2940 = vadd.f32 %v2521, %v2939
        %v2941 = vpop.f32.mrf.mxu0
        %v2942 = vadd.f32 %v2521, %v2941
        %2943 = vmatmul.bf16.gmra.mxu0 %v2452
        %v2944 = vpop.f32.mrf.mxu0
        %v2945 = vadd.f32 %v2521, %v2944
        %v2946 = vpop.f32.mrf.mxu0
        %v2947 = vadd.f32 %v2521, %v2946
        %2948 = vmatmul.bf16.gmra.mxu0 %v2453
        %v2949 = vpop.f32.mrf.mxu0
        %v2950 = vadd.f32 %v2521, %v2949
        %v2951 = vpop.f32.mrf.mxu0
        %v2952 = vadd.f32 %v2521, %v2951
        %2953 = vdwg.mxu0
        %2954 = vmatpush.bf16.msra.mxu0 %v2786
        %2955 = vmatpush.bf16.msra.mxu0 %v2778
        %2956 = vmatpush.bf16.msra.mxu0 %v2770
        %2957 = vmatpush.bf16.msra.mxu0 %v2762
        %2958 = vmatpush.bf16.msra.mxu0 %v2754
        %2959 = vmatpush.bf16.msra.mxu0 %v2746
        %2960 = vmatpush.bf16.msra.mxu0 %v2738
        %2961 = vmatpush.bf16.msra.mxu0 %v2730
        %2962 = vmatmul.bf16.gmra.mxu0 %v2446
        %v2963 = vpop.f32.mrf.mxu0
        %v2964 = vadd.f32 %v2522, %v2963
        %v2965 = vpop.f32.mrf.mxu0
        %v2966 = vadd.f32 %v2522, %v2965
        %2967 = vmatmul.bf16.gmra.mxu0 %v2447
        %v2968 = vpop.f32.mrf.mxu0
        %v2969 = vadd.f32 %v2522, %v2968
        %v2970 = vpop.f32.mrf.mxu0
        %v2971 = vadd.f32 %v2522, %v2970
        %2972 = vmatmul.bf16.gmra.mxu0 %v2448
        %v2973 = vpop.f32.mrf.mxu0
        %v2974 = vadd.f32 %v2522, %v2973
        %v2975 = vpop.f32.mrf.mxu0
        %v2976 = vadd.f32 %v2522, %v2975
        %2977 = vmatmul.bf16.gmra.mxu0 %v2449
        %v2978 = vpop.f32.mrf.mxu0
        %v2979 = vadd.f32 %v2522, %v2978
        %v2980 = vpop.f32.mrf.mxu0
        %v2981 = vadd.f32 %v2522, %v2980
        %2982 = vmatmul.bf16.gmra.mxu0 %v2450
        %v2983 = vpop.f32.mrf.mxu0
        %v2984 = vadd.f32 %v2522, %v2983
        %v2985 = vpop.f32.mrf.mxu0
        %v2986 = vadd.f32 %v2522, %v2985
        %2987 = vmatmul.bf16.gmra.mxu0 %v2451
        %v2988 = vpop.f32.mrf.mxu0
        %v2989 = vadd.f32 %v2522, %v2988
        %v2990 = vpop.f32.mrf.mxu0
        %v2991 = vadd.f32 %v2522, %v2990
        %2992 = vmatmul.bf16.gmra.mxu0 %v2452
        %v2993 = vpop.f32.mrf.mxu0
        %v2994 = vadd.f32 %v2522, %v2993
        %v2995 = vpop.f32.mrf.mxu0
        %v2996 = vadd.f32 %v2522, %v2995
        %2997 = vmatmul.bf16.gmra.mxu0 %v2453
        %v2998 = vpop.f32.mrf.mxu0
        %v2999 = vadd.f32 %v2522, %v2998
        %v3000 = vpop.f32.mrf.mxu0
        %v3001 = vadd.f32 %v2522, %v3000
        %3002 = vdwg.mxu0
        %3003 = vmatpush.bf16.msra.mxu0 %v2787
        %3004 = vmatpush.bf16.msra.mxu0 %v2779
        %3005 = vmatpush.bf16.msra.mxu0 %v2771
        %3006 = vmatpush.bf16.msra.mxu0 %v2763
        %3007 = vmatpush.bf16.msra.mxu0 %v2755
        %3008 = vmatpush.bf16.msra.mxu0 %v2747
        %3009 = vmatpush.bf16.msra.mxu0 %v2739
        %3010 = vmatpush.bf16.msra.mxu0 %v2731
        %3011 = vmatmul.bf16.gmra.mxu0 %v2446
        %v3012 = vpop.f32.mrf.mxu0
        %v3013 = vadd.f32 %v2523, %v3012
        %v3014 = vpop.f32.mrf.mxu0
        %v3015 = vadd.f32 %v2523, %v3014
        %3016 = vmatmul.bf16.gmra.mxu0 %v2447
        %v3017 = vpop.f32.mrf.mxu0
        %v3018 = vadd.f32 %v2523, %v3017
        %v3019 = vpop.f32.mrf.mxu0
        %v3020 = vadd.f32 %v2523, %v3019
        %3021 = vmatmul.bf16.gmra.mxu0 %v2448
        %v3022 = vpop.f32.mrf.mxu0
        %v3023 = vadd.f32 %v2523, %v3022
        %v3024 = vpop.f32.mrf.mxu0
        %v3025 = vadd.f32 %v2523, %v3024
        %3026 = vmatmul.bf16.gmra.mxu0 %v2449
        %v3027 = vpop.f32.mrf.mxu0
        %v3028 = vadd.f32 %v2523, %v3027
        %v3029 = vpop.f32.mrf.mxu0
        %v3030 = vadd.f32 %v2523, %v3029
        %3031 = vmatmul.bf16.gmra.mxu0 %v2450
        %v3032 = vpop.f32.mrf.mxu0
        %v3033 = vadd.f32 %v2523, %v3032
        %v3034 = vpop.f32.mrf.mxu0
        %v3035 = vadd.f32 %v2523, %v3034
        %3036 = vmatmul.bf16.gmra.mxu0 %v2451
        %v3037 = vpop.f32.mrf.mxu0
        %v3038 = vadd.f32 %v2523, %v3037
        %v3039 = vpop.f32.mrf.mxu0
        %v3040 = vadd.f32 %v2523, %v3039
        %3041 = vmatmul.bf16.gmra.mxu0 %v2452
        %v3042 = vpop.f32.mrf.mxu0
        %v3043 = vadd.f32 %v2523, %v3042
        %v3044 = vpop.f32.mrf.mxu0
        %v3045 = vadd.f32 %v2523, %v3044
        %3046 = vmatmul.bf16.gmra.mxu0 %v2453
        %v3047 = vpop.f32.mrf.mxu0
        %v3048 = vadd.f32 %v2523, %v3047
        %v3049 = vpop.f32.mrf.mxu0
        %v3050 = vadd.f32 %v2523, %v3049
        %3051 = vdwg.mxu0
        %3052 = vmatpush.bf16.msra.mxu0 %v2788
        %3053 = vmatpush.bf16.msra.mxu0 %v2780
        %3054 = vmatpush.bf16.msra.mxu0 %v2772
        %3055 = vmatpush.bf16.msra.mxu0 %v2764
        %3056 = vmatpush.bf16.msra.mxu0 %v2756
        %3057 = vmatpush.bf16.msra.mxu0 %v2748
        %3058 = vmatpush.bf16.msra.mxu0 %v2740
        %3059 = vmatpush.bf16.msra.mxu0 %v2732
        %3060 = vmatmul.bf16.gmra.mxu0 %v2446
        %v3061 = vpop.f32.mrf.mxu0
        %v3062 = vadd.f32 %v2524, %v3061
        %v3063 = vpop.f32.mrf.mxu0
        %v3064 = vadd.f32 %v2524, %v3063
        %3065 = vmatmul.bf16.gmra.mxu0 %v2447
        %v3066 = vpop.f32.mrf.mxu0
        %v3067 = vadd.f32 %v2524, %v3066
        %v3068 = vpop.f32.mrf.mxu0
        %v3069 = vadd.f32 %v2524, %v3068
        %3070 = vmatmul.bf16.gmra.mxu0 %v2448
        %v3071 = vpop.f32.mrf.mxu0
        %v3072 = vadd.f32 %v2524, %v3071
        %v3073 = vpop.f32.mrf.mxu0
        %v3074 = vadd.f32 %v2524, %v3073
        %3075 = vmatmul.bf16.gmra.mxu0 %v2449
        %v3076 = vpop.f32.mrf.mxu0
        %v3077 = vadd.f32 %v2524, %v3076
        %v3078 = vpop.f32.mrf.mxu0
        %v3079 = vadd.f32 %v2524, %v3078
        %3080 = vmatmul.bf16.gmra.mxu0 %v2450
        %v3081 = vpop.f32.mrf.mxu0
        %v3082 = vadd.f32 %v2524, %v3081
        %v3083 = vpop.f32.mrf.mxu0
        %v3084 = vadd.f32 %v2524, %v3083
        %3085 = vmatmul.bf16.gmra.mxu0 %v2451
        %v3086 = vpop.f32.mrf.mxu0
        %v3087 = vadd.f32 %v2524, %v3086
        %v3088 = vpop.f32.mrf.mxu0
        %v3089 = vadd.f32 %v2524, %v3088
        %3090 = vmatmul.bf16.gmra.mxu0 %v2452
        %v3091 = vpop.f32.mrf.mxu0
        %v3092 = vadd.f32 %v2524, %v3091
        %v3093 = vpop.f32.mrf.mxu0
        %v3094 = vadd.f32 %v2524, %v3093
        %3095 = vmatmul.bf16.gmra.mxu0 %v2453
        %v3096 = vpop.f32.mrf.mxu0
        %v3097 = vadd.f32 %v2524, %v3096
        %v3098 = vpop.f32.mrf.mxu0
        %v3099 = vadd.f32 %v2524, %v3098
        %3100 = vdwg.mxu0
        %3101 = vmatpush.bf16.msra.mxu0 %v2789
        %3102 = vmatpush.bf16.msra.mxu0 %v2781
        %3103 = vmatpush.bf16.msra.mxu0 %v2773
        %3104 = vmatpush.bf16.msra.mxu0 %v2765
        %3105 = vmatpush.bf16.msra.mxu0 %v2757
        %3106 = vmatpush.bf16.msra.mxu0 %v2749
        %3107 = vmatpush.bf16.msra.mxu0 %v2741
        %3108 = vmatpush.bf16.msra.mxu0 %v2733
        %3109 = vmatmul.bf16.gmra.mxu0 %v2446
        %v3110 = vpop.f32.mrf.mxu0
        %v3111 = vadd.f32 %v2525, %v3110
        %v3112 = vpop.f32.mrf.mxu0
        %v3113 = vadd.f32 %v2525, %v3112
        %3114 = vmatmul.bf16.gmra.mxu0 %v2447
        %v3115 = vpop.f32.mrf.mxu0
        %v3116 = vadd.f32 %v2525, %v3115
        %v3117 = vpop.f32.mrf.mxu0
        %v3118 = vadd.f32 %v2525, %v3117
        %3119 = vmatmul.bf16.gmra.mxu0 %v2448
        %v3120 = vpop.f32.mrf.mxu0
        %v3121 = vadd.f32 %v2525, %v3120
        %v3122 = vpop.f32.mrf.mxu0
        %v3123 = vadd.f32 %v2525, %v3122
        %3124 = vmatmul.bf16.gmra.mxu0 %v2449
        %v3125 = vpop.f32.mrf.mxu0
        %v3126 = vadd.f32 %v2525, %v3125
        %v3127 = vpop.f32.mrf.mxu0
        %v3128 = vadd.f32 %v2525, %v3127
        %3129 = vmatmul.bf16.gmra.mxu0 %v2450
        %v3130 = vpop.f32.mrf.mxu0
        %v3131 = vadd.f32 %v2525, %v3130
        %v3132 = vpop.f32.mrf.mxu0
        %v3133 = vadd.f32 %v2525, %v3132
        %3134 = vmatmul.bf16.gmra.mxu0 %v2451
        %v3135 = vpop.f32.mrf.mxu0
        %v3136 = vadd.f32 %v2525, %v3135
        %v3137 = vpop.f32.mrf.mxu0
        %v3138 = vadd.f32 %v2525, %v3137
        %3139 = vmatmul.bf16.gmra.mxu0 %v2452
        %v3140 = vpop.f32.mrf.mxu0
        %v3141 = vadd.f32 %v2525, %v3140
        %v3142 = vpop.f32.mrf.mxu0
        %v3143 = vadd.f32 %v2525, %v3142
        %3144 = vmatmul.bf16.gmra.mxu0 %v2453
        %v3145 = vpop.f32.mrf.mxu0
        %v3146 = vadd.f32 %v2525, %v3145
        %v3147 = vpop.f32.mrf.mxu0
        %v3148 = vadd.f32 %v2525, %v3147
        %3149 = vdwg.mxu0
        %3150 = vmatpush.bf16.msra.mxu0 %v2790
        %3151 = vmatpush.bf16.msra.mxu0 %v2782
        %3152 = vmatpush.bf16.msra.mxu0 %v2774
        %3153 = vmatpush.bf16.msra.mxu0 %v2766
        %3154 = vmatpush.bf16.msra.mxu0 %v2758
        %3155 = vmatpush.bf16.msra.mxu0 %v2750
        %3156 = vmatpush.bf16.msra.mxu0 %v2742
        %3157 = vmatpush.bf16.msra.mxu0 %v2734
        %3158 = vmatmul.bf16.gmra.mxu0 %v2446
        %v3159 = vpop.f32.mrf.mxu0
        %v3160 = vadd.f32 %v2526, %v3159
        %v3161 = vpop.f32.mrf.mxu0
        %v3162 = vadd.f32 %v2526, %v3161
        %3163 = vmatmul.bf16.gmra.mxu0 %v2447
        %v3164 = vpop.f32.mrf.mxu0
        %v3165 = vadd.f32 %v2526, %v3164
        %v3166 = vpop.f32.mrf.mxu0
        %v3167 = vadd.f32 %v2526, %v3166
        %3168 = vmatmul.bf16.gmra.mxu0 %v2448
        %v3169 = vpop.f32.mrf.mxu0
        %v3170 = vadd.f32 %v2526, %v3169
        %v3171 = vpop.f32.mrf.mxu0
        %v3172 = vadd.f32 %v2526, %v3171
        %3173 = vmatmul.bf16.gmra.mxu0 %v2449
        %v3174 = vpop.f32.mrf.mxu0
        %v3175 = vadd.f32 %v2526, %v3174
        %v3176 = vpop.f32.mrf.mxu0
        %v3177 = vadd.f32 %v2526, %v3176
        %3178 = vmatmul.bf16.gmra.mxu0 %v2450
        %v3179 = vpop.f32.mrf.mxu0
        %v3180 = vadd.f32 %v2526, %v3179
        %v3181 = vpop.f32.mrf.mxu0
        %v3182 = vadd.f32 %v2526, %v3181
        %3183 = vmatmul.bf16.gmra.mxu0 %v2451
        %v3184 = vpop.f32.mrf.mxu0
        %v3185 = vadd.f32 %v2526, %v3184
        %v3186 = vpop.f32.mrf.mxu0
        %v3187 = vadd.f32 %v2526, %v3186
        %3188 = vmatmul.bf16.gmra.mxu0 %v2452
        %v3189 = vpop.f32.mrf.mxu0
        %v3190 = vadd.f32 %v2526, %v3189
        %v3191 = vpop.f32.mrf.mxu0
        %v3192 = vadd.f32 %v2526, %v3191
        %3193 = vmatmul.bf16.gmra.mxu0 %v2453
        %v3194 = vpop.f32.mrf.mxu0
        %v3195 = vadd.f32 %v2526, %v3194
        %v3196 = vpop.f32.mrf.mxu0
        %v3197 = vadd.f32 %v2526, %v3196
        %3198 = vdwg.mxu0
        %3199 = vmatpush.bf16.msra.mxu0 %v2791
        %3200 = vmatpush.bf16.msra.mxu0 %v2783
        %3201 = vmatpush.bf16.msra.mxu0 %v2775
        %3202 = vmatpush.bf16.msra.mxu0 %v2767
        %3203 = vmatpush.bf16.msra.mxu0 %v2759
        %3204 = vmatpush.bf16.msra.mxu0 %v2751
        %3205 = vmatpush.bf16.msra.mxu0 %v2743
        %3206 = vmatpush.bf16.msra.mxu0 %v2735
        %3207 = vmatmul.bf16.gmra.mxu0 %v2446
        %v3208 = vpop.f32.mrf.mxu0
        %v3209 = vadd.f32 %v2527, %v3208
        %v3210 = vpop.f32.mrf.mxu0
        %v3211 = vadd.f32 %v2527, %v3210
        %3212 = vmatmul.bf16.gmra.mxu0 %v2447
        %v3213 = vpop.f32.mrf.mxu0
        %v3214 = vadd.f32 %v2527, %v3213
        %v3215 = vpop.f32.mrf.mxu0
        %v3216 = vadd.f32 %v2527, %v3215
        %3217 = vmatmul.bf16.gmra.mxu0 %v2448
        %v3218 = vpop.f32.mrf.mxu0
        %v3219 = vadd.f32 %v2527, %v3218
        %v3220 = vpop.f32.mrf.mxu0
        %v3221 = vadd.f32 %v2527, %v3220
        %3222 = vmatmul.bf16.gmra.mxu0 %v2449
        %v3223 = vpop.f32.mrf.mxu0
        %v3224 = vadd.f32 %v2527, %v3223
        %v3225 = vpop.f32.mrf.mxu0
        %v3226 = vadd.f32 %v2527, %v3225
        %3227 = vmatmul.bf16.gmra.mxu0 %v2450
        %v3228 = vpop.f32.mrf.mxu0
        %v3229 = vadd.f32 %v2527, %v3228
        %v3230 = vpop.f32.mrf.mxu0
        %v3231 = vadd.f32 %v2527, %v3230
        %3232 = vmatmul.bf16.gmra.mxu0 %v2451
        %v3233 = vpop.f32.mrf.mxu0
        %v3234 = vadd.f32 %v2527, %v3233
        %v3235 = vpop.f32.mrf.mxu0
        %v3236 = vadd.f32 %v2527, %v3235
        %3237 = vmatmul.bf16.gmra.mxu0 %v2452
        %v3238 = vpop.f32.mrf.mxu0
        %v3239 = vadd.f32 %v2527, %v3238
        %v3240 = vpop.f32.mrf.mxu0
        %v3241 = vadd.f32 %v2527, %v3240
        %3242 = vmatmul.bf16.gmra.mxu0 %v2453
        %v3243 = vpop.f32.mrf.mxu0
        %v3244 = vadd.f32 %v2527, %v3243
        %v3245 = vpop.f32.mrf.mxu0
        %v3246 = vadd.f32 %v2527, %v3245
        %3247 = vdwg.mxu0
        %3248 = vset.pattern.permute.xlu0 3
        %3249 = vperm.xlu0 %3248, %v430
        %v3250 = vpop.permute.xlu0 %3249
        %3252 = vset.pattern.permute.xlu0 3
        %3253 = vperm.xlu0 %3252, %v431
        %v3254 = vpop.permute.xlu0 %3253
        %3256 = vset.pattern.permute.xlu0 3
        %3257 = vperm.xlu0 %3256, %v432
        %v3258 = vpop.permute.xlu0 %3257
        %3260 = vset.pattern.permute.xlu0 3
        %3261 = vperm.xlu0 %3260, %v433
        %v3262 = vpop.permute.xlu0 %3261
        %3264 = vset.pattern.permute.xlu0 3
        %3265 = vperm.xlu0 %3264, %v434
        %v3266 = vpop.permute.xlu0 %3265
        %3268 = vset.pattern.permute.xlu0 3
        %3269 = vperm.xlu0 %3268, %v435
        %v3270 = vpop.permute.xlu0 %3269
        %3272 = vset.pattern.permute.xlu0 3
        %3273 = vperm.xlu0 %3272, %v436
        %v3274 = vpop.permute.xlu0 %3273
        %3276 = vset.pattern.permute.xlu0 3
        %3277 = vperm.xlu0 %3276, %v437
        %v3278 = vpop.permute.xlu0 %3277
        %3280 = vset.pattern.permute.xlu0 3
        %3281 = vperm.xlu0 %3280, %v438
        %v3282 = vpop.permute.xlu0 %3281
        %3284 = vset.pattern.permute.xlu0 3
        %3285 = vperm.xlu0 %3284, %v439
        %v3286 = vpop.permute.xlu0 %3285
        %3288 = vset.pattern.permute.xlu0 3
        %3289 = vperm.xlu0 %3288, %v440
        %v3290 = vpop.permute.xlu0 %3289
        %3292 = vset.pattern.permute.xlu0 3
        %3293 = vperm.xlu0 %3292, %v441
        %v3294 = vpop.permute.xlu0 %3293
        %3296 = vset.pattern.permute.xlu0 3
        %3297 = vperm.xlu0 %3296, %v442
        %v3298 = vpop.permute.xlu0 %3297
        %3300 = vset.pattern.permute.xlu0 3
        %3301 = vperm.xlu0 %3300, %v443
        %v3302 = vpop.permute.xlu0 %3301
        %3304 = vset.pattern.permute.xlu0 3
        %3305 = vperm.xlu0 %3304, %v444
        %v3306 = vpop.permute.xlu0 %3305
        %3308 = vset.pattern.permute.xlu0 3
        %3309 = vperm.xlu0 %3308, %v445
        %v3310 = vpop.permute.xlu0 %3309
        %v3312 = vmul.f32 %v910, %v3250
        %v3313 = vmul.f32 %v911, %v3250
        %v3314 = vmul.f32 %v912, %v3250
        %v3315 = vmul.f32 %v913, %v3250
        %v3316 = vmul.f32 %v914, %v3250
        %v3317 = vmul.f32 %v915, %v3250
        %v3318 = vmul.f32 %v916, %v3250
        %v3319 = vmul.f32 %v917, %v3250
        %v3320 = vmul.f32 %v918, %v3254
        %v3321 = vmul.f32 %v919, %v3254
        %v3322 = vmul.f32 %v920, %v3254
        %v3323 = vmul.f32 %v921, %v3254
        %v3324 = vmul.f32 %v922, %v3254
        %v3325 = vmul.f32 %v923, %v3254
        %v3326 = vmul.f32 %v924, %v3254
        %v3327 = vmul.f32 %v925, %v3254
        %v3328 = vmul.f32 %v926, %v3258
        %v3329 = vmul.f32 %v927, %v3258
        %v3330 = vmul.f32 %v928, %v3258
        %v3331 = vmul.f32 %v929, %v3258
        %v3332 = vmul.f32 %v930, %v3258
        %v3333 = vmul.f32 %v931, %v3258
        %v3334 = vmul.f32 %v932, %v3258
        %v3335 = vmul.f32 %v933, %v3258
        %v3336 = vmul.f32 %v934, %v3262
        %v3337 = vmul.f32 %v935, %v3262
        %v3338 = vmul.f32 %v936, %v3262
        %v3339 = vmul.f32 %v937, %v3262
        %v3340 = vmul.f32 %v938, %v3262
        %v3341 = vmul.f32 %v939, %v3262
        %v3342 = vmul.f32 %v940, %v3262
        %v3343 = vmul.f32 %v941, %v3262
        %v3344 = vmul.f32 %v942, %v3266
        %v3345 = vmul.f32 %v943, %v3266
        %v3346 = vmul.f32 %v944, %v3266
        %v3347 = vmul.f32 %v945, %v3266
        %v3348 = vmul.f32 %v946, %v3266
        %v3349 = vmul.f32 %v947, %v3266
        %v3350 = vmul.f32 %v948, %v3266
        %v3351 = vmul.f32 %v949, %v3266
        %v3352 = vmul.f32 %v950, %v3270
        %v3353 = vmul.f32 %v951, %v3270
        %v3354 = vmul.f32 %v952, %v3270
        %v3355 = vmul.f32 %v953, %v3270
        %v3356 = vmul.f32 %v954, %v3270
        %v3357 = vmul.f32 %v955, %v3270
        %v3358 = vmul.f32 %v956, %v3270
        %v3359 = vmul.f32 %v957, %v3270
        %v3360 = vmul.f32 %v958, %v3274
        %v3361 = vmul.f32 %v959, %v3274
        %v3362 = vmul.f32 %v960, %v3274
        %v3363 = vmul.f32 %v961, %v3274
        %v3364 = vmul.f32 %v962, %v3274
        %v3365 = vmul.f32 %v963, %v3274
        %v3366 = vmul.f32 %v964, %v3274
        %v3367 = vmul.f32 %v965, %v3274
        %v3368 = vmul.f32 %v966, %v3278
        %v3369 = vmul.f32 %v967, %v3278
        %v3370 = vmul.f32 %v968, %v3278
        %v3371 = vmul.f32 %v969, %v3278
        %v3372 = vmul.f32 %v970, %v3278
        %v3373 = vmul.f32 %v971, %v3278
        %v3374 = vmul.f32 %v972, %v3278
        %v3375 = vmul.f32 %v973, %v3278
        %v3376 = vmul.f32 %v974, %v3282
        %v3377 = vmul.f32 %v975, %v3282
        %v3378 = vmul.f32 %v976, %v3282
        %v3379 = vmul.f32 %v977, %v3282
        %v3380 = vmul.f32 %v978, %v3282
        %v3381 = vmul.f32 %v979, %v3282
        %v3382 = vmul.f32 %v980, %v3282
        %v3383 = vmul.f32 %v981, %v3282
        %v3384 = vmul.f32 %v982, %v3286
        %v3385 = vmul.f32 %v983, %v3286
        %v3386 = vmul.f32 %v984, %v3286
        %v3387 = vmul.f32 %v985, %v3286
        %v3388 = vmul.f32 %v986, %v3286
        %v3389 = vmul.f32 %v987, %v3286
        %v3390 = vmul.f32 %v988, %v3286
        %v3391 = vmul.f32 %v989, %v3286
        %v3392 = vmul.f32 %v990, %v3290
        %v3393 = vmul.f32 %v991, %v3290
        %v3394 = vmul.f32 %v992, %v3290
        %v3395 = vmul.f32 %v993, %v3290
        %v3396 = vmul.f32 %v994, %v3290
        %v3397 = vmul.f32 %v995, %v3290
        %v3398 = vmul.f32 %v996, %v3290
        %v3399 = vmul.f32 %v997, %v3290
        %v3400 = vmul.f32 %v998, %v3294
        %v3401 = vmul.f32 %v999, %v3294
        %v3402 = vmul.f32 %v1000, %v3294
        %v3403 = vmul.f32 %v1001, %v3294
        %v3404 = vmul.f32 %v1002, %v3294
        %v3405 = vmul.f32 %v1003, %v3294
        %v3406 = vmul.f32 %v1004, %v3294
        %v3407 = vmul.f32 %v1005, %v3294
        %v3408 = vmul.f32 %v1006, %v3298
        %v3409 = vmul.f32 %v1007, %v3298
        %v3410 = vmul.f32 %v1008, %v3298
        %v3411 = vmul.f32 %v1009, %v3298
        %v3412 = vmul.f32 %v1010, %v3298
        %v3413 = vmul.f32 %v1011, %v3298
        %v3414 = vmul.f32 %v1012, %v3298
        %v3415 = vmul.f32 %v1013, %v3298
        %v3416 = vmul.f32 %v1014, %v3302
        %v3417 = vmul.f32 %v1015, %v3302
        %v3418 = vmul.f32 %v1016, %v3302
        %v3419 = vmul.f32 %v1017, %v3302
        %v3420 = vmul.f32 %v1018, %v3302
        %v3421 = vmul.f32 %v1019, %v3302
        %v3422 = vmul.f32 %v1020, %v3302
        %v3423 = vmul.f32 %v1021, %v3302
        %v3424 = vmul.f32 %v1022, %v3306
        %v3425 = vmul.f32 %v1023, %v3306
        %v3426 = vmul.f32 %v1024, %v3306
        %v3427 = vmul.f32 %v1025, %v3306
        %v3428 = vmul.f32 %v1026, %v3306
        %v3429 = vmul.f32 %v1027, %v3306
        %v3430 = vmul.f32 %v1028, %v3306
        %v3431 = vmul.f32 %v1029, %v3306
        %v3432 = vmul.f32 %v1030, %v3310
        %v3433 = vmul.f32 %v1031, %v3310
        %v3434 = vmul.f32 %v1032, %v3310
        %v3435 = vmul.f32 %v1033, %v3310
        %v3436 = vmul.f32 %v1034, %v3310
        %v3437 = vmul.f32 %v1035, %v3310
        %v3438 = vmul.f32 %v1036, %v3310
        %v3439 = vmul.f32 %v1037, %v3310
        %v3440 = vadd.f32 %v2866, %v3312
        %v3441 = vadd.f32 %v2915, %v3313
        %v3442 = vadd.f32 %v2964, %v3314
        %v3443 = vadd.f32 %v3013, %v3315
        %v3444 = vadd.f32 %v3062, %v3316
        %v3445 = vadd.f32 %v3111, %v3317
        %v3446 = vadd.f32 %v3160, %v3318
        %v3447 = vadd.f32 %v3209, %v3319
        %v3448 = vadd.f32 %v2868, %v3320
        %v3449 = vadd.f32 %v2917, %v3321
        %v3450 = vadd.f32 %v2966, %v3322
        %v3451 = vadd.f32 %v3015, %v3323
        %v3452 = vadd.f32 %v3064, %v3324
        %v3453 = vadd.f32 %v3113, %v3325
        %v3454 = vadd.f32 %v3162, %v3326
        %v3455 = vadd.f32 %v3211, %v3327
        %v3456 = vadd.f32 %v2871, %v3328
        %v3457 = vadd.f32 %v2920, %v3329
        %v3458 = vadd.f32 %v2969, %v3330
        %v3459 = vadd.f32 %v3018, %v3331
        %v3460 = vadd.f32 %v3067, %v3332
        %v3461 = vadd.f32 %v3116, %v3333
        %v3462 = vadd.f32 %v3165, %v3334
        %v3463 = vadd.f32 %v3214, %v3335
        %v3464 = vadd.f32 %v2873, %v3336
        %v3465 = vadd.f32 %v2922, %v3337
        %v3466 = vadd.f32 %v2971, %v3338
        %v3467 = vadd.f32 %v3020, %v3339
        %v3468 = vadd.f32 %v3069, %v3340
        %v3469 = vadd.f32 %v3118, %v3341
        %v3470 = vadd.f32 %v3167, %v3342
        %v3471 = vadd.f32 %v3216, %v3343
        %v3472 = vadd.f32 %v2876, %v3344
        %v3473 = vadd.f32 %v2925, %v3345
        %v3474 = vadd.f32 %v2974, %v3346
        %v3475 = vadd.f32 %v3023, %v3347
        %v3476 = vadd.f32 %v3072, %v3348
        %v3477 = vadd.f32 %v3121, %v3349
        %v3478 = vadd.f32 %v3170, %v3350
        %v3479 = vadd.f32 %v3219, %v3351
        %v3480 = vadd.f32 %v2878, %v3352
        %v3481 = vadd.f32 %v2927, %v3353
        %v3482 = vadd.f32 %v2976, %v3354
        %v3483 = vadd.f32 %v3025, %v3355
        %v3484 = vadd.f32 %v3074, %v3356
        %v3485 = vadd.f32 %v3123, %v3357
        %v3486 = vadd.f32 %v3172, %v3358
        %v3487 = vadd.f32 %v3221, %v3359
        %v3488 = vadd.f32 %v2881, %v3360
        %v3489 = vadd.f32 %v2930, %v3361
        %v3490 = vadd.f32 %v2979, %v3362
        %v3491 = vadd.f32 %v3028, %v3363
        %v3492 = vadd.f32 %v3077, %v3364
        %v3493 = vadd.f32 %v3126, %v3365
        %v3494 = vadd.f32 %v3175, %v3366
        %v3495 = vadd.f32 %v3224, %v3367
        %v3496 = vadd.f32 %v2883, %v3368
        %v3497 = vadd.f32 %v2932, %v3369
        %v3498 = vadd.f32 %v2981, %v3370
        %v3499 = vadd.f32 %v3030, %v3371
        %v3500 = vadd.f32 %v3079, %v3372
        %v3501 = vadd.f32 %v3128, %v3373
        %v3502 = vadd.f32 %v3177, %v3374
        %v3503 = vadd.f32 %v3226, %v3375
        %v3504 = vadd.f32 %v2886, %v3376
        %v3505 = vadd.f32 %v2935, %v3377
        %v3506 = vadd.f32 %v2984, %v3378
        %v3507 = vadd.f32 %v3033, %v3379
        %v3508 = vadd.f32 %v3082, %v3380
        %v3509 = vadd.f32 %v3131, %v3381
        %v3510 = vadd.f32 %v3180, %v3382
        %v3511 = vadd.f32 %v3229, %v3383
        %v3512 = vadd.f32 %v2888, %v3384
        %v3513 = vadd.f32 %v2937, %v3385
        %v3514 = vadd.f32 %v2986, %v3386
        %v3515 = vadd.f32 %v3035, %v3387
        %v3516 = vadd.f32 %v3084, %v3388
        %v3517 = vadd.f32 %v3133, %v3389
        %v3518 = vadd.f32 %v3182, %v3390
        %v3519 = vadd.f32 %v3231, %v3391
        %v3520 = vadd.f32 %v2891, %v3392
        %v3521 = vadd.f32 %v2940, %v3393
        %v3522 = vadd.f32 %v2989, %v3394
        %v3523 = vadd.f32 %v3038, %v3395
        %v3524 = vadd.f32 %v3087, %v3396
        %v3525 = vadd.f32 %v3136, %v3397
        %v3526 = vadd.f32 %v3185, %v3398
        %v3527 = vadd.f32 %v3234, %v3399
        %v3528 = vadd.f32 %v2893, %v3400
        %v3529 = vadd.f32 %v2942, %v3401
        %v3530 = vadd.f32 %v2991, %v3402
        %v3531 = vadd.f32 %v3040, %v3403
        %v3532 = vadd.f32 %v3089, %v3404
        %v3533 = vadd.f32 %v3138, %v3405
        %v3534 = vadd.f32 %v3187, %v3406
        %v3535 = vadd.f32 %v3236, %v3407
        %v3536 = vadd.f32 %v2896, %v3408
        %v3537 = vadd.f32 %v2945, %v3409
        %v3538 = vadd.f32 %v2994, %v3410
        %v3539 = vadd.f32 %v3043, %v3411
        %v3540 = vadd.f32 %v3092, %v3412
        %v3541 = vadd.f32 %v3141, %v3413
        %v3542 = vadd.f32 %v3190, %v3414
        %v3543 = vadd.f32 %v3239, %v3415
        %v3544 = vadd.f32 %v2898, %v3416
        %v3545 = vadd.f32 %v2947, %v3417
        %v3546 = vadd.f32 %v2996, %v3418
        %v3547 = vadd.f32 %v3045, %v3419
        %v3548 = vadd.f32 %v3094, %v3420
        %v3549 = vadd.f32 %v3143, %v3421
        %v3550 = vadd.f32 %v3192, %v3422
        %v3551 = vadd.f32 %v3241, %v3423
        %v3552 = vadd.f32 %v2901, %v3424
        %v3553 = vadd.f32 %v2950, %v3425
        %v3554 = vadd.f32 %v2999, %v3426
        %v3555 = vadd.f32 %v3048, %v3427
        %v3556 = vadd.f32 %v3097, %v3428
        %v3557 = vadd.f32 %v3146, %v3429
        %v3558 = vadd.f32 %v3195, %v3430
        %v3559 = vadd.f32 %v3244, %v3431
        %v3560 = vadd.f32 %v2903, %v3432
        %v3561 = vadd.f32 %v2952, %v3433
        %v3562 = vadd.f32 %v3001, %v3434
        %v3563 = vadd.f32 %v3050, %v3435
        %v3564 = vadd.f32 %v3099, %v3436
        %v3565 = vadd.f32 %v3148, %v3437
        %v3566 = vadd.f32 %v3197, %v3438
        %v3567 = vadd.f32 %v3246, %v3439
        %v3568 = vmul.f32 %v3440, %v3440
        %v3569 = vmul.f32 %v3441, %v3441
        %v3570 = vmul.f32 %v3442, %v3442
        %v3571 = vmul.f32 %v3443, %v3443
        %v3572 = vmul.f32 %v3444, %v3444
        %v3573 = vmul.f32 %v3445, %v3445
        %v3574 = vmul.f32 %v3446, %v3446
        %v3575 = vmul.f32 %v3447, %v3447
        %v3576 = vmul.f32 %v3448, %v3448
        %v3577 = vmul.f32 %v3449, %v3449
        %v3578 = vmul.f32 %v3450, %v3450
        %v3579 = vmul.f32 %v3451, %v3451
        %v3580 = vmul.f32 %v3452, %v3452
        %v3581 = vmul.f32 %v3453, %v3453
        %v3582 = vmul.f32 %v3454, %v3454
        %v3583 = vmul.f32 %v3455, %v3455
        %v3584 = vmul.f32 %v3456, %v3456
        %v3585 = vmul.f32 %v3457, %v3457
        %v3586 = vmul.f32 %v3458, %v3458
        %v3587 = vmul.f32 %v3459, %v3459
        %v3588 = vmul.f32 %v3460, %v3460
        %v3589 = vmul.f32 %v3461, %v3461
        %v3590 = vmul.f32 %v3462, %v3462
        %v3591 = vmul.f32 %v3463, %v3463
        %v3592 = vmul.f32 %v3464, %v3464
        %v3593 = vmul.f32 %v3465, %v3465
        %v3594 = vmul.f32 %v3466, %v3466
        %v3595 = vmul.f32 %v3467, %v3467
        %v3596 = vmul.f32 %v3468, %v3468
        %v3597 = vmul.f32 %v3469, %v3469
        %v3598 = vmul.f32 %v3470, %v3470
        %v3599 = vmul.f32 %v3471, %v3471
        %v3600 = vmul.f32 %v3472, %v3472
        %v3601 = vmul.f32 %v3473, %v3473
        %v3602 = vmul.f32 %v3474, %v3474
        %v3603 = vmul.f32 %v3475, %v3475
        %v3604 = vmul.f32 %v3476, %v3476
        %v3605 = vmul.f32 %v3477, %v3477
        %v3606 = vmul.f32 %v3478, %v3478
        %v3607 = vmul.f32 %v3479, %v3479
        %v3608 = vmul.f32 %v3480, %v3480
        %v3609 = vmul.f32 %v3481, %v3481
        %v3610 = vmul.f32 %v3482, %v3482
        %v3611 = vmul.f32 %v3483, %v3483
        %v3612 = vmul.f32 %v3484, %v3484
        %v3613 = vmul.f32 %v3485, %v3485
        %v3614 = vmul.f32 %v3486, %v3486
        %v3615 = vmul.f32 %v3487, %v3487
        %v3616 = vmul.f32 %v3488, %v3488
        %v3617 = vmul.f32 %v3489, %v3489
        %v3618 = vmul.f32 %v3490, %v3490
        %v3619 = vmul.f32 %v3491, %v3491
        %v3620 = vmul.f32 %v3492, %v3492
        %v3621 = vmul.f32 %v3493, %v3493
        %v3622 = vmul.f32 %v3494, %v3494
        %v3623 = vmul.f32 %v3495, %v3495
        %v3624 = vmul.f32 %v3496, %v3496
        %v3625 = vmul.f32 %v3497, %v3497
        %v3626 = vmul.f32 %v3498, %v3498
        %v3627 = vmul.f32 %v3499, %v3499
        %v3628 = vmul.f32 %v3500, %v3500
        %v3629 = vmul.f32 %v3501, %v3501
        %v3630 = vmul.f32 %v3502, %v3502
        %v3631 = vmul.f32 %v3503, %v3503
        %v3632 = vmul.f32 %v3504, %v3504
        %v3633 = vmul.f32 %v3505, %v3505
        %v3634 = vmul.f32 %v3506, %v3506
        %v3635 = vmul.f32 %v3507, %v3507
        %v3636 = vmul.f32 %v3508, %v3508
        %v3637 = vmul.f32 %v3509, %v3509
        %v3638 = vmul.f32 %v3510, %v3510
        %v3639 = vmul.f32 %v3511, %v3511
        %v3640 = vmul.f32 %v3512, %v3512
        %v3641 = vmul.f32 %v3513, %v3513
        %v3642 = vmul.f32 %v3514, %v3514
        %v3643 = vmul.f32 %v3515, %v3515
        %v3644 = vmul.f32 %v3516, %v3516
        %v3645 = vmul.f32 %v3517, %v3517
        %v3646 = vmul.f32 %v3518, %v3518
        %v3647 = vmul.f32 %v3519, %v3519
        %v3648 = vmul.f32 %v3520, %v3520
        %v3649 = vmul.f32 %v3521, %v3521
        %v3650 = vmul.f32 %v3522, %v3522
        %v3651 = vmul.f32 %v3523, %v3523
        %v3652 = vmul.f32 %v3524, %v3524
        %v3653 = vmul.f32 %v3525, %v3525
        %v3654 = vmul.f32 %v3526, %v3526
        %v3655 = vmul.f32 %v3527, %v3527
        %v3656 = vmul.f32 %v3528, %v3528
        %v3657 = vmul.f32 %v3529, %v3529
        %v3658 = vmul.f32 %v3530, %v3530
        %v3659 = vmul.f32 %v3531, %v3531
        %v3660 = vmul.f32 %v3532, %v3532
        %v3661 = vmul.f32 %v3533, %v3533
        %v3662 = vmul.f32 %v3534, %v3534
        %v3663 = vmul.f32 %v3535, %v3535
        %v3664 = vmul.f32 %v3536, %v3536
        %v3665 = vmul.f32 %v3537, %v3537
        %v3666 = vmul.f32 %v3538, %v3538
        %v3667 = vmul.f32 %v3539, %v3539
        %v3668 = vmul.f32 %v3540, %v3540
        %v3669 = vmul.f32 %v3541, %v3541
        %v3670 = vmul.f32 %v3542, %v3542
        %v3671 = vmul.f32 %v3543, %v3543
        %v3672 = vmul.f32 %v3544, %v3544
        %v3673 = vmul.f32 %v3545, %v3545
        %v3674 = vmul.f32 %v3546, %v3546
        %v3675 = vmul.f32 %v3547, %v3547
        %v3676 = vmul.f32 %v3548, %v3548
        %v3677 = vmul.f32 %v3549, %v3549
        %v3678 = vmul.f32 %v3550, %v3550
        %v3679 = vmul.f32 %v3551, %v3551
        %v3680 = vmul.f32 %v3552, %v3552
        %v3681 = vmul.f32 %v3553, %v3553
        %v3682 = vmul.f32 %v3554, %v3554
        %v3683 = vmul.f32 %v3555, %v3555
        %v3684 = vmul.f32 %v3556, %v3556
        %v3685 = vmul.f32 %v3557, %v3557
        %v3686 = vmul.f32 %v3558, %v3558
        %v3687 = vmul.f32 %v3559, %v3559
        %v3688 = vmul.f32 %v3560, %v3560
        %v3689 = vmul.f32 %v3561, %v3561
        %v3690 = vmul.f32 %v3562, %v3562
        %v3691 = vmul.f32 %v3563, %v3563
        %v3692 = vmul.f32 %v3564, %v3564
        %v3693 = vmul.f32 %v3565, %v3565
        %v3694 = vmul.f32 %v3566, %v3566
        %v3695 = vmul.f32 %v3567, %v3567
        %v3696 = vadd.f32 %v3568, %v3569
        %v3697 = vadd.f32 %v3696, %v3570
        %v3698 = vadd.f32 %v3697, %v3571
        %v3699 = vadd.f32 %v3698, %v3572
        %v3700 = vadd.f32 %v3699, %v3573
        %v3701 = vadd.f32 %v3700, %v3574
        %v3702 = vadd.f32 %v3701, %v3575
        %3703 = vadd.xlane.f32.xlu0 %v3702
        %v3704 = vpop.xlane.xlu0 %3703
        %v3705 = vadd.f32 %v3576, %v3577
        %v3706 = vadd.f32 %v3705, %v3578
        %v3707 = vadd.f32 %v3706, %v3579
        %v3708 = vadd.f32 %v3707, %v3580
        %v3709 = vadd.f32 %v3708, %v3581
        %v3710 = vadd.f32 %v3709, %v3582
        %v3711 = vadd.f32 %v3710, %v3583
        %3712 = vadd.xlane.f32.xlu0 %v3711
        %v3713 = vpop.xlane.xlu0 %3712
        %v3714 = vadd.f32 %v3584, %v3585
        %v3715 = vadd.f32 %v3714, %v3586
        %v3716 = vadd.f32 %v3715, %v3587
        %v3717 = vadd.f32 %v3716, %v3588
        %v3718 = vadd.f32 %v3717, %v3589
        %v3719 = vadd.f32 %v3718, %v3590
        %v3720 = vadd.f32 %v3719, %v3591
        %3721 = vadd.xlane.f32.xlu0 %v3720
        %v3722 = vpop.xlane.xlu0 %3721
        %v3723 = vadd.f32 %v3592, %v3593
        %v3724 = vadd.f32 %v3723, %v3594
        %v3725 = vadd.f32 %v3724, %v3595
        %v3726 = vadd.f32 %v3725, %v3596
        %v3727 = vadd.f32 %v3726, %v3597
        %v3728 = vadd.f32 %v3727, %v3598
        %v3729 = vadd.f32 %v3728, %v3599
        %3730 = vadd.xlane.f32.xlu0 %v3729
        %v3731 = vpop.xlane.xlu0 %3730
        %v3732 = vadd.f32 %v3600, %v3601
        %v3733 = vadd.f32 %v3732, %v3602
        %v3734 = vadd.f32 %v3733, %v3603
        %v3735 = vadd.f32 %v3734, %v3604
        %v3736 = vadd.f32 %v3735, %v3605
        %v3737 = vadd.f32 %v3736, %v3606
        %v3738 = vadd.f32 %v3737, %v3607
        %3739 = vadd.xlane.f32.xlu0 %v3738
        %v3740 = vpop.xlane.xlu0 %3739
        %v3741 = vadd.f32 %v3608, %v3609
        %v3742 = vadd.f32 %v3741, %v3610
        %v3743 = vadd.f32 %v3742, %v3611
        %v3744 = vadd.f32 %v3743, %v3612
        %v3745 = vadd.f32 %v3744, %v3613
        %v3746 = vadd.f32 %v3745, %v3614
        %v3747 = vadd.f32 %v3746, %v3615
        %3748 = vadd.xlane.f32.xlu0 %v3747
        %v3749 = vpop.xlane.xlu0 %3748
        %v3750 = vadd.f32 %v3616, %v3617
        %v3751 = vadd.f32 %v3750, %v3618
        %v3752 = vadd.f32 %v3751, %v3619
        %v3753 = vadd.f32 %v3752, %v3620
        %v3754 = vadd.f32 %v3753, %v3621
        %v3755 = vadd.f32 %v3754, %v3622
        %v3756 = vadd.f32 %v3755, %v3623
        %3757 = vadd.xlane.f32.xlu0 %v3756
        %v3758 = vpop.xlane.xlu0 %3757
        %v3759 = vadd.f32 %v3624, %v3625
        %v3760 = vadd.f32 %v3759, %v3626
        %v3761 = vadd.f32 %v3760, %v3627
        %v3762 = vadd.f32 %v3761, %v3628
        %v3763 = vadd.f32 %v3762, %v3629
        %v3764 = vadd.f32 %v3763, %v3630
        %v3765 = vadd.f32 %v3764, %v3631
        %3766 = vadd.xlane.f32.xlu0 %v3765
        %v3767 = vpop.xlane.xlu0 %3766
        %v3768 = vadd.f32 %v3632, %v3633
        %v3769 = vadd.f32 %v3768, %v3634
        %v3770 = vadd.f32 %v3769, %v3635
        %v3771 = vadd.f32 %v3770, %v3636
        %v3772 = vadd.f32 %v3771, %v3637
        %v3773 = vadd.f32 %v3772, %v3638
        %v3774 = vadd.f32 %v3773, %v3639
        %3775 = vadd.xlane.f32.xlu0 %v3774
        %v3776 = vpop.xlane.xlu0 %3775
        %v3777 = vadd.f32 %v3640, %v3641
        %v3778 = vadd.f32 %v3777, %v3642
        %v3779 = vadd.f32 %v3778, %v3643
        %v3780 = vadd.f32 %v3779, %v3644
        %v3781 = vadd.f32 %v3780, %v3645
        %v3782 = vadd.f32 %v3781, %v3646
        %v3783 = vadd.f32 %v3782, %v3647
        %3784 = vadd.xlane.f32.xlu0 %v3783
        %v3785 = vpop.xlane.xlu0 %3784
        %v3786 = vadd.f32 %v3648, %v3649
        %v3787 = vadd.f32 %v3786, %v3650
        %v3788 = vadd.f32 %v3787, %v3651
        %v3789 = vadd.f32 %v3788, %v3652
        %v3790 = vadd.f32 %v3789, %v3653
        %v3791 = vadd.f32 %v3790, %v3654
        %v3792 = vadd.f32 %v3791, %v3655
        %3793 = vadd.xlane.f32.xlu0 %v3792
        %v3794 = vpop.xlane.xlu0 %3793
        %v3795 = vadd.f32 %v3656, %v3657
        %v3796 = vadd.f32 %v3795, %v3658
        %v3797 = vadd.f32 %v3796, %v3659
        %v3798 = vadd.f32 %v3797, %v3660
        %v3799 = vadd.f32 %v3798, %v3661
        %v3800 = vadd.f32 %v3799, %v3662
        %v3801 = vadd.f32 %v3800, %v3663
        %3802 = vadd.xlane.f32.xlu0 %v3801
        %v3803 = vpop.xlane.xlu0 %3802
        %v3804 = vadd.f32 %v3664, %v3665
        %v3805 = vadd.f32 %v3804, %v3666
        %v3806 = vadd.f32 %v3805, %v3667
        %v3807 = vadd.f32 %v3806, %v3668
        %v3808 = vadd.f32 %v3807, %v3669
        %v3809 = vadd.f32 %v3808, %v3670
        %v3810 = vadd.f32 %v3809, %v3671
        %3811 = vadd.xlane.f32.xlu0 %v3810
        %v3812 = vpop.xlane.xlu0 %3811
        %v3813 = vadd.f32 %v3672, %v3673
        %v3814 = vadd.f32 %v3813, %v3674
        %v3815 = vadd.f32 %v3814, %v3675
        %v3816 = vadd.f32 %v3815, %v3676
        %v3817 = vadd.f32 %v3816, %v3677
        %v3818 = vadd.f32 %v3817, %v3678
        %v3819 = vadd.f32 %v3818, %v3679
        %3820 = vadd.xlane.f32.xlu0 %v3819
        %v3821 = vpop.xlane.xlu0 %3820
        %v3822 = vadd.f32 %v3680, %v3681
        %v3823 = vadd.f32 %v3822, %v3682
        %v3824 = vadd.f32 %v3823, %v3683
        %v3825 = vadd.f32 %v3824, %v3684
        %v3826 = vadd.f32 %v3825, %v3685
        %v3827 = vadd.f32 %v3826, %v3686
        %v3828 = vadd.f32 %v3827, %v3687
        %3829 = vadd.xlane.f32.xlu0 %v3828
        %v3830 = vpop.xlane.xlu0 %3829
        %v3831 = vadd.f32 %v3688, %v3689
        %v3832 = vadd.f32 %v3831, %v3690
        %v3833 = vadd.f32 %v3832, %v3691
        %v3834 = vadd.f32 %v3833, %v3692
        %v3835 = vadd.f32 %v3834, %v3693
        %v3836 = vadd.f32 %v3835, %v3694
        %v3837 = vadd.f32 %v3836, %v3695
        %3838 = vadd.xlane.f32.xlu0 %v3837
        %v3839 = vpop.xlane.xlu0 %3838
        %v3840 = vmul.f32 %v430, %v3704
        %v3841 = vmul.f32 %v431, %v3713
        %v3842 = vmul.f32 %v432, %v3722
        %v3843 = vmul.f32 %v433, %v3731
        %v3844 = vmul.f32 %v434, %v3740
        %v3845 = vmul.f32 %v435, %v3749
        %v3846 = vmul.f32 %v436, %v3758
        %v3847 = vmul.f32 %v437, %v3767
        %v3848 = vmul.f32 %v438, %v3776
        %v3849 = vmul.f32 %v439, %v3785
        %v3850 = vmul.f32 %v440, %v3794
        %v3851 = vmul.f32 %v441, %v3803
        %v3852 = vmul.f32 %v442, %v3812
        %v3853 = vmul.f32 %v443, %v3821
        %v3854 = vmul.f32 %v444, %v3830
        %v3855 = vmul.f32 %v445, %v3839
        %3872 = vrot.lane.b32.xlu0 %v3840, 124
        %v3873 = vpop.permute.xlu0 %3872
        %3874 = vrot.lane.b32.xlu0 %v3841, 124
        %v3875 = vpop.permute.xlu0 %3874
        %3876 = vrot.lane.b32.xlu0 %v3842, 124
        %v3877 = vpop.permute.xlu0 %3876
        %3878 = vrot.lane.b32.xlu0 %v3843, 124
        %v3879 = vpop.permute.xlu0 %3878
        %3880 = vrot.lane.b32.xlu0 %v3844, 124
        %v3881 = vpop.permute.xlu0 %3880
        %3882 = vrot.lane.b32.xlu0 %v3845, 124
        %v3883 = vpop.permute.xlu0 %3882
        %3884 = vrot.lane.b32.xlu0 %v3846, 124
        %v3885 = vpop.permute.xlu0 %3884
        %3886 = vrot.lane.b32.xlu0 %v3847, 124
        %v3887 = vpop.permute.xlu0 %3886
        %3888 = vrot.lane.b32.xlu0 %v3848, 124
        %v3889 = vpop.permute.xlu0 %3888
        %3890 = vrot.lane.b32.xlu0 %v3849, 124
        %v3891 = vpop.permute.xlu0 %3890
        %3892 = vrot.lane.b32.xlu0 %v3850, 124
        %v3893 = vpop.permute.xlu0 %3892
        %3894 = vrot.lane.b32.xlu0 %v3851, 124
        %v3895 = vpop.permute.xlu0 %3894
        %3896 = vrot.lane.b32.xlu0 %v3852, 124
        %v3897 = vpop.permute.xlu0 %3896
        %3898 = vrot.lane.b32.xlu0 %v3853, 124
        %v3899 = vpop.permute.xlu0 %3898
        %3900 = vrot.lane.b32.xlu0 %v3854, 124
        %v3901 = vpop.permute.xlu0 %3900
        %3902 = vrot.lane.b32.xlu0 %v3855, 124
        %v3903 = vpop.permute.xlu0 %3902
        %vm3920 = vcmask 7168
        %3921 = vst.msk [vmem:[%s428] sm:$0xff] %vm3920, %v3873
        %3922 = vst.msk [vmem:[%s428 + $0x8] sm:$0xff] %vm3920, %v3875
        %3923 = vst.msk [vmem:[%s428 + $0x10] sm:$0xff] %vm3920, %v3877
        %3924 = vst.msk [vmem:[%s428 + $0x18] sm:$0xff] %vm3920, %v3879
        %3925 = vst.msk [vmem:[%s428 + $0x20] sm:$0xff] %vm3920, %v3881
        %3926 = vst.msk [vmem:[%s428 + $0x28] sm:$0xff] %vm3920, %v3883
        %3927 = vst.msk [vmem:[%s428 + $0x30] sm:$0xff] %vm3920, %v3885
        %3928 = vst.msk [vmem:[%s428 + $0x38] sm:$0xff] %vm3920, %v3887
        %3929 = vst.msk [vmem:[%s428 + $0x40] sm:$0xff] %vm3920, %v3889
        %3930 = vst.msk [vmem:[%s428 + $0x48] sm:$0xff] %vm3920, %v3891
        %3931 = vst.msk [vmem:[%s428 + $0x50] sm:$0xff] %vm3920, %v3893
        %3932 = vst.msk [vmem:[%s428 + $0x58] sm:$0xff] %vm3920, %v3895
        %3933 = vst.msk [vmem:[%s428 + $0x60] sm:$0xff] %vm3920, %v3897
        %3934 = vst.msk [vmem:[%s428 + $0x68] sm:$0xff] %vm3920, %v3899
        %3935 = vst.msk [vmem:[%s428 + $0x70] sm:$0xff] %vm3920, %v3901
        %3936 = vst.msk [vmem:[%s428 + $0x78] sm:$0xff] %vm3920, %v3903
        %s3937 = smul.u32 16, %s26
        %p3938 = scmp.lt.s32.totalorder %s3937, 31
        %s3939 = scalar_select %p3938, %s3937, 31
        %s3940 = smul.addr %s3939, 8
        %s3941 = scalar_lea.vmem %s8, %s3940
        // Predicated region
        $region69: #{score_matching_loss.1} parent=51 // pred_check
          %p3942 = pneg %p227
        $region70: #{score_matching_loss.1} parent=51 // pred_check_branch
          %3944 = sbr.rel (%p3942) target = $region72
        $region71: #{score_matching_loss.1} parent=51 // pred_region
          %s3945 = smul.u32 16, %s26
        $region72: #{score_matching_loss.1} parent=51 // pred_fallthru
          _
      $region52: #{score_matching_loss.1} parent=5 // pred_fallthru
        _
      %p3946 = scmp.le.s32.totalorder 2, %s21
      // Predicated region
      $region73: #{score_matching_loss.1} parent=5 // pred_check
        %p3947 = pneg %p3946
      $region74: #{score_matching_loss.1} parent=5 // pred_check_branch
        %3949 = sbr.rel (%p3947) target = $region76
      $region75: #{score_matching_loss.1} parent=5 // pred_region
        %s3950 = ssub.s32 %s21, 2
        // Predicated region
        $region77: #{score_matching_loss.1} parent=75 // pred_check
          %p3951 = pneg %p233
        $region78: #{score_matching_loss.1} parent=75 // pred_check_branch
          %3953 = sbr.rel (%p3951) target = $region80
        $region79: #{score_matching_loss.1} parent=75 // pred_region
          %s3954 = smul.u32 16, %s27
          %p3955 = scmp.lt.s32.totalorder %s3954, 31
          %s3956 = scalar_select %p3955, %s3954, 31
          %s3957 = smul.addr %s3956, 8
          %s3958 = scalar_lea.vmem %s8, %s3957
        $region80: #{score_matching_loss.1} parent=75 // pred_fallthru
          _
      $region76: #{score_matching_loss.1} parent=5 // pred_fallthru
        _
    $region6: #{score_matching_loss.1} parent=1 // loop_footer
      %s25 = sadd.s32 1, %s21
    $region7: #{score_matching_loss.1} parent=1 // loop_footer_branch
      %20 = sbr.rel target = $region3
    $region8: #{score_matching_loss.1} parent=1 // loop_exit
      _
    %3959 = vsyncpa [#allocation3], 1
    %s3960 = scalar_lea.sflag [#allocation3], 1
    %3961 = vsyncpa %s3960, 1
    %3962 = vsyncpa [#allocation5], 1
    %s3963 = scalar_lea.sflag [#allocation5], 1
    %3964 = vsyncpa %s3963, 1
    %3965 = vsyncpa [#allocation8], 1

</llo_original>
